<compile_context>
chip_gen: v6e
topology: v6e:2x2x1
jax: 0.10.0
libtpu: 0.0.40
codegen_flags: <defaults>
</compile_context>

<pallas_src>
import math

import jax
import jax.numpy as jnp
from jax.experimental import pallas as pl
from jax.experimental.pallas import tpu as pltpu


# ----------------------------------------------------------------------------- kernel

def _rff_cos_kernel(v_ref, bt_ref, o_ref):
    # v_ref:  (TILE_N, D_in+1)   input rows with a trailing ones column
    # bt_ref: (D_in+1, W)        augmented projection (whole array, VMEM resident)
    # o_ref:  (TILE_N, W)        cos(v @ bt)  == [cos | sin | pad] along lanes
    v = v_ref[...].astype(jnp.float32)
    vp = jnp.dot(v, bt_ref[...], preferred_element_type=jnp.float32)  # (TILE_N, W)
    o_ref[...] = jnp.cos(vp).astype(o_ref.dtype)


# ----------------------------------------------------------------------------- helpers

def _round_up(x: int, m: int) -> int:
    return ((x + m - 1) // m) * m


def _tpu_vmem_capacity_bytes() -> int:
    """Generation-aware VMEM capacity; conservative fallback = v7x per-TC 64 MiB."""
    try:
        return int(pltpu.get_tpu_info().vmem_capacity_bytes)
    except Exception:
        return 64 * 1024 * 1024


def _vmem_needed_bytes(tile_n, d_aug, w, in_itemsize, out_itemsize) -> int:
    """Padded-layout VMEM footprint for one pipelined tile.

    Input rows are lane-padded to 128 lanes regardless of D_in; the f32 dot
    result and the cos result are live VMEM intermediates alongside the
    double-buffered input/output tiles.
    """
    bt_bytes = _round_up(d_aug, 8) * w * 4              # resident f32 projection
    in_row = _round_up(d_aug, 128) * in_itemsize        # lane-padded input row
    out_row = w * out_itemsize
    vp_row = w * 4                                      # f32 dot + cos intermediates
    per_row = 2 * in_row + 2 * out_row + 2 * vp_row     # 2x = double buffering / co-live
    return bt_bytes + tile_n * per_row


_TILE_CANDIDATES = (8192, 4096, 2048, 1024, 512, 256, 128, 64, 32, 16, 8)


def _pick_tile_n(d_aug, w, in_itemsize, out_itemsize, budget) -> int:
    for t in _TILE_CANDIDATES:
        if _vmem_needed_bytes(t, d_aug, w, in_itemsize, out_itemsize) <= budget:
            return t
    return 8


def _build_bt_aug(b):
    """b: (E, D_in) -> (bt_aug, E) with bt_aug: (D_in+1, W), W = round_up(2E, 128).

    Columns [0:E]   : 2*pi*B.T with phase 0      -> cos(2*pi*B v)
    Columns [E:2E]  : 2*pi*B.T with phase -pi/2  -> cos(2*pi*B v - pi/2) == sin(2*pi*B v)
    Columns [2E:W]  : zero padding (lane-dense store), sliced off by the wrapper.
    """
    b = jnp.asarray(b, dtype=jnp.float32)
    e, d_in = b.shape
    two_pi_bt = (2.0 * math.pi) * b.T                       # (D_in, E)
    w = _round_up(2 * e, 128)
    bt = jnp.zeros((d_in + 1, w), dtype=jnp.float32)
    bt = bt.at[:d_in, :e].set(two_pi_bt)
    bt = bt.at[:d_in, e:2 * e].set(two_pi_bt)
    bt = bt.at[d_in, e:2 * e].set(-0.5 * math.pi)           # phase row (ones column of v)
    return bt, e


# ----------------------------------------------------------------------------- wrapper

def _rff_encode(v: jax.Array, bt_aug: jax.Array, e: int, *, tile_n=None,
                out_dtype=None) -> jax.Array:
    """v: (batch, *, D_in); bt_aug: (D_in+1, W) -> (batch, *, 2E)."""
    *lead, d_in = v.shape
    d_aug, w = bt_aug.shape
    assert d_in + 1 == d_aug, "input_size mismatch between v and b"
    out_dtype = jnp.dtype(v.dtype if out_dtype is None else out_dtype)

    n_rows = math.prod(lead) if lead else 1
    v2d = v.reshape(n_rows, d_in)
    # Ones column feeds the phase row of bt_aug through the (idle) MXU.
    v_aug = jnp.concatenate([v2d, jnp.ones((n_rows, 1), dtype=v2d.dtype)], axis=-1)

    in_itemsize = jnp.dtype(v.dtype).itemsize
    out_itemsize = out_dtype.itemsize
    capacity = _tpu_vmem_capacity_bytes()
    budget = (capacity * 3) // 8            # ~48 MiB on v5e/v6e, ~24 MiB on v7x

    if tile_n is None:
        tile_n = _pick_tile_n(d_aug, w, in_itemsize, out_itemsize, budget)
        # Guarantee >= 4 grid steps (>= 2 for small inputs) so v7x megacore
        # engages and the output-store DMA overlaps the cos compute.
        if n_rows >= 32:
            min_steps = 4 if n_rows >= 64 else 2
            tile_n = min(tile_n, _round_up(pl.cdiv(n_rows, min_steps), 8))

    if tile_n >= n_rows:
        tile_n = n_rows                      # single full-dim block (always legal)
    else:
        tile_n = max(8, (tile_n // 8) * 8)   # sublane-aligned row blocks

    num_tiles = pl.cdiv(n_rows, tile_n)

    needed = _vmem_needed_bytes(tile_n, d_aug, w, in_itemsize, out_itemsize)
    vmem_limit = max(32 << 20, min(needed + (12 << 20), capacity))

    cost = pl.CostEstimate(
        flops=2 * n_rows * d_aug * w,
        transcendentals=n_rows * w,
        bytes_accessed=(n_rows * d_aug * in_itemsize
                        + d_aug * w * 4
                        + n_rows * w * out_itemsize),
    )

    out2d = pl.pallas_call(
        _rff_cos_kernel,
        out_shape=jax.ShapeDtypeStruct((n_rows, w), out_dtype),
        grid_spec=pltpu.PrefetchScalarGridSpec(
            num_scalar_prefetch=0,
            grid=(num_tiles,),
            in_specs=[
                pl.BlockSpec((tile_n, d_aug), lambda i: (i, 0)),
                # Small constant projection: whole array resident in VMEM,
                # no blocking -> no redundant double buffer.
                pl.BlockSpec(memory_space=pltpu.MemorySpace.VMEM),
            ],
            out_specs=pl.BlockSpec((tile_n, w), lambda i: (i, 0)),
        ),
        compiler_params=pltpu.CompilerParams(
            dimension_semantics=("parallel",),   # rows independent -> megacore on v7x
            vmem_limit_bytes=int(vmem_limit),
        ),
        cost_estimate=cost,
    )(v_aug, bt_aug)

    if w != 2 * e:
        out2d = out2d[:, :2 * e]             # drop lane-padding columns
    return out2d.reshape(*lead, 2 * e)


def gaussian_encoding(v: jax.Array, b: jax.Array, *, tile_n=None,
                      out_dtype=None) -> jax.Array:
    """v: (batch, *, input_size); b: (encoded_size, input_size) -> (batch, *, 2*encoded_size)."""
    bt_aug, e = _build_bt_aug(b)
    return _rff_encode(v, bt_aug, e, tile_n=tile_n, out_dtype=out_dtype)


class GaussianEncoding:
    """JAX/Pallas port of the PyTorch GaussianEncoding module.

    Output dtype follows the input dtype unless `out_dtype` is given
    (e.g. jnp.bfloat16 to halve store traffic on bandwidth-bound v5e).
    """

    def __init__(self, sigma=None, input_size=None, encoded_size=None, b=None,
                 *, key=None, out_dtype=None):
        if b is None:
            if sigma is None or input_size is None or encoded_size is None:
                raise ValueError(
                    'Arguments "sigma," "input_size," and "encoded_size" are required.')
            if key is None:
                key = jax.random.PRNGKey(0)
            # sample_b(sigma, shape) = N(0, sigma^2) of shape (encoded_size, input_size)
            b = sigma * jax.random.normal(
                key, (int(encoded_size), int(input_size)), dtype=jnp.float32)
        elif sigma is not None or input_size is not None or encoded_size is not None:
            raise ValueError('Only specify the "b" argument when using it.')
        self.b = b  # non-trainable projection matrix (raw, (E, D_in))
        # Fold 2*pi, the transpose, the cos/sin phase trick and lane padding
        # into one (D_in+1, W) constant at init time (one-time host cost).
        self._bt_aug, self._e = _build_bt_aug(b)
        self._out_dtype = out_dtype

    def __call__(self, v: jax.Array, *, tile_n=None) -> jax.Array:
        return _rff_encode(v, self._bt_aug, self._e, tile_n=tile_n,
                           out_dtype=self._out_dtype)


if __name__ == "__main__":
    key = jax.random.PRNGKey(0)
    k_b, k_v1, k_v2, k_b2, k_v3 = jax.random.split(key, 5)

    # ------------------------------------------------------------------ test 1
    # GeoCLIP-style configuration: D_in=3, encoded_size=256 (2E=512, lane-dense).
    # 256 rows -> auto tiling forces a 4-step grid (megacore + pipelining path).
    batch, extra, input_size, encoded_size = 4, 64, 3, 256
    sigma = 1.0

    enc = GaussianEncoding(sigma=sigma, input_size=input_size,
                           encoded_size=encoded_size, key=k_b)

    v = jax.random.normal(k_v1, (batch, extra, input_size), dtype=jnp.float32)
    out = jax.block_until_ready(enc(v))

    vp_ref = 2.0 * math.pi * jnp.einsum("bxd,ed->bxe", v, enc.b)
    ref = jnp.concatenate([jnp.cos(vp_ref), jnp.sin(vp_ref)], axis=-1)
    assert out.shape == (batch, extra, 2 * encoded_size)
    assert jnp.allclose(out, ref, atol=1e-4), "mismatch vs reference (auto-tiled)"

    # ------------------------------------------------------------------ test 2
    # Explicit tile_n with a partial final row tile (200 rows, 64-row tiles).
    v2 = jax.random.normal(k_v2, (5, 40, input_size), dtype=jnp.float32)
    out2 = jax.block_until_ready(gaussian_encoding(v2, enc.b, tile_n=64))
    vp2 = 2.0 * math.pi * jnp.einsum("bxd,ed->bxe", v2, enc.b)
    ref2 = jnp.concatenate([jnp.cos(vp2), jnp.sin(vp2)], axis=-1)
    assert out2.shape == (5, 40, 2 * encoded_size)
    assert jnp.allclose(out2, ref2, atol=1e-4), "mismatch vs reference (partial tile)"

    # ------------------------------------------------------------------ test 3
    # Non-lane-dense encoded_size (2E=80 -> padded to W=128, wrapper slice) plus
    # the bf16 out_dtype option.
    e_small = 40
    b_small = sigma * jax.random.normal(k_b2, (e_small, input_size), dtype=jnp.float32)
    v3 = jax.random.normal(k_v3, (2, 10, input_size), dtype=jnp.float32)
    out3 = jax.block_until_ready(
        gaussian_encoding(v3, b_small, out_dtype=jnp.bfloat16))
    vp3 = 2.0 * math.pi * jnp.einsum("bxd,ed->bxe", v3, b_small)
    ref3 = jnp.concatenate([jnp.cos(vp3), jnp.sin(vp3)], axis=-1)
    assert out3.shape == (2, 10, 2 * e_small)
    assert out3.dtype == jnp.bfloat16
    assert jnp.allclose(out3.astype(jnp.float32), ref3, atol=2e-2), \
        "mismatch vs reference (padded / bf16 out)"

    print("KERNEL_OK")
</pallas_src>

<mosaic_0001>
module attributes {stable_mosaic.version = 11 : i64} {
  func.func @_rff_cos_kernel(%arg0: i32, %arg1: memref<64x4xf32, #tpu.memory_space<vmem>>, %arg2: memref<4x512xf32, #tpu.memory_space<vmem>>, %arg3: memref<64x512xf32, #tpu.memory_space<vmem>>) attributes {dimension_semantics = [#tpu.dimension_semantics<parallel>], iteration_bounds = array<i64: 4>, scalar_prefetch = 0 : i64, scratch_operands = 0 : i64, tpu.core_type = #tpu.core_type<tc>, window_params = [{transform_indices = @transform_0, window_bounds = array<i64: 64, 4>}, {pipeline_mode = #tpu.pipeline_mode<synchronous>, transform_indices = @transform_1, window_bounds = array<i64: 4, 512>}, {transform_indices = @transform_2, window_bounds = array<i64: 64, 512>}]} {
    %c0 = arith.constant 0 : index
    %c0_0 = arith.constant 0 : index
    %0 = vector.load %arg1[%c0, %c0_0] : memref<64x4xf32, #tpu.memory_space<vmem>>, vector<64x4xf32>
    %c0_1 = arith.constant 0 : index
    %c0_2 = arith.constant 0 : index
    %1 = vector.load %arg2[%c0_1, %c0_2] : memref<4x512xf32, #tpu.memory_space<vmem>>, vector<4x512xf32>
    %cst = arith.constant dense<0.000000e+00> : vector<64x512xf32>
    %2 = tpu.matmul %0, %1, %cst {dimension_numbers = #tpu.dot_dimension_numbers<[1], [0], [0], [1], [0, 0, 1, 1], [], []>} : vector<64x4xf32>, vector<4x512xf32>, vector<64x512xf32> -> vector<64x512xf32>
    %3 = math.cos %2 : vector<64x512xf32>
    %c0_3 = arith.constant 0 : index
    %c0_4 = arith.constant 0 : index
    %4 = vector.load %arg3[%c0_3, %c0_4] : memref<64x512xf32, #tpu.memory_space<vmem>>, vector<64x512xf32>
    tpu.vector_store %arg3[%c0_3, %c0_4], %3 {strides = array<i32>} : memref<64x512xf32, #tpu.memory_space<vmem>>, vector<64x512xf32>,
    return
  }
  func.func @transform_0(%arg0: i32) -> (i32, i32) {
    %c0_i32 = arith.constant 0 : i32
    %c0_i32_0 = arith.constant 0 : i32
    return %arg0, %c0_i32 : i32, i32
  }
  func.func @transform_1(%arg0: i32) -> (i32, i32) {
    %c0_i32 = arith.constant 0 : i32
    %c0_i32_0 = arith.constant 0 : i32
    %c0_i32_1 = arith.constant 0 : i32
    return %c0_i32, %c0_i32_0 : i32, i32
  }
  func.func @transform_2(%arg0: i32) -> (i32, i32) {
    %c0_i32 = arith.constant 0 : i32
    %c0_i32_0 = arith.constant 0 : i32
    return %arg0, %c0_i32 : i32, i32
  }
}

</mosaic_0001>

<llo_original>
// kernel: tpu_custom_call.1
$region0: #{tpu_custom_call.1}
  #allocation0 [shape = 'u32[]', space=smem, size = 0x4, offset = 0x4, fixed_abs, tag = 'smem constant byte address 0x4 - core index']
  #allocation1 [shape = 'u32[144,128]{1,0:T(1,128)}', space=vmem, size = 0x12000, scoped, tag = 'internal scratch']
  %s0 = inlined_call_operand.vmem [shape: f32[256,4], index: 0, kind: input, shape index: {}]
  %s1 = inlined_call_operand.vmem [shape: f32[4,512], index: 1, kind: input, shape index: {}]
  %s2 = inlined_call_operand.hbm [shape: f32[256,512], index: 2, kind: output, shape index: {}]
  %s3 = sld [smem:[#allocation0]]
  $region41: #{tpu_custom_call.1} parent=0
    _
  %s5 = ssub.s32 1, %s3
  %s6 = scalar_select 0, %s5, %s3
  $region1: #{tpu_custom_call.1} parent=0
    #allocation2 [shape = 'u8[262144]{0}', space=vmem, size = 0x40000, scoped, tag = 'output window, operand 0']
    #allocation3 [shape = 's32[2]{0}', space=sflag, size = 0x8, scoped, tag = 'scoped memory for tpu_custom_call.1']
    %7 = vsyncpa [#allocation3], 0
    %s8 = scalar_lea.sflag [#allocation3], 1
    %9 = vsyncpa %s8, 0
    loop: start=0, step=1, limit=6
    $region2: #{tpu_custom_call.1} parent=1 // loop_pre_header
      _
    $region3: #{tpu_custom_call.1} parent=1 // loop_header
      %s11 = sphi 0, %s15
      %p12 = scmp.ge.s32.totalorder %s11, 6
      %s21 = sphi 0, %s23
      %s24 = sphi 0, %s21
      %s25 = sphi 0, %s24
      %s41 = sphi 0, %s25
      %s45 = sphi 0, %s45
      %s47 = sphi 0, %s45
      %s48 = sphi 0, %s47
      %s62 = sphi 0, %s48
      %s68 = sphi 0, %s70
      %s71 = sphi 0, %s68
      %s72 = sphi 0, %s71
      %s88 = sphi 0, %s72
    $region4: #{tpu_custom_call.1} parent=1 // loop_header_branch
      %14 = sbr.rel (%p12) target = $region8
    $region5: #{tpu_custom_call.1} parent=1 // loop_body
      %s16 = ssub.s32 %s11, 1
      %s17 = ssub.s32 %s11, 2
      %s18 = sadd.s32 %s11, 1
      %s19 = ssub.s32 %s11, %s18
      %p20 = scmp.eq.s32.totalorder %s19, 0
      %s22 = sadd.s32 %s21, 1
      %s23 = scalar_select %p20, %s21, %s22
      %p26 = pneg %p20
      %p27 = scmp.eq.s32.totalorder %s11, 3
      %p28 = por %p26, %p27
      %p29 = scmp.ne.s32.totalorder %s21, %s24
      %p30 = scmp.eq.s32.totalorder %s11, 0
      %p31 = por %p29, %p30
      %p32 = scmp.ne.s32.totalorder %s21, %s24
      %p33 = scmp.eq.s32.totalorder %s16, 3
      %p34 = por %p32, %p33
      %p35 = scmp.ne.s32.totalorder %s24, %s25
      %p36 = scmp.eq.s32.totalorder %s16, 0
      %p37 = por %p35, %p36
      %p38 = scmp.ne.s32.totalorder %s24, %s25
      %p39 = scmp.eq.s32.totalorder %s17, 3
      %p40 = por %p38, %p39
      %p42 = scmp.ne.s32.totalorder %s25, %s41
      %p43 = scmp.eq.s32.totalorder %s17, 0
      %p44 = por %p42, %p43
      %s46 = sadd.s32 %s45, 1
      %p49 = scmp.eq.s32.totalorder %s11, 3
      %p50 = scmp.ne.s32.totalorder %s45, %s47
      %p51 = scmp.eq.s32.totalorder %s11, 0
      %p52 = por %p50, %p51
      %p53 = scmp.ne.s32.totalorder %s45, %s47
      %p54 = scmp.eq.s32.totalorder %s16, 3
      %p55 = por %p53, %p54
      %p56 = scmp.ne.s32.totalorder %s47, %s48
      %p57 = scmp.eq.s32.totalorder %s16, 0
      %p58 = por %p56, %p57
      %p59 = scmp.ne.s32.totalorder %s47, %s48
      %p60 = scmp.eq.s32.totalorder %s17, 3
      %p61 = por %p59, %p60
      %p63 = scmp.ne.s32.totalorder %s48, %s62
      %p64 = scmp.eq.s32.totalorder %s17, 0
      %p65 = por %p63, %p64
      %s66 = ssub.s32 %s11, %s18
      %p67 = scmp.eq.s32.totalorder %s66, 0
      %s69 = sadd.s32 %s68, 1
      %s70 = scalar_select %p67, %s68, %s69
      %p73 = pneg %p67
      %p74 = scmp.eq.s32.totalorder %s11, 3
      %p75 = por %p73, %p74
      %p76 = scmp.ne.s32.totalorder %s68, %s71
      %p77 = scmp.eq.s32.totalorder %s11, 0
      %p78 = por %p76, %p77
      %p79 = scmp.ne.s32.totalorder %s68, %s71
      %p80 = scmp.eq.s32.totalorder %s16, 3
      %p81 = por %p79, %p80
      %p82 = scmp.ne.s32.totalorder %s71, %s72
      %p83 = scmp.eq.s32.totalorder %s16, 0
      %p84 = por %p82, %p83
      %p85 = scmp.ne.s32.totalorder %s71, %s72
      %p86 = scmp.eq.s32.totalorder %s17, 3
      %p87 = por %p85, %p86
      %p89 = scmp.ne.s32.totalorder %s72, %s88
      %p90 = scmp.eq.s32.totalorder %s17, 0
      %p91 = por %p89, %p90
      %p92 = scmp.le.s32.totalorder 1, %s11
      %p93 = scmp.lt.s32.totalorder %s11, 5
      %p94 = pnand %p92, %p93
      %p95 = pneg %p94
      // Predicated region
      $region9: #{tpu_custom_call.1} parent=5 // pred_check
        _
      $region10: #{tpu_custom_call.1} parent=5 // pred_check_branch
        %97 = sbr.rel (%p94) target = $region12
      $region11: #{tpu_custom_call.1} parent=5 // pred_region
        %s98 = ssub.s32 %s11, 1
        // Predicated region
        $region13: #{tpu_custom_call.1} parent=11 // pred_check
          %p99 = pneg %p58
        $region14: #{tpu_custom_call.1} parent=11 // pred_check_branch
          %101 = sbr.rel (%p99) target = $region16
        $region15: #{tpu_custom_call.1} parent=11 // pred_region
          _
        $region16: #{tpu_custom_call.1} parent=11 // pred_fallthru
          _
      $region12: #{tpu_custom_call.1} parent=5 // pred_fallthru
        _
      %p102 = scmp.lt.s32.totalorder %s11, 4
      // Predicated region
      $region17: #{tpu_custom_call.1} parent=5 // pred_check
        %p103 = pneg %p102
      $region18: #{tpu_custom_call.1} parent=5 // pred_check_branch
        %105 = sbr.rel (%p103) target = $region20
      $region19: #{tpu_custom_call.1} parent=5 // pred_region
        // Predicated region
        $region21: #{tpu_custom_call.1} parent=19 // pred_check
          %p106 = pneg %p31
        $region22: #{tpu_custom_call.1} parent=19 // pred_check_branch
          %108 = sbr.rel (%p106) target = $region24
        $region23: #{tpu_custom_call.1} parent=19 // pred_region
          %s109 = smul.u32 8, %s11
          %p110 = scmp.lt.s32.totalorder %s109, 31
          %s111 = scalar_select %p110, %s109, 31
          %s112 = smul.addr %s111, 8
          %s113 = scalar_lea.vmem %s0, %s112
          %s114 = smul.u32 8, %s11
        $region24: #{tpu_custom_call.1} parent=19 // pred_fallthru
          _
      $region20: #{tpu_custom_call.1} parent=5 // pred_fallthru
        _
      %p115 = scmp.le.s32.totalorder 1, %s11
      %p116 = scmp.lt.s32.totalorder %s11, 5
      %p117 = pnand %p115, %p116
      %p118 = pneg %p117
      // Predicated region
      $region25: #{tpu_custom_call.1} parent=5 // pred_check
        _
      $region26: #{tpu_custom_call.1} parent=5 // pred_check_branch
        %120 = sbr.rel (%p117) target = $region28
      $region27: #{tpu_custom_call.1} parent=5 // pred_region
        %s121 = ssub.s32 %s11, 1
        %s122 = smul.u32 8, %s16
        %p123 = scmp.lt.s32.totalorder %s122, 31
        %s124 = scalar_select %p123, %s122, 31
        %s125 = smul.addr %s124, 8
        %s126 = scalar_lea.vmem %s0, %s125
        %p127 = pneg %p37
        %p128 = pneg %p34
        %p129 = pneg %p58
        %p130 = pneg %p55
        %p131 = pneg %p84
        %p132 = pneg %p81
        %s133 = sand.u32 %s71, 1
        %s134 = scalar_lea.sflag [#allocation3], %s133
        %s135 = sand.u32 %s71, 1
        %s136 = smul.addr %s135, 256
        %s137 = scalar_lea.vmem [#allocation2], %s136
        %s138 = smul.u32 8, %s16
        %p139 = scmp.lt.s32.totalorder %s138, 31
        %s140 = scalar_select %p139, %s138, 31
        %s141 = smul.addr %s140, 8
        %s142 = scalar_lea.vmem %s0, %s141
        %s143 = smul.u32 8, %s16
        %s144 = smul.u32 8, %s16
        %v145 = vld [vmem:[%s142] sm:$0xff]
        %v146 = vld [vmem:[%s142 + $0x8] sm:$0xff]
        %v147 = vld [vmem:[%s142 + $0x10] sm:$0xff]
        %v148 = vld [vmem:[%s142 + $0x18] sm:$0xff]
        %v149 = vld [vmem:[%s142 + $0x20] sm:$0xff]
        %v150 = vld [vmem:[%s142 + $0x28] sm:$0xff]
        %v151 = vld [vmem:[%s142 + $0x30] sm:$0xff]
        %v152 = vld [vmem:[%s142 + $0x38] sm:$0xff]
        %v153 = vld [vmem:[%s1] sm:$0xff]
        %v154 = vld [vmem:[%s1 + $0x8] sm:$0xff]
        %v157 = vcombine.high %v153, %v153
        %v158 = vcombine.high %v154, %v154
        %vm159 = vcmask 31744
        %v161 = vsel %vm159, %v145, 0
        %v164 = vsel %vm159, %v146, 0
        %v167 = vsel %vm159, %v147, 0
        %v170 = vsel %vm159, %v148, 0
        %v173 = vsel %vm159, %v149, 0
        %v176 = vsel %vm159, %v150, 0
        %v179 = vsel %vm159, %v151, 0
        %v182 = vsel %vm159, %v152, 0
        %vm184 = vcmask 1043456
        %v185 = vsel %vm184, %v153, 0
        %v187 = vsel %vm184, %v157, 0
        %v189 = vsel %vm184, %v154, 0
        %v191 = vsel %vm184, %v158, 0
        %193 = vmatprep.subr.mxu0 0.0
        %194 = vmatpush1.msra.mxu0 0.0
        %195 = vmatprep.subr.mxu0 0.0
        %196 = vmatpush1.msra.mxu0 0.0
        %197 = vmatprep.subr.mxu0 0.0
        %198 = vmatpush1.msra.mxu0 0.0
        %199 = vmatprep.subr.mxu0 0.0
        %200 = vmatpush1.msra.mxu0 0.0
        %201 = vmatprep.subr.mxu0 0.0
        %202 = vmatpush1.msra.mxu0 0.0
        %203 = vmatprep.subr.mxu0 0.0
        %204 = vmatpush1.msra.mxu0 0.0
        %205 = vmatprep.subr.mxu0 0.0
        %206 = vmatpush1.msra.mxu0 0.0
        %207 = vmatprep.subr.mxu0 0.0
        %208 = vmatpush1.msra.mxu0 0.0
        %209 = vmatprep.subr.mxu0 0.0
        %210 = vmatpush1.msra.mxu0 0.0
        %211 = vmatprep.subr.mxu0 0.0
        %212 = vmatpush1.msra.mxu0 0.0
        %213 = vmatprep.subr.mxu0 0.0
        %214 = vmatpush1.msra.mxu0 0.0
        %215 = vmatprep.subr.mxu0 0.0
        %216 = vmatpush1.msra.mxu0 0.0
        %217 = vmatprep.subr.mxu0 0.0
        %218 = vmatpush1.msra.mxu0 0.0
        %219 = vmatprep.subr.mxu0 0.0
        %220 = vmatpush1.msra.mxu0 0.0
        %221 = vmatprep.subr.mxu0 0.0
        %222 = vmatpush1.msra.mxu0 0.0
        %223 = vmatprep.subr.mxu0 %v187
        %224 = vmatpush1.msra.mxu0 %v185
        %225 = vmatprep.subr.mxu0 0.0
        %226 = vmatpush2.msra.mxu0 0.0
        %227 = vmatprep.subr.mxu0 0.0
        %228 = vmatpush2.msra.mxu0 0.0
        %229 = vmatprep.subr.mxu0 0.0
        %230 = vmatpush2.msra.mxu0 0.0
        %231 = vmatprep.subr.mxu0 0.0
        %232 = vmatpush2.msra.mxu0 0.0
        %233 = vmatprep.subr.mxu0 0.0
        %234 = vmatpush2.msra.mxu0 0.0
        %235 = vmatprep.subr.mxu0 0.0
        %236 = vmatpush2.msra.mxu0 0.0
        %237 = vmatprep.subr.mxu0 0.0
        %238 = vmatpush2.msra.mxu0 0.0
        %239 = vmatprep.subr.mxu0 0.0
        %240 = vmatpush2.msra.mxu0 0.0
        %241 = vmatprep.subr.mxu0 0.0
        %242 = vmatpush2.msra.mxu0 0.0
        %243 = vmatprep.subr.mxu0 0.0
        %244 = vmatpush2.msra.mxu0 0.0
        %245 = vmatprep.subr.mxu0 0.0
        %246 = vmatpush2.msra.mxu0 0.0
        %247 = vmatprep.subr.mxu0 0.0
        %248 = vmatpush2.msra.mxu0 0.0
        %249 = vmatprep.subr.mxu0 0.0
        %250 = vmatpush2.msra.mxu0 0.0
        %251 = vmatprep.subr.mxu0 0.0
        %252 = vmatpush2.msra.mxu0 0.0
        %253 = vmatprep.subr.mxu0 0.0
        %254 = vmatpush2.msra.mxu0 0.0
        %255 = vmatprep.subr.mxu0 0.0
        %256 = vmatpush2.msra.mxu0 0.0
        %257 = vmatprep.mubr.f32.mxu0 0.0
        %258 = vmatmul.mubr.f32.gmra.mxu0 %v161
        %v259 = vpop.f32.mrf.mxu0
        %v260 = vadd.f32 0.0, %v259
        %v261 = vpop.f32.mrf.mxu0
        %v262 = vadd.f32 0.0, %v261
        %263 = vmatprep.mubr.f32.mxu0 0.0
        %264 = vmatmul.mubr.f32.gmra.mxu0 %v164
        %v265 = vpop.f32.mrf.mxu0
        %v266 = vadd.f32 0.0, %v265
        %v267 = vpop.f32.mrf.mxu0
        %v268 = vadd.f32 0.0, %v267
        %269 = vmatprep.mubr.f32.mxu0 0.0
        %270 = vmatmul.mubr.f32.gmra.mxu0 %v167
        %v271 = vpop.f32.mrf.mxu0
        %v272 = vadd.f32 0.0, %v271
        %v273 = vpop.f32.mrf.mxu0
        %v274 = vadd.f32 0.0, %v273
        %275 = vmatprep.mubr.f32.mxu0 0.0
        %276 = vmatmul.mubr.f32.gmra.mxu0 %v170
        %v277 = vpop.f32.mrf.mxu0
        %v278 = vadd.f32 0.0, %v277
        %v279 = vpop.f32.mrf.mxu0
        %v280 = vadd.f32 0.0, %v279
        %281 = vmatprep.mubr.f32.mxu0 0.0
        %282 = vmatmul.mubr.f32.gmra.mxu0 %v173
        %v283 = vpop.f32.mrf.mxu0
        %v284 = vadd.f32 0.0, %v283
        %v285 = vpop.f32.mrf.mxu0
        %v286 = vadd.f32 0.0, %v285
        %287 = vmatprep.mubr.f32.mxu0 0.0
        %288 = vmatmul.mubr.f32.gmra.mxu0 %v176
        %v289 = vpop.f32.mrf.mxu0
        %v290 = vadd.f32 0.0, %v289
        %v291 = vpop.f32.mrf.mxu0
        %v292 = vadd.f32 0.0, %v291
        %293 = vmatprep.mubr.f32.mxu0 0.0
        %294 = vmatmul.mubr.f32.gmra.mxu0 %v179
        %v295 = vpop.f32.mrf.mxu0
        %v296 = vadd.f32 0.0, %v295
        %v297 = vpop.f32.mrf.mxu0
        %v298 = vadd.f32 0.0, %v297
        %299 = vmatprep.mubr.f32.mxu0 0.0
        %300 = vmatmul.mubr.f32.gmra.mxu0 %v182
        %v301 = vpop.f32.mrf.mxu0
        %v302 = vadd.f32 0.0, %v301
        %v303 = vpop.f32.mrf.mxu0
        %v304 = vadd.f32 0.0, %v303
        %305 = vdwg.mxu0
        %306 = vmatprep.subr.mxu0 0.0
        %307 = vmatpush1.msra.mxu0 0.0
        %308 = vmatprep.subr.mxu0 0.0
        %309 = vmatpush1.msra.mxu0 0.0
        %310 = vmatprep.subr.mxu0 0.0
        %311 = vmatpush1.msra.mxu0 0.0
        %312 = vmatprep.subr.mxu0 0.0
        %313 = vmatpush1.msra.mxu0 0.0
        %314 = vmatprep.subr.mxu0 0.0
        %315 = vmatpush1.msra.mxu0 0.0
        %316 = vmatprep.subr.mxu0 0.0
        %317 = vmatpush1.msra.mxu0 0.0
        %318 = vmatprep.subr.mxu0 0.0
        %319 = vmatpush1.msra.mxu0 0.0
        %320 = vmatprep.subr.mxu0 0.0
        %321 = vmatpush1.msra.mxu0 0.0
        %322 = vmatprep.subr.mxu0 0.0
        %323 = vmatpush1.msra.mxu0 0.0
        %324 = vmatprep.subr.mxu0 0.0
        %325 = vmatpush1.msra.mxu0 0.0
        %326 = vmatprep.subr.mxu0 0.0
        %327 = vmatpush1.msra.mxu0 0.0
        %328 = vmatprep.subr.mxu0 0.0
        %329 = vmatpush1.msra.mxu0 0.0
        %330 = vmatprep.subr.mxu0 0.0
        %331 = vmatpush1.msra.mxu0 0.0
        %332 = vmatprep.subr.mxu0 0.0
        %333 = vmatpush1.msra.mxu0 0.0
        %334 = vmatprep.subr.mxu0 0.0
        %335 = vmatpush1.msra.mxu0 0.0
        %336 = vmatprep.subr.mxu0 %v191
        %337 = vmatpush1.msra.mxu0 %v189
        %338 = vmatprep.subr.mxu0 0.0
        %339 = vmatpush2.msra.mxu0 0.0
        %340 = vmatprep.subr.mxu0 0.0
        %341 = vmatpush2.msra.mxu0 0.0
        %342 = vmatprep.subr.mxu0 0.0
        %343 = vmatpush2.msra.mxu0 0.0
        %344 = vmatprep.subr.mxu0 0.0
        %345 = vmatpush2.msra.mxu0 0.0
        %346 = vmatprep.subr.mxu0 0.0
        %347 = vmatpush2.msra.mxu0 0.0
        %348 = vmatprep.subr.mxu0 0.0
        %349 = vmatpush2.msra.mxu0 0.0
        %350 = vmatprep.subr.mxu0 0.0
        %351 = vmatpush2.msra.mxu0 0.0
        %352 = vmatprep.subr.mxu0 0.0
        %353 = vmatpush2.msra.mxu0 0.0
        %354 = vmatprep.subr.mxu0 0.0
        %355 = vmatpush2.msra.mxu0 0.0
        %356 = vmatprep.subr.mxu0 0.0
        %357 = vmatpush2.msra.mxu0 0.0
        %358 = vmatprep.subr.mxu0 0.0
        %359 = vmatpush2.msra.mxu0 0.0
        %360 = vmatprep.subr.mxu0 0.0
        %361 = vmatpush2.msra.mxu0 0.0
        %362 = vmatprep.subr.mxu0 0.0
        %363 = vmatpush2.msra.mxu0 0.0
        %364 = vmatprep.subr.mxu0 0.0
        %365 = vmatpush2.msra.mxu0 0.0
        %366 = vmatprep.subr.mxu0 0.0
        %367 = vmatpush2.msra.mxu0 0.0
        %368 = vmatprep.subr.mxu0 0.0
        %369 = vmatpush2.msra.mxu0 0.0
        %370 = vmatprep.mubr.f32.mxu0 0.0
        %371 = vmatmul.mubr.f32.gmra.mxu0 %v161
        %v372 = vpop.f32.mrf.mxu0
        %v373 = vadd.f32 0.0, %v372
        %v374 = vpop.f32.mrf.mxu0
        %v375 = vadd.f32 0.0, %v374
        %376 = vmatprep.mubr.f32.mxu0 0.0
        %377 = vmatmul.mubr.f32.gmra.mxu0 %v164
        %v378 = vpop.f32.mrf.mxu0
        %v379 = vadd.f32 0.0, %v378
        %v380 = vpop.f32.mrf.mxu0
        %v381 = vadd.f32 0.0, %v380
        %382 = vmatprep.mubr.f32.mxu0 0.0
        %383 = vmatmul.mubr.f32.gmra.mxu0 %v167
        %v384 = vpop.f32.mrf.mxu0
        %v385 = vadd.f32 0.0, %v384
        %v386 = vpop.f32.mrf.mxu0
        %v387 = vadd.f32 0.0, %v386
        %388 = vmatprep.mubr.f32.mxu0 0.0
        %389 = vmatmul.mubr.f32.gmra.mxu0 %v170
        %v390 = vpop.f32.mrf.mxu0
        %v391 = vadd.f32 0.0, %v390
        %v392 = vpop.f32.mrf.mxu0
        %v393 = vadd.f32 0.0, %v392
        %394 = vmatprep.mubr.f32.mxu0 0.0
        %395 = vmatmul.mubr.f32.gmra.mxu0 %v173
        %v396 = vpop.f32.mrf.mxu0
        %v397 = vadd.f32 0.0, %v396
        %v398 = vpop.f32.mrf.mxu0
        %v399 = vadd.f32 0.0, %v398
        %400 = vmatprep.mubr.f32.mxu0 0.0
        %401 = vmatmul.mubr.f32.gmra.mxu0 %v176
        %v402 = vpop.f32.mrf.mxu0
        %v403 = vadd.f32 0.0, %v402
        %v404 = vpop.f32.mrf.mxu0
        %v405 = vadd.f32 0.0, %v404
        %406 = vmatprep.mubr.f32.mxu0 0.0
        %407 = vmatmul.mubr.f32.gmra.mxu0 %v179
        %v408 = vpop.f32.mrf.mxu0
        %v409 = vadd.f32 0.0, %v408
        %v410 = vpop.f32.mrf.mxu0
        %v411 = vadd.f32 0.0, %v410
        %412 = vmatprep.mubr.f32.mxu0 0.0
        %413 = vmatmul.mubr.f32.gmra.mxu0 %v182
        %v414 = vpop.f32.mrf.mxu0
        %v415 = vadd.f32 0.0, %v414
        %v416 = vpop.f32.mrf.mxu0
        %v417 = vadd.f32 0.0, %v416
        %418 = vdwg.mxu0
        %v419 = vand.u32 2147483647, %v260
        %vm420 = vcmp.le.f32.partialorder %v419, 0.7853982
        %vm421 = vcmp.lt.s32.totalorder %v260, 0
        %v422 = vand.u32 %v260, 2139095040
        %v423 = vshrl.u32 %v422, 23
        %v424 = vsub.s32 %v423, 127
        %v425 = vand.u32 2147483647, %v260
        %v426 = vand.u32 %v425, 8388607
        %v427 = vor.u32 %v426, 8388608
        %v428 = vsub.s32 0, %v427
        %v429 = vadd.s32 %v424, 1
        %vm430 = vcmp.gt.s32.totalorder %v429, 0
        %v431 = vsel %vm430, %v429, 0
        %v432 = vshrl.u32 %v431, 5
        %v433 = vand.u32 %v431, 31
        %v434 = vsub.s32 32, %v433
        %v435 = vshrl.u32 683565275, %v434
        %v436 = vshll.u32 683565275, %v433
        %v437 = vshrl.u32 2475754826, %v434
        %v438 = vor.u32 %v436, %v437
        %v439 = vshll.u32 2475754826, %v433
        %v440 = vshrl.u32 2131351028, %v434
        %v441 = vor.u32 %v439, %v440
        %v442 = vshll.u32 2131351028, %v433
        %v443 = vshrl.u32 2102212464, %v434
        %v444 = vor.u32 %v442, %v443
        %v445 = vshll.u32 2102212464, %v433
        %v446 = vshrl.u32 920167782, %v434
        %v447 = vor.u32 %v445, %v446
        %v448 = vshll.u32 920167782, %v433
        %v449 = vshrl.u32 1326507024, %v434
        %v450 = vor.u32 %v448, %v449
        %vm451 = vcmp.lt.s32.totalorder %v432, 1
        %vm452 = vcmp.lt.s32.totalorder %v432, 2
        %vm453 = vcmp.lt.s32.totalorder %v432, 3
        %vm454 = vcmp.lt.s32.totalorder %v432, 4
        %v455 = vsel %vm451, %v435, %v438
        %v456 = vsel %vm454, %v444, 2102212464
        %v457 = vsel %vm453, %v441, %v456
        %v458 = vsel %vm452, %v455, %v457
        %v459 = vsel %vm451, %v438, %v441
        %v460 = vsel %vm454, %v447, 920167782
        %v461 = vsel %vm453, %v444, %v460
        %v462 = vsel %vm452, %v459, %v461
        %v463 = vsel %vm451, %v441, %v444
        %v464 = vsel %vm454, %v450, 1326507024
        %v465 = vsel %vm453, %v447, %v464
        %v466 = vsel %vm452, %v463, %v465
        %v467 = vshll.u32 %v427, 8
        %v468 = vmul.u32.u64.compose %v467, %v466
        %v469 = vextract.low.u32 %v468
        %v470 = vextract.high.u32 %v468
        %v471 = vmul.u32.u64.compose %v467, %v462
        %v472 = vextract.low.u32 %v471
        %v473 = vextract.high.u32 %v471
        %v474 = vmul.u32 %v467, %v458
        %v475 = vadd.s32 %v470, %v472
        %vm476 = vc.u32 %v470, %v472
        %v477 = vadd.s32 %v473, 1
        %v478 = vsel %vm476, %v477, %v473
        %v479 = vadd.s32 %v474, %v478
        %v480 = vadd.s32 %v479, 536870912
        %v481 = vshrl.u32 %v480, 30
        %v482 = vshll.u32 %v481, 30
        %v483 = vsub.s32 %v479, %v482
        %vm484 = vcmp.lt.s32.totalorder %v483, 0
        %v485 = vsub.s32 0, %v483
        %v486 = vsel %vm484, %v485, %v483
        %v487 = vclz %v486
        %v488 = vsub.s32 %v487, 2
        %vm489 = vcmp.gt.s32.totalorder 0, %v488
        %v490 = vsel %vm489, 0, %v488
        %v491 = vsub.s32 32, %v490
        %v492 = vshll.u32 %v483, %v490
        %v493 = vshrl.u32 %v475, %v491
        %v494 = vor.u32 %v492, %v493
        %v495 = vsub.s32 4294967266, %v490
        %v496 = vadd.s32 %v495, 127
        %v497 = vshll.u32 %v496, 23
        %v498 = vor.u32 4788187, %v497
        %v499 = vand.u32 2147483647, %v498
        %v501 = vcvt.s32.f32 %v494
        %v502 = vmul.f32 %v501, %v499
        %v503 = vxor.u32 %v502, 2147483648
        %v504 = vsel %vm421, %v503, %v502
        %v505 = vsub.s32 4, %v481
        %v506 = vsel %vm421, %v505, %v481
        %v507 = vsel %vm420, %v260, %v504
        %v508 = vsel %vm420, 0, %v506
        %v509 = vcosq.f32.pop %v507
        %v510 = vsinq.f32.pop %v507
        %vm511 = vweird.f32 %v260
        %v512 = vand.u32 %v508, 3
        %vm513 = vcmp.lt.s32.totalorder %v512, 2
        %vm514 = vcmp.eq.s32.totalorder %v512, 0
        %v515 = vxor.u32 %v510, 2147483648
        %v516 = vsel %vm514, %v509, %v515
        %vm517 = vcmp.eq.s32.totalorder %v512, 2
        %v518 = vxor.u32 %v509, 2147483648
        %v519 = vsel %vm517, %v518, %v510
        %v520 = vsel %vm513, %v516, %v519
        %v521 = vsel %vm511, nan, %v520
        %v522 = vand.u32 2147483647, %v262
        %vm523 = vcmp.le.f32.partialorder %v522, 0.7853982
        %vm524 = vcmp.lt.s32.totalorder %v262, 0
        %v525 = vand.u32 %v262, 2139095040
        %v526 = vshrl.u32 %v525, 23
        %v527 = vsub.s32 %v526, 127
        %v528 = vand.u32 2147483647, %v262
        %v529 = vand.u32 %v528, 8388607
        %v530 = vor.u32 %v529, 8388608
        %v531 = vsub.s32 0, %v530
        %v532 = vadd.s32 %v527, 1
        %vm533 = vcmp.gt.s32.totalorder %v532, 0
        %v534 = vsel %vm533, %v532, 0
        %v535 = vshrl.u32 %v534, 5
        %v536 = vand.u32 %v534, 31
        %v537 = vsub.s32 32, %v536
        %v538 = vshrl.u32 683565275, %v537
        %v539 = vshll.u32 683565275, %v536
        %v540 = vshrl.u32 2475754826, %v537
        %v541 = vor.u32 %v539, %v540
        %v542 = vshll.u32 2475754826, %v536
        %v543 = vshrl.u32 2131351028, %v537
        %v544 = vor.u32 %v542, %v543
        %v545 = vshll.u32 2131351028, %v536
        %v546 = vshrl.u32 2102212464, %v537
        %v547 = vor.u32 %v545, %v546
        %v548 = vshll.u32 2102212464, %v536
        %v549 = vshrl.u32 920167782, %v537
        %v550 = vor.u32 %v548, %v549
        %v551 = vshll.u32 920167782, %v536
        %v552 = vshrl.u32 1326507024, %v537
        %v553 = vor.u32 %v551, %v552
        %vm554 = vcmp.lt.s32.totalorder %v535, 1
        %vm555 = vcmp.lt.s32.totalorder %v535, 2
        %vm556 = vcmp.lt.s32.totalorder %v535, 3
        %vm557 = vcmp.lt.s32.totalorder %v535, 4
        %v558 = vsel %vm554, %v538, %v541
        %v559 = vsel %vm557, %v547, 2102212464
        %v560 = vsel %vm556, %v544, %v559
        %v561 = vsel %vm555, %v558, %v560
        %v562 = vsel %vm554, %v541, %v544
        %v563 = vsel %vm557, %v550, 920167782
        %v564 = vsel %vm556, %v547, %v563
        %v565 = vsel %vm555, %v562, %v564
        %v566 = vsel %vm554, %v544, %v547
        %v567 = vsel %vm557, %v553, 1326507024
        %v568 = vsel %vm556, %v550, %v567
        %v569 = vsel %vm555, %v566, %v568
        %v570 = vshll.u32 %v530, 8
        %v571 = vmul.u32.u64.compose %v570, %v569
        %v572 = vextract.low.u32 %v571
        %v573 = vextract.high.u32 %v571
        %v574 = vmul.u32.u64.compose %v570, %v565
        %v575 = vextract.low.u32 %v574
        %v576 = vextract.high.u32 %v574
        %v577 = vmul.u32 %v570, %v561
        %v578 = vadd.s32 %v573, %v575
        %vm579 = vc.u32 %v573, %v575
        %v580 = vadd.s32 %v576, 1
        %v581 = vsel %vm579, %v580, %v576
        %v582 = vadd.s32 %v577, %v581
        %v583 = vadd.s32 %v582, 536870912
        %v584 = vshrl.u32 %v583, 30
        %v585 = vshll.u32 %v584, 30
        %v586 = vsub.s32 %v582, %v585
        %vm587 = vcmp.lt.s32.totalorder %v586, 0
        %v588 = vsub.s32 0, %v586
        %v589 = vsel %vm587, %v588, %v586
        %v590 = vclz %v589
        %v591 = vsub.s32 %v590, 2
        %vm592 = vcmp.gt.s32.totalorder 0, %v591
        %v593 = vsel %vm592, 0, %v591
        %v594 = vsub.s32 32, %v593
        %v595 = vshll.u32 %v586, %v593
        %v596 = vshrl.u32 %v578, %v594
        %v597 = vor.u32 %v595, %v596
        %v598 = vsub.s32 4294967266, %v593
        %v599 = vadd.s32 %v598, 127
        %v600 = vshll.u32 %v599, 23
        %v601 = vor.u32 4788187, %v600
        %v602 = vand.u32 2147483647, %v601
        %v604 = vcvt.s32.f32 %v597
        %v605 = vmul.f32 %v604, %v602
        %v606 = vxor.u32 %v605, 2147483648
        %v607 = vsel %vm524, %v606, %v605
        %v608 = vsub.s32 4, %v584
        %v609 = vsel %vm524, %v608, %v584
        %v610 = vsel %vm523, %v262, %v607
        %v611 = vsel %vm523, 0, %v609
        %v612 = vcosq.f32.pop %v610
        %v613 = vsinq.f32.pop %v610
        %vm614 = vweird.f32 %v262
        %v615 = vand.u32 %v611, 3
        %vm616 = vcmp.lt.s32.totalorder %v615, 2
        %vm617 = vcmp.eq.s32.totalorder %v615, 0
        %v618 = vxor.u32 %v613, 2147483648
        %v619 = vsel %vm617, %v612, %v618
        %vm620 = vcmp.eq.s32.totalorder %v615, 2
        %v621 = vxor.u32 %v612, 2147483648
        %v622 = vsel %vm620, %v621, %v613
        %v623 = vsel %vm616, %v619, %v622
        %v624 = vsel %vm614, nan, %v623
        %v625 = vand.u32 2147483647, %v373
        %vm626 = vcmp.le.f32.partialorder %v625, 0.7853982
        %vm627 = vcmp.lt.s32.totalorder %v373, 0
        %v628 = vand.u32 %v373, 2139095040
        %v629 = vshrl.u32 %v628, 23
        %v630 = vsub.s32 %v629, 127
        %v631 = vand.u32 2147483647, %v373
        %v632 = vand.u32 %v631, 8388607
        %v633 = vor.u32 %v632, 8388608
        %v634 = vsub.s32 0, %v633
        %v635 = vadd.s32 %v630, 1
        %vm636 = vcmp.gt.s32.totalorder %v635, 0
        %v637 = vsel %vm636, %v635, 0
        %v638 = vshrl.u32 %v637, 5
        %v639 = vand.u32 %v637, 31
        %v640 = vsub.s32 32, %v639
        %v641 = vshrl.u32 683565275, %v640
        %v642 = vshll.u32 683565275, %v639
        %v643 = vshrl.u32 2475754826, %v640
        %v644 = vor.u32 %v642, %v643
        %v645 = vshll.u32 2475754826, %v639
        %v646 = vshrl.u32 2131351028, %v640
        %v647 = vor.u32 %v645, %v646
        %v648 = vshll.u32 2131351028, %v639
        %v649 = vshrl.u32 2102212464, %v640
        %v650 = vor.u32 %v648, %v649
        %v651 = vshll.u32 2102212464, %v639
        %v652 = vshrl.u32 920167782, %v640
        %v653 = vor.u32 %v651, %v652
        %v654 = vshll.u32 920167782, %v639
        %v655 = vshrl.u32 1326507024, %v640
        %v656 = vor.u32 %v654, %v655
        %vm657 = vcmp.lt.s32.totalorder %v638, 1
        %vm658 = vcmp.lt.s32.totalorder %v638, 2
        %vm659 = vcmp.lt.s32.totalorder %v638, 3
        %vm660 = vcmp.lt.s32.totalorder %v638, 4
        %v661 = vsel %vm657, %v641, %v644
        %v662 = vsel %vm660, %v650, 2102212464
        %v663 = vsel %vm659, %v647, %v662
        %v664 = vsel %vm658, %v661, %v663
        %v665 = vsel %vm657, %v644, %v647
        %v666 = vsel %vm660, %v653, 920167782
        %v667 = vsel %vm659, %v650, %v666
        %v668 = vsel %vm658, %v665, %v667
        %v669 = vsel %vm657, %v647, %v650
        %v670 = vsel %vm660, %v656, 1326507024
        %v671 = vsel %vm659, %v653, %v670
        %v672 = vsel %vm658, %v669, %v671
        %v673 = vshll.u32 %v633, 8
        %v674 = vmul.u32.u64.compose %v673, %v672
        %v675 = vextract.low.u32 %v674
        %v676 = vextract.high.u32 %v674
        %v677 = vmul.u32.u64.compose %v673, %v668
        %v678 = vextract.low.u32 %v677
        %v679 = vextract.high.u32 %v677
        %v680 = vmul.u32 %v673, %v664
        %v681 = vadd.s32 %v676, %v678
        %vm682 = vc.u32 %v676, %v678
        %v683 = vadd.s32 %v679, 1
        %v684 = vsel %vm682, %v683, %v679
        %v685 = vadd.s32 %v680, %v684
        %v686 = vadd.s32 %v685, 536870912
        %v687 = vshrl.u32 %v686, 30
        %v688 = vshll.u32 %v687, 30
        %v689 = vsub.s32 %v685, %v688
        %vm690 = vcmp.lt.s32.totalorder %v689, 0
        %v691 = vsub.s32 0, %v689
        %v692 = vsel %vm690, %v691, %v689
        %v693 = vclz %v692
        %v694 = vsub.s32 %v693, 2
        %vm695 = vcmp.gt.s32.totalorder 0, %v694
        %v696 = vsel %vm695, 0, %v694
        %v697 = vsub.s32 32, %v696
        %v698 = vshll.u32 %v689, %v696
        %v699 = vshrl.u32 %v681, %v697
        %v700 = vor.u32 %v698, %v699
        %v701 = vsub.s32 4294967266, %v696
        %v702 = vadd.s32 %v701, 127
        %v703 = vshll.u32 %v702, 23
        %v704 = vor.u32 4788187, %v703
        %v705 = vand.u32 2147483647, %v704
        %v707 = vcvt.s32.f32 %v700
        %v708 = vmul.f32 %v707, %v705
        %v709 = vxor.u32 %v708, 2147483648
        %v710 = vsel %vm627, %v709, %v708
        %v711 = vsub.s32 4, %v687
        %v712 = vsel %vm627, %v711, %v687
        %v713 = vsel %vm626, %v373, %v710
        %v714 = vsel %vm626, 0, %v712
        %v715 = vcosq.f32.pop %v713
        %v716 = vsinq.f32.pop %v713
        %vm717 = vweird.f32 %v373
        %v718 = vand.u32 %v714, 3
        %vm719 = vcmp.lt.s32.totalorder %v718, 2
        %vm720 = vcmp.eq.s32.totalorder %v718, 0
        %v721 = vxor.u32 %v716, 2147483648
        %v722 = vsel %vm720, %v715, %v721
        %vm723 = vcmp.eq.s32.totalorder %v718, 2
        %v724 = vxor.u32 %v715, 2147483648
        %v725 = vsel %vm723, %v724, %v716
        %v726 = vsel %vm719, %v722, %v725
        %v727 = vsel %vm717, nan, %v726
        %v728 = vand.u32 2147483647, %v375
        %vm729 = vcmp.le.f32.partialorder %v728, 0.7853982
        %vm730 = vcmp.lt.s32.totalorder %v375, 0
        %v731 = vand.u32 %v375, 2139095040
        %v732 = vshrl.u32 %v731, 23
        %v733 = vsub.s32 %v732, 127
        %v734 = vand.u32 2147483647, %v375
        %v735 = vand.u32 %v734, 8388607
        %v736 = vor.u32 %v735, 8388608
        %v737 = vsub.s32 0, %v736
        %v738 = vadd.s32 %v733, 1
        %vm739 = vcmp.gt.s32.totalorder %v738, 0
        %v740 = vsel %vm739, %v738, 0
        %v741 = vshrl.u32 %v740, 5
        %v742 = vand.u32 %v740, 31
        %v743 = vsub.s32 32, %v742
        %v744 = vshrl.u32 683565275, %v743
        %v745 = vshll.u32 683565275, %v742
        %v746 = vshrl.u32 2475754826, %v743
        %v747 = vor.u32 %v745, %v746
        %v748 = vshll.u32 2475754826, %v742
        %v749 = vshrl.u32 2131351028, %v743
        %v750 = vor.u32 %v748, %v749
        %v751 = vshll.u32 2131351028, %v742
        %v752 = vshrl.u32 2102212464, %v743
        %v753 = vor.u32 %v751, %v752
        %v754 = vshll.u32 2102212464, %v742
        %v755 = vshrl.u32 920167782, %v743
        %v756 = vor.u32 %v754, %v755
        %v757 = vshll.u32 920167782, %v742
        %v758 = vshrl.u32 1326507024, %v743
        %v759 = vor.u32 %v757, %v758
        %vm760 = vcmp.lt.s32.totalorder %v741, 1
        %vm761 = vcmp.lt.s32.totalorder %v741, 2
        %vm762 = vcmp.lt.s32.totalorder %v741, 3
        %vm763 = vcmp.lt.s32.totalorder %v741, 4
        %v764 = vsel %vm760, %v744, %v747
        %v765 = vsel %vm763, %v753, 2102212464
        %v766 = vsel %vm762, %v750, %v765
        %v767 = vsel %vm761, %v764, %v766
        %v768 = vsel %vm760, %v747, %v750
        %v769 = vsel %vm763, %v756, 920167782
        %v770 = vsel %vm762, %v753, %v769
        %v771 = vsel %vm761, %v768, %v770
        %v772 = vsel %vm760, %v750, %v753
        %v773 = vsel %vm763, %v759, 1326507024
        %v774 = vsel %vm762, %v756, %v773
        %v775 = vsel %vm761, %v772, %v774
        %v776 = vshll.u32 %v736, 8
        %v777 = vmul.u32.u64.compose %v776, %v775
        %v778 = vextract.low.u32 %v777
        %v779 = vextract.high.u32 %v777
        %v780 = vmul.u32.u64.compose %v776, %v771
        %v781 = vextract.low.u32 %v780
        %v782 = vextract.high.u32 %v780
        %v783 = vmul.u32 %v776, %v767
        %v784 = vadd.s32 %v779, %v781
        %vm785 = vc.u32 %v779, %v781
        %v786 = vadd.s32 %v782, 1
        %v787 = vsel %vm785, %v786, %v782
        %v788 = vadd.s32 %v783, %v787
        %v789 = vadd.s32 %v788, 536870912
        %v790 = vshrl.u32 %v789, 30
        %v791 = vshll.u32 %v790, 30
        %v792 = vsub.s32 %v788, %v791
        %vm793 = vcmp.lt.s32.totalorder %v792, 0
        %v794 = vsub.s32 0, %v792
        %v795 = vsel %vm793, %v794, %v792
        %v796 = vclz %v795
        %v797 = vsub.s32 %v796, 2
        %vm798 = vcmp.gt.s32.totalorder 0, %v797
        %v799 = vsel %vm798, 0, %v797
        %v800 = vsub.s32 32, %v799
        %v801 = vshll.u32 %v792, %v799
        %v802 = vshrl.u32 %v784, %v800
        %v803 = vor.u32 %v801, %v802
        %v804 = vsub.s32 4294967266, %v799
        %v805 = vadd.s32 %v804, 127
        %v806 = vshll.u32 %v805, 23
        %v807 = vor.u32 4788187, %v806
        %v808 = vand.u32 2147483647, %v807
        %v810 = vcvt.s32.f32 %v803
        %v811 = vmul.f32 %v810, %v808
        %v812 = vxor.u32 %v811, 2147483648
        %v813 = vsel %vm730, %v812, %v811
        %v814 = vsub.s32 4, %v790
        %v815 = vsel %vm730, %v814, %v790
        %v816 = vsel %vm729, %v375, %v813
        %v817 = vsel %vm729, 0, %v815
        %v818 = vcosq.f32.pop %v816
        %v819 = vsinq.f32.pop %v816
        %vm820 = vweird.f32 %v375
        %v821 = vand.u32 %v817, 3
        %vm822 = vcmp.lt.s32.totalorder %v821, 2
        %vm823 = vcmp.eq.s32.totalorder %v821, 0
        %v824 = vxor.u32 %v819, 2147483648
        %v825 = vsel %vm823, %v818, %v824
        %vm826 = vcmp.eq.s32.totalorder %v821, 2
        %v827 = vxor.u32 %v818, 2147483648
        %v828 = vsel %vm826, %v827, %v819
        %v829 = vsel %vm822, %v825, %v828
        %v830 = vsel %vm820, nan, %v829
        %v831 = vand.u32 2147483647, %v266
        %vm832 = vcmp.le.f32.partialorder %v831, 0.7853982
        %vm833 = vcmp.lt.s32.totalorder %v266, 0
        %v834 = vand.u32 %v266, 2139095040
        %v835 = vshrl.u32 %v834, 23
        %v836 = vsub.s32 %v835, 127
        %v837 = vand.u32 2147483647, %v266
        %v838 = vand.u32 %v837, 8388607
        %v839 = vor.u32 %v838, 8388608
        %v840 = vsub.s32 0, %v839
        %v841 = vadd.s32 %v836, 1
        %vm842 = vcmp.gt.s32.totalorder %v841, 0
        %v843 = vsel %vm842, %v841, 0
        %v844 = vshrl.u32 %v843, 5
        %v845 = vand.u32 %v843, 31
        %v846 = vsub.s32 32, %v845
        %v847 = vshrl.u32 683565275, %v846
        %v848 = vshll.u32 683565275, %v845
        %v849 = vshrl.u32 2475754826, %v846
        %v850 = vor.u32 %v848, %v849
        %v851 = vshll.u32 2475754826, %v845
        %v852 = vshrl.u32 2131351028, %v846
        %v853 = vor.u32 %v851, %v852
        %v854 = vshll.u32 2131351028, %v845
        %v855 = vshrl.u32 2102212464, %v846
        %v856 = vor.u32 %v854, %v855
        %v857 = vshll.u32 2102212464, %v845
        %v858 = vshrl.u32 920167782, %v846
        %v859 = vor.u32 %v857, %v858
        %v860 = vshll.u32 920167782, %v845
        %v861 = vshrl.u32 1326507024, %v846
        %v862 = vor.u32 %v860, %v861
        %vm863 = vcmp.lt.s32.totalorder %v844, 1
        %vm864 = vcmp.lt.s32.totalorder %v844, 2
        %vm865 = vcmp.lt.s32.totalorder %v844, 3
        %vm866 = vcmp.lt.s32.totalorder %v844, 4
        %v867 = vsel %vm863, %v847, %v850
        %v868 = vsel %vm866, %v856, 2102212464
        %v869 = vsel %vm865, %v853, %v868
        %v870 = vsel %vm864, %v867, %v869
        %v871 = vsel %vm863, %v850, %v853
        %v872 = vsel %vm866, %v859, 920167782
        %v873 = vsel %vm865, %v856, %v872
        %v874 = vsel %vm864, %v871, %v873
        %v875 = vsel %vm863, %v853, %v856
        %v876 = vsel %vm866, %v862, 1326507024
        %v877 = vsel %vm865, %v859, %v876
        %v878 = vsel %vm864, %v875, %v877
        %v879 = vshll.u32 %v839, 8
        %v880 = vmul.u32.u64.compose %v879, %v878
        %v881 = vextract.low.u32 %v880
        %v882 = vextract.high.u32 %v880
        %v883 = vmul.u32.u64.compose %v879, %v874
        %v884 = vextract.low.u32 %v883
        %v885 = vextract.high.u32 %v883
        %v886 = vmul.u32 %v879, %v870
        %v887 = vadd.s32 %v882, %v884
        %vm888 = vc.u32 %v882, %v884
        %v889 = vadd.s32 %v885, 1
        %v890 = vsel %vm888, %v889, %v885
        %v891 = vadd.s32 %v886, %v890
        %v892 = vadd.s32 %v891, 536870912
        %v893 = vshrl.u32 %v892, 30
        %v894 = vshll.u32 %v893, 30
        %v895 = vsub.s32 %v891, %v894
        %vm896 = vcmp.lt.s32.totalorder %v895, 0
        %v897 = vsub.s32 0, %v895
        %v898 = vsel %vm896, %v897, %v895
        %v899 = vclz %v898
        %v900 = vsub.s32 %v899, 2
        %vm901 = vcmp.gt.s32.totalorder 0, %v900
        %v902 = vsel %vm901, 0, %v900
        %v903 = vsub.s32 32, %v902
        %v904 = vshll.u32 %v895, %v902
        %v905 = vshrl.u32 %v887, %v903
        %v906 = vor.u32 %v904, %v905
        %v907 = vsub.s32 4294967266, %v902
        %v908 = vadd.s32 %v907, 127
        %v909 = vshll.u32 %v908, 23
        %v910 = vor.u32 4788187, %v909
        %v911 = vand.u32 2147483647, %v910
        %v913 = vcvt.s32.f32 %v906
        %v914 = vmul.f32 %v913, %v911
        %v915 = vxor.u32 %v914, 2147483648
        %v916 = vsel %vm833, %v915, %v914
        %v917 = vsub.s32 4, %v893
        %v918 = vsel %vm833, %v917, %v893
        %v919 = vsel %vm832, %v266, %v916
        %v920 = vsel %vm832, 0, %v918
        %v921 = vcosq.f32.pop %v919
        %v922 = vsinq.f32.pop %v919
        %vm923 = vweird.f32 %v266
        %v924 = vand.u32 %v920, 3
        %vm925 = vcmp.lt.s32.totalorder %v924, 2
        %vm926 = vcmp.eq.s32.totalorder %v924, 0
        %v927 = vxor.u32 %v922, 2147483648
        %v928 = vsel %vm926, %v921, %v927
        %vm929 = vcmp.eq.s32.totalorder %v924, 2
        %v930 = vxor.u32 %v921, 2147483648
        %v931 = vsel %vm929, %v930, %v922
        %v932 = vsel %vm925, %v928, %v931
        %v933 = vsel %vm923, nan, %v932
        %v934 = vand.u32 2147483647, %v268
        %vm935 = vcmp.le.f32.partialorder %v934, 0.7853982
        %vm936 = vcmp.lt.s32.totalorder %v268, 0
        %v937 = vand.u32 %v268, 2139095040
        %v938 = vshrl.u32 %v937, 23
        %v939 = vsub.s32 %v938, 127
        %v940 = vand.u32 2147483647, %v268
        %v941 = vand.u32 %v940, 8388607
        %v942 = vor.u32 %v941, 8388608
        %v943 = vsub.s32 0, %v942
        %v944 = vadd.s32 %v939, 1
        %vm945 = vcmp.gt.s32.totalorder %v944, 0
        %v946 = vsel %vm945, %v944, 0
        %v947 = vshrl.u32 %v946, 5
        %v948 = vand.u32 %v946, 31
        %v949 = vsub.s32 32, %v948
        %v950 = vshrl.u32 683565275, %v949
        %v951 = vshll.u32 683565275, %v948
        %v952 = vshrl.u32 2475754826, %v949
        %v953 = vor.u32 %v951, %v952
        %v954 = vshll.u32 2475754826, %v948
        %v955 = vshrl.u32 2131351028, %v949
        %v956 = vor.u32 %v954, %v955
        %v957 = vshll.u32 2131351028, %v948
        %v958 = vshrl.u32 2102212464, %v949
        %v959 = vor.u32 %v957, %v958
        %v960 = vshll.u32 2102212464, %v948
        %v961 = vshrl.u32 920167782, %v949
        %v962 = vor.u32 %v960, %v961
        %v963 = vshll.u32 920167782, %v948
        %v964 = vshrl.u32 1326507024, %v949
        %v965 = vor.u32 %v963, %v964
        %vm966 = vcmp.lt.s32.totalorder %v947, 1
        %vm967 = vcmp.lt.s32.totalorder %v947, 2
        %vm968 = vcmp.lt.s32.totalorder %v947, 3
        %vm969 = vcmp.lt.s32.totalorder %v947, 4
        %v970 = vsel %vm966, %v950, %v953
        %v971 = vsel %vm969, %v959, 2102212464
        %v972 = vsel %vm968, %v956, %v971
        %v973 = vsel %vm967, %v970, %v972
        %v974 = vsel %vm966, %v953, %v956
        %v975 = vsel %vm969, %v962, 920167782
        %v976 = vsel %vm968, %v959, %v975
        %v977 = vsel %vm967, %v974, %v976
        %v978 = vsel %vm966, %v956, %v959
        %v979 = vsel %vm969, %v965, 1326507024
        %v980 = vsel %vm968, %v962, %v979
        %v981 = vsel %vm967, %v978, %v980
        %v982 = vshll.u32 %v942, 8
        %v983 = vmul.u32.u64.compose %v982, %v981
        %v984 = vextract.low.u32 %v983
        %v985 = vextract.high.u32 %v983
        %v986 = vmul.u32.u64.compose %v982, %v977
        %v987 = vextract.low.u32 %v986
        %v988 = vextract.high.u32 %v986
        %v989 = vmul.u32 %v982, %v973
        %v990 = vadd.s32 %v985, %v987
        %vm991 = vc.u32 %v985, %v987
        %v992 = vadd.s32 %v988, 1
        %v993 = vsel %vm991, %v992, %v988
        %v994 = vadd.s32 %v989, %v993
        %v995 = vadd.s32 %v994, 536870912
        %v996 = vshrl.u32 %v995, 30
        %v997 = vshll.u32 %v996, 30
        %v998 = vsub.s32 %v994, %v997
        %vm999 = vcmp.lt.s32.totalorder %v998, 0
        %v1000 = vsub.s32 0, %v998
        %v1001 = vsel %vm999, %v1000, %v998
        %v1002 = vclz %v1001
        %v1003 = vsub.s32 %v1002, 2
        %vm1004 = vcmp.gt.s32.totalorder 0, %v1003
        %v1005 = vsel %vm1004, 0, %v1003
        %v1006 = vsub.s32 32, %v1005
        %v1007 = vshll.u32 %v998, %v1005
        %v1008 = vshrl.u32 %v990, %v1006
        %v1009 = vor.u32 %v1007, %v1008
        %v1010 = vsub.s32 4294967266, %v1005
        %v1011 = vadd.s32 %v1010, 127
        %v1012 = vshll.u32 %v1011, 23
        %v1013 = vor.u32 4788187, %v1012
        %v1014 = vand.u32 2147483647, %v1013
        %v1016 = vcvt.s32.f32 %v1009
        %v1017 = vmul.f32 %v1016, %v1014
        %v1018 = vxor.u32 %v1017, 2147483648
        %v1019 = vsel %vm936, %v1018, %v1017
        %v1020 = vsub.s32 4, %v996
        %v1021 = vsel %vm936, %v1020, %v996
        %v1022 = vsel %vm935, %v268, %v1019
        %v1023 = vsel %vm935, 0, %v1021
        %v1024 = vcosq.f32.pop %v1022
        %v1025 = vsinq.f32.pop %v1022
        %vm1026 = vweird.f32 %v268
        %v1027 = vand.u32 %v1023, 3
        %vm1028 = vcmp.lt.s32.totalorder %v1027, 2
        %vm1029 = vcmp.eq.s32.totalorder %v1027, 0
        %v1030 = vxor.u32 %v1025, 2147483648
        %v1031 = vsel %vm1029, %v1024, %v1030
        %vm1032 = vcmp.eq.s32.totalorder %v1027, 2
        %v1033 = vxor.u32 %v1024, 2147483648
        %v1034 = vsel %vm1032, %v1033, %v1025
        %v1035 = vsel %vm1028, %v1031, %v1034
        %v1036 = vsel %vm1026, nan, %v1035
        %v1037 = vand.u32 2147483647, %v379
        %vm1038 = vcmp.le.f32.partialorder %v1037, 0.7853982
        %vm1039 = vcmp.lt.s32.totalorder %v379, 0
        %v1040 = vand.u32 %v379, 2139095040
        %v1041 = vshrl.u32 %v1040, 23
        %v1042 = vsub.s32 %v1041, 127
        %v1043 = vand.u32 2147483647, %v379
        %v1044 = vand.u32 %v1043, 8388607
        %v1045 = vor.u32 %v1044, 8388608
        %v1046 = vsub.s32 0, %v1045
        %v1047 = vadd.s32 %v1042, 1
        %vm1048 = vcmp.gt.s32.totalorder %v1047, 0
        %v1049 = vsel %vm1048, %v1047, 0
        %v1050 = vshrl.u32 %v1049, 5
        %v1051 = vand.u32 %v1049, 31
        %v1052 = vsub.s32 32, %v1051
        %v1053 = vshrl.u32 683565275, %v1052
        %v1054 = vshll.u32 683565275, %v1051
        %v1055 = vshrl.u32 2475754826, %v1052
        %v1056 = vor.u32 %v1054, %v1055
        %v1057 = vshll.u32 2475754826, %v1051
        %v1058 = vshrl.u32 2131351028, %v1052
        %v1059 = vor.u32 %v1057, %v1058
        %v1060 = vshll.u32 2131351028, %v1051
        %v1061 = vshrl.u32 2102212464, %v1052
        %v1062 = vor.u32 %v1060, %v1061
        %v1063 = vshll.u32 2102212464, %v1051
        %v1064 = vshrl.u32 920167782, %v1052
        %v1065 = vor.u32 %v1063, %v1064
        %v1066 = vshll.u32 920167782, %v1051
        %v1067 = vshrl.u32 1326507024, %v1052
        %v1068 = vor.u32 %v1066, %v1067
        %vm1069 = vcmp.lt.s32.totalorder %v1050, 1
        %vm1070 = vcmp.lt.s32.totalorder %v1050, 2
        %vm1071 = vcmp.lt.s32.totalorder %v1050, 3
        %vm1072 = vcmp.lt.s32.totalorder %v1050, 4
        %v1073 = vsel %vm1069, %v1053, %v1056
        %v1074 = vsel %vm1072, %v1062, 2102212464
        %v1075 = vsel %vm1071, %v1059, %v1074
        %v1076 = vsel %vm1070, %v1073, %v1075
        %v1077 = vsel %vm1069, %v1056, %v1059
        %v1078 = vsel %vm1072, %v1065, 920167782
        %v1079 = vsel %vm1071, %v1062, %v1078
        %v1080 = vsel %vm1070, %v1077, %v1079
        %v1081 = vsel %vm1069, %v1059, %v1062
        %v1082 = vsel %vm1072, %v1068, 1326507024
        %v1083 = vsel %vm1071, %v1065, %v1082
        %v1084 = vsel %vm1070, %v1081, %v1083
        %v1085 = vshll.u32 %v1045, 8
        %v1086 = vmul.u32.u64.compose %v1085, %v1084
        %v1087 = vextract.low.u32 %v1086
        %v1088 = vextract.high.u32 %v1086
        %v1089 = vmul.u32.u64.compose %v1085, %v1080
        %v1090 = vextract.low.u32 %v1089
        %v1091 = vextract.high.u32 %v1089
        %v1092 = vmul.u32 %v1085, %v1076
        %v1093 = vadd.s32 %v1088, %v1090
        %vm1094 = vc.u32 %v1088, %v1090
        %v1095 = vadd.s32 %v1091, 1
        %v1096 = vsel %vm1094, %v1095, %v1091
        %v1097 = vadd.s32 %v1092, %v1096
        %v1098 = vadd.s32 %v1097, 536870912
        %v1099 = vshrl.u32 %v1098, 30
        %v1100 = vshll.u32 %v1099, 30
        %v1101 = vsub.s32 %v1097, %v1100
        %vm1102 = vcmp.lt.s32.totalorder %v1101, 0
        %v1103 = vsub.s32 0, %v1101
        %v1104 = vsel %vm1102, %v1103, %v1101
        %v1105 = vclz %v1104
        %v1106 = vsub.s32 %v1105, 2
        %vm1107 = vcmp.gt.s32.totalorder 0, %v1106
        %v1108 = vsel %vm1107, 0, %v1106
        %v1109 = vsub.s32 32, %v1108
        %v1110 = vshll.u32 %v1101, %v1108
        %v1111 = vshrl.u32 %v1093, %v1109
        %v1112 = vor.u32 %v1110, %v1111
        %v1113 = vsub.s32 4294967266, %v1108
        %v1114 = vadd.s32 %v1113, 127
        %v1115 = vshll.u32 %v1114, 23
        %v1116 = vor.u32 4788187, %v1115
        %v1117 = vand.u32 2147483647, %v1116
        %v1119 = vcvt.s32.f32 %v1112
        %v1120 = vmul.f32 %v1119, %v1117
        %v1121 = vxor.u32 %v1120, 2147483648
        %v1122 = vsel %vm1039, %v1121, %v1120
        %v1123 = vsub.s32 4, %v1099
        %v1124 = vsel %vm1039, %v1123, %v1099
        %v1125 = vsel %vm1038, %v379, %v1122
        %v1126 = vsel %vm1038, 0, %v1124
        %v1127 = vcosq.f32.pop %v1125
        %v1128 = vsinq.f32.pop %v1125
        %vm1129 = vweird.f32 %v379
        %v1130 = vand.u32 %v1126, 3
        %vm1131 = vcmp.lt.s32.totalorder %v1130, 2
        %vm1132 = vcmp.eq.s32.totalorder %v1130, 0
        %v1133 = vxor.u32 %v1128, 2147483648
        %v1134 = vsel %vm1132, %v1127, %v1133
        %vm1135 = vcmp.eq.s32.totalorder %v1130, 2
        %v1136 = vxor.u32 %v1127, 2147483648
        %v1137 = vsel %vm1135, %v1136, %v1128
        %v1138 = vsel %vm1131, %v1134, %v1137
        %v1139 = vsel %vm1129, nan, %v1138
        %v1140 = vand.u32 2147483647, %v381
        %vm1141 = vcmp.le.f32.partialorder %v1140, 0.7853982
        %vm1142 = vcmp.lt.s32.totalorder %v381, 0
        %v1143 = vand.u32 %v381, 2139095040
        %v1144 = vshrl.u32 %v1143, 23
        %v1145 = vsub.s32 %v1144, 127
        %v1146 = vand.u32 2147483647, %v381
        %v1147 = vand.u32 %v1146, 8388607
        %v1148 = vor.u32 %v1147, 8388608
        %v1149 = vsub.s32 0, %v1148
        %v1150 = vadd.s32 %v1145, 1
        %vm1151 = vcmp.gt.s32.totalorder %v1150, 0
        %v1152 = vsel %vm1151, %v1150, 0
        %v1153 = vshrl.u32 %v1152, 5
        %v1154 = vand.u32 %v1152, 31
        %v1155 = vsub.s32 32, %v1154
        %v1156 = vshrl.u32 683565275, %v1155
        %v1157 = vshll.u32 683565275, %v1154
        %v1158 = vshrl.u32 2475754826, %v1155
        %v1159 = vor.u32 %v1157, %v1158
        %v1160 = vshll.u32 2475754826, %v1154
        %v1161 = vshrl.u32 2131351028, %v1155
        %v1162 = vor.u32 %v1160, %v1161
        %v1163 = vshll.u32 2131351028, %v1154
        %v1164 = vshrl.u32 2102212464, %v1155
        %v1165 = vor.u32 %v1163, %v1164
        %v1166 = vshll.u32 2102212464, %v1154
        %v1167 = vshrl.u32 920167782, %v1155
        %v1168 = vor.u32 %v1166, %v1167
        %v1169 = vshll.u32 920167782, %v1154
        %v1170 = vshrl.u32 1326507024, %v1155
        %v1171 = vor.u32 %v1169, %v1170
        %vm1172 = vcmp.lt.s32.totalorder %v1153, 1
        %vm1173 = vcmp.lt.s32.totalorder %v1153, 2
        %vm1174 = vcmp.lt.s32.totalorder %v1153, 3
        %vm1175 = vcmp.lt.s32.totalorder %v1153, 4
        %v1176 = vsel %vm1172, %v1156, %v1159
        %v1177 = vsel %vm1175, %v1165, 2102212464
        %v1178 = vsel %vm1174, %v1162, %v1177
        %v1179 = vsel %vm1173, %v1176, %v1178
        %v1180 = vsel %vm1172, %v1159, %v1162
        %v1181 = vsel %vm1175, %v1168, 920167782
        %v1182 = vsel %vm1174, %v1165, %v1181
        %v1183 = vsel %vm1173, %v1180, %v1182
        %v1184 = vsel %vm1172, %v1162, %v1165
        %v1185 = vsel %vm1175, %v1171, 1326507024
        %v1186 = vsel %vm1174, %v1168, %v1185
        %v1187 = vsel %vm1173, %v1184, %v1186
        %v1188 = vshll.u32 %v1148, 8
        %v1189 = vmul.u32.u64.compose %v1188, %v1187
        %v1190 = vextract.low.u32 %v1189
        %v1191 = vextract.high.u32 %v1189
        %v1192 = vmul.u32.u64.compose %v1188, %v1183
        %v1193 = vextract.low.u32 %v1192
        %v1194 = vextract.high.u32 %v1192
        %v1195 = vmul.u32 %v1188, %v1179
        %v1196 = vadd.s32 %v1191, %v1193
        %vm1197 = vc.u32 %v1191, %v1193
        %v1198 = vadd.s32 %v1194, 1
        %v1199 = vsel %vm1197, %v1198, %v1194
        %v1200 = vadd.s32 %v1195, %v1199
        %v1201 = vadd.s32 %v1200, 536870912
        %v1202 = vshrl.u32 %v1201, 30
        %v1203 = vshll.u32 %v1202, 30
        %v1204 = vsub.s32 %v1200, %v1203
        %vm1205 = vcmp.lt.s32.totalorder %v1204, 0
        %v1206 = vsub.s32 0, %v1204
        %v1207 = vsel %vm1205, %v1206, %v1204
        %v1208 = vclz %v1207
        %v1209 = vsub.s32 %v1208, 2
        %vm1210 = vcmp.gt.s32.totalorder 0, %v1209
        %v1211 = vsel %vm1210, 0, %v1209
        %v1212 = vsub.s32 32, %v1211
        %v1213 = vshll.u32 %v1204, %v1211
        %v1214 = vshrl.u32 %v1196, %v1212
        %v1215 = vor.u32 %v1213, %v1214
        %v1216 = vsub.s32 4294967266, %v1211
        %v1217 = vadd.s32 %v1216, 127
        %v1218 = vshll.u32 %v1217, 23
        %v1219 = vor.u32 4788187, %v1218
        %v1220 = vand.u32 2147483647, %v1219
        %v1222 = vcvt.s32.f32 %v1215
        %v1223 = vmul.f32 %v1222, %v1220
        %v1224 = vxor.u32 %v1223, 2147483648
        %v1225 = vsel %vm1142, %v1224, %v1223
        %v1226 = vsub.s32 4, %v1202
        %v1227 = vsel %vm1142, %v1226, %v1202
        %v1228 = vsel %vm1141, %v381, %v1225
        %v1229 = vsel %vm1141, 0, %v1227
        %v1230 = vcosq.f32.pop %v1228
        %v1231 = vsinq.f32.pop %v1228
        %vm1232 = vweird.f32 %v381
        %v1233 = vand.u32 %v1229, 3
        %vm1234 = vcmp.lt.s32.totalorder %v1233, 2
        %vm1235 = vcmp.eq.s32.totalorder %v1233, 0
        %v1236 = vxor.u32 %v1231, 2147483648
        %v1237 = vsel %vm1235, %v1230, %v1236
        %vm1238 = vcmp.eq.s32.totalorder %v1233, 2
        %v1239 = vxor.u32 %v1230, 2147483648
        %v1240 = vsel %vm1238, %v1239, %v1231
        %v1241 = vsel %vm1234, %v1237, %v1240
        %v1242 = vsel %vm1232, nan, %v1241
        %v1243 = vand.u32 2147483647, %v272
        %vm1244 = vcmp.le.f32.partialorder %v1243, 0.7853982
        %vm1245 = vcmp.lt.s32.totalorder %v272, 0
        %v1246 = vand.u32 %v272, 2139095040
        %v1247 = vshrl.u32 %v1246, 23
        %v1248 = vsub.s32 %v1247, 127
        %v1249 = vand.u32 2147483647, %v272
        %v1250 = vand.u32 %v1249, 8388607
        %v1251 = vor.u32 %v1250, 8388608
        %v1252 = vsub.s32 0, %v1251
        %v1253 = vadd.s32 %v1248, 1
        %vm1254 = vcmp.gt.s32.totalorder %v1253, 0
        %v1255 = vsel %vm1254, %v1253, 0
        %v1256 = vshrl.u32 %v1255, 5
        %v1257 = vand.u32 %v1255, 31
        %v1258 = vsub.s32 32, %v1257
        %v1259 = vshrl.u32 683565275, %v1258
        %v1260 = vshll.u32 683565275, %v1257
        %v1261 = vshrl.u32 2475754826, %v1258
        %v1262 = vor.u32 %v1260, %v1261
        %v1263 = vshll.u32 2475754826, %v1257
        %v1264 = vshrl.u32 2131351028, %v1258
        %v1265 = vor.u32 %v1263, %v1264
        %v1266 = vshll.u32 2131351028, %v1257
        %v1267 = vshrl.u32 2102212464, %v1258
        %v1268 = vor.u32 %v1266, %v1267
        %v1269 = vshll.u32 2102212464, %v1257
        %v1270 = vshrl.u32 920167782, %v1258
        %v1271 = vor.u32 %v1269, %v1270
        %v1272 = vshll.u32 920167782, %v1257
        %v1273 = vshrl.u32 1326507024, %v1258
        %v1274 = vor.u32 %v1272, %v1273
        %vm1275 = vcmp.lt.s32.totalorder %v1256, 1
        %vm1276 = vcmp.lt.s32.totalorder %v1256, 2
        %vm1277 = vcmp.lt.s32.totalorder %v1256, 3
        %vm1278 = vcmp.lt.s32.totalorder %v1256, 4
        %v1279 = vsel %vm1275, %v1259, %v1262
        %v1280 = vsel %vm1278, %v1268, 2102212464
        %v1281 = vsel %vm1277, %v1265, %v1280
        %v1282 = vsel %vm1276, %v1279, %v1281
        %v1283 = vsel %vm1275, %v1262, %v1265
        %v1284 = vsel %vm1278, %v1271, 920167782
        %v1285 = vsel %vm1277, %v1268, %v1284
        %v1286 = vsel %vm1276, %v1283, %v1285
        %v1287 = vsel %vm1275, %v1265, %v1268
        %v1288 = vsel %vm1278, %v1274, 1326507024
        %v1289 = vsel %vm1277, %v1271, %v1288
        %v1290 = vsel %vm1276, %v1287, %v1289
        %v1291 = vshll.u32 %v1251, 8
        %v1292 = vmul.u32.u64.compose %v1291, %v1290
        %v1293 = vextract.low.u32 %v1292
        %v1294 = vextract.high.u32 %v1292
        %v1295 = vmul.u32.u64.compose %v1291, %v1286
        %v1296 = vextract.low.u32 %v1295
        %v1297 = vextract.high.u32 %v1295
        %v1298 = vmul.u32 %v1291, %v1282
        %v1299 = vadd.s32 %v1294, %v1296
        %vm1300 = vc.u32 %v1294, %v1296
        %v1301 = vadd.s32 %v1297, 1
        %v1302 = vsel %vm1300, %v1301, %v1297
        %v1303 = vadd.s32 %v1298, %v1302
        %v1304 = vadd.s32 %v1303, 536870912
        %v1305 = vshrl.u32 %v1304, 30
        %v1306 = vshll.u32 %v1305, 30
        %v1307 = vsub.s32 %v1303, %v1306
        %vm1308 = vcmp.lt.s32.totalorder %v1307, 0
        %v1309 = vsub.s32 0, %v1307
        %v1310 = vsel %vm1308, %v1309, %v1307
        %v1311 = vclz %v1310
        %v1312 = vsub.s32 %v1311, 2
        %vm1313 = vcmp.gt.s32.totalorder 0, %v1312
        %v1314 = vsel %vm1313, 0, %v1312
        %v1315 = vsub.s32 32, %v1314
        %v1316 = vshll.u32 %v1307, %v1314
        %v1317 = vshrl.u32 %v1299, %v1315
        %v1318 = vor.u32 %v1316, %v1317
        %v1319 = vsub.s32 4294967266, %v1314
        %v1320 = vadd.s32 %v1319, 127
        %v1321 = vshll.u32 %v1320, 23
        %v1322 = vor.u32 4788187, %v1321
        %v1323 = vand.u32 2147483647, %v1322
        %v1325 = vcvt.s32.f32 %v1318
        %v1326 = vmul.f32 %v1325, %v1323
        %v1327 = vxor.u32 %v1326, 2147483648
        %v1328 = vsel %vm1245, %v1327, %v1326
        %v1329 = vsub.s32 4, %v1305
        %v1330 = vsel %vm1245, %v1329, %v1305
        %v1331 = vsel %vm1244, %v272, %v1328
        %v1332 = vsel %vm1244, 0, %v1330
        %v1333 = vcosq.f32.pop %v1331
        %v1334 = vsinq.f32.pop %v1331
        %vm1335 = vweird.f32 %v272
        %v1336 = vand.u32 %v1332, 3
        %vm1337 = vcmp.lt.s32.totalorder %v1336, 2
        %vm1338 = vcmp.eq.s32.totalorder %v1336, 0
        %v1339 = vxor.u32 %v1334, 2147483648
        %v1340 = vsel %vm1338, %v1333, %v1339
        %vm1341 = vcmp.eq.s32.totalorder %v1336, 2
        %v1342 = vxor.u32 %v1333, 2147483648
        %v1343 = vsel %vm1341, %v1342, %v1334
        %v1344 = vsel %vm1337, %v1340, %v1343
        %v1345 = vsel %vm1335, nan, %v1344
        %v1346 = vand.u32 2147483647, %v274
        %vm1347 = vcmp.le.f32.partialorder %v1346, 0.7853982
        %vm1348 = vcmp.lt.s32.totalorder %v274, 0
        %v1349 = vand.u32 %v274, 2139095040
        %v1350 = vshrl.u32 %v1349, 23
        %v1351 = vsub.s32 %v1350, 127
        %v1352 = vand.u32 2147483647, %v274
        %v1353 = vand.u32 %v1352, 8388607
        %v1354 = vor.u32 %v1353, 8388608
        %v1355 = vsub.s32 0, %v1354
        %v1356 = vadd.s32 %v1351, 1
        %vm1357 = vcmp.gt.s32.totalorder %v1356, 0
        %v1358 = vsel %vm1357, %v1356, 0
        %v1359 = vshrl.u32 %v1358, 5
        %v1360 = vand.u32 %v1358, 31
        %v1361 = vsub.s32 32, %v1360
        %v1362 = vshrl.u32 683565275, %v1361
        %v1363 = vshll.u32 683565275, %v1360
        %v1364 = vshrl.u32 2475754826, %v1361
        %v1365 = vor.u32 %v1363, %v1364
        %v1366 = vshll.u32 2475754826, %v1360
        %v1367 = vshrl.u32 2131351028, %v1361
        %v1368 = vor.u32 %v1366, %v1367
        %v1369 = vshll.u32 2131351028, %v1360
        %v1370 = vshrl.u32 2102212464, %v1361
        %v1371 = vor.u32 %v1369, %v1370
        %v1372 = vshll.u32 2102212464, %v1360
        %v1373 = vshrl.u32 920167782, %v1361
        %v1374 = vor.u32 %v1372, %v1373
        %v1375 = vshll.u32 920167782, %v1360
        %v1376 = vshrl.u32 1326507024, %v1361
        %v1377 = vor.u32 %v1375, %v1376
        %vm1378 = vcmp.lt.s32.totalorder %v1359, 1
        %vm1379 = vcmp.lt.s32.totalorder %v1359, 2
        %vm1380 = vcmp.lt.s32.totalorder %v1359, 3
        %vm1381 = vcmp.lt.s32.totalorder %v1359, 4
        %v1382 = vsel %vm1378, %v1362, %v1365
        %v1383 = vsel %vm1381, %v1371, 2102212464
        %v1384 = vsel %vm1380, %v1368, %v1383
        %v1385 = vsel %vm1379, %v1382, %v1384
        %v1386 = vsel %vm1378, %v1365, %v1368
        %v1387 = vsel %vm1381, %v1374, 920167782
        %v1388 = vsel %vm1380, %v1371, %v1387
        %v1389 = vsel %vm1379, %v1386, %v1388
        %v1390 = vsel %vm1378, %v1368, %v1371
        %v1391 = vsel %vm1381, %v1377, 1326507024
        %v1392 = vsel %vm1380, %v1374, %v1391
        %v1393 = vsel %vm1379, %v1390, %v1392
        %v1394 = vshll.u32 %v1354, 8
        %v1395 = vmul.u32.u64.compose %v1394, %v1393
        %v1396 = vextract.low.u32 %v1395
        %v1397 = vextract.high.u32 %v1395
        %v1398 = vmul.u32.u64.compose %v1394, %v1389
        %v1399 = vextract.low.u32 %v1398
        %v1400 = vextract.high.u32 %v1398
        %v1401 = vmul.u32 %v1394, %v1385
        %v1402 = vadd.s32 %v1397, %v1399
        %vm1403 = vc.u32 %v1397, %v1399
        %v1404 = vadd.s32 %v1400, 1
        %v1405 = vsel %vm1403, %v1404, %v1400
        %v1406 = vadd.s32 %v1401, %v1405
        %v1407 = vadd.s32 %v1406, 536870912
        %v1408 = vshrl.u32 %v1407, 30
        %v1409 = vshll.u32 %v1408, 30
        %v1410 = vsub.s32 %v1406, %v1409
        %vm1411 = vcmp.lt.s32.totalorder %v1410, 0
        %v1412 = vsub.s32 0, %v1410
        %v1413 = vsel %vm1411, %v1412, %v1410
        %v1414 = vclz %v1413
        %v1415 = vsub.s32 %v1414, 2
        %vm1416 = vcmp.gt.s32.totalorder 0, %v1415
        %v1417 = vsel %vm1416, 0, %v1415
        %v1418 = vsub.s32 32, %v1417
        %v1419 = vshll.u32 %v1410, %v1417
        %v1420 = vshrl.u32 %v1402, %v1418
        %v1421 = vor.u32 %v1419, %v1420
        %v1422 = vsub.s32 4294967266, %v1417
        %v1423 = vadd.s32 %v1422, 127
        %v1424 = vshll.u32 %v1423, 23
        %v1425 = vor.u32 4788187, %v1424
        %v1426 = vand.u32 2147483647, %v1425
        %v1428 = vcvt.s32.f32 %v1421
        %v1429 = vmul.f32 %v1428, %v1426
        %v1430 = vxor.u32 %v1429, 2147483648
        %v1431 = vsel %vm1348, %v1430, %v1429
        %v1432 = vsub.s32 4, %v1408
        %v1433 = vsel %vm1348, %v1432, %v1408
        %v1434 = vsel %vm1347, %v274, %v1431
        %v1435 = vsel %vm1347, 0, %v1433
        %v1436 = vcosq.f32.pop %v1434
        %v1437 = vsinq.f32.pop %v1434
        %vm1438 = vweird.f32 %v274
        %v1439 = vand.u32 %v1435, 3
        %vm1440 = vcmp.lt.s32.totalorder %v1439, 2
        %vm1441 = vcmp.eq.s32.totalorder %v1439, 0
        %v1442 = vxor.u32 %v1437, 2147483648
        %v1443 = vsel %vm1441, %v1436, %v1442
        %vm1444 = vcmp.eq.s32.totalorder %v1439, 2
        %v1445 = vxor.u32 %v1436, 2147483648
        %v1446 = vsel %vm1444, %v1445, %v1437
        %v1447 = vsel %vm1440, %v1443, %v1446
        %v1448 = vsel %vm1438, nan, %v1447
        %v1449 = vand.u32 2147483647, %v385
        %vm1450 = vcmp.le.f32.partialorder %v1449, 0.7853982
        %vm1451 = vcmp.lt.s32.totalorder %v385, 0
        %v1452 = vand.u32 %v385, 2139095040
        %v1453 = vshrl.u32 %v1452, 23
        %v1454 = vsub.s32 %v1453, 127
        %v1455 = vand.u32 2147483647, %v385
        %v1456 = vand.u32 %v1455, 8388607
        %v1457 = vor.u32 %v1456, 8388608
        %v1458 = vsub.s32 0, %v1457
        %v1459 = vadd.s32 %v1454, 1
        %vm1460 = vcmp.gt.s32.totalorder %v1459, 0
        %v1461 = vsel %vm1460, %v1459, 0
        %v1462 = vshrl.u32 %v1461, 5
        %v1463 = vand.u32 %v1461, 31
        %v1464 = vsub.s32 32, %v1463
        %v1465 = vshrl.u32 683565275, %v1464
        %v1466 = vshll.u32 683565275, %v1463
        %v1467 = vshrl.u32 2475754826, %v1464
        %v1468 = vor.u32 %v1466, %v1467
        %v1469 = vshll.u32 2475754826, %v1463
        %v1470 = vshrl.u32 2131351028, %v1464
        %v1471 = vor.u32 %v1469, %v1470
        %v1472 = vshll.u32 2131351028, %v1463
        %v1473 = vshrl.u32 2102212464, %v1464
        %v1474 = vor.u32 %v1472, %v1473
        %v1475 = vshll.u32 2102212464, %v1463
        %v1476 = vshrl.u32 920167782, %v1464
        %v1477 = vor.u32 %v1475, %v1476
        %v1478 = vshll.u32 920167782, %v1463
        %v1479 = vshrl.u32 1326507024, %v1464
        %v1480 = vor.u32 %v1478, %v1479
        %vm1481 = vcmp.lt.s32.totalorder %v1462, 1
        %vm1482 = vcmp.lt.s32.totalorder %v1462, 2
        %vm1483 = vcmp.lt.s32.totalorder %v1462, 3
        %vm1484 = vcmp.lt.s32.totalorder %v1462, 4
        %v1485 = vsel %vm1481, %v1465, %v1468
        %v1486 = vsel %vm1484, %v1474, 2102212464
        %v1487 = vsel %vm1483, %v1471, %v1486
        %v1488 = vsel %vm1482, %v1485, %v1487
        %v1489 = vsel %vm1481, %v1468, %v1471
        %v1490 = vsel %vm1484, %v1477, 920167782
        %v1491 = vsel %vm1483, %v1474, %v1490
        %v1492 = vsel %vm1482, %v1489, %v1491
        %v1493 = vsel %vm1481, %v1471, %v1474
        %v1494 = vsel %vm1484, %v1480, 1326507024
        %v1495 = vsel %vm1483, %v1477, %v1494
        %v1496 = vsel %vm1482, %v1493, %v1495
        %v1497 = vshll.u32 %v1457, 8
        %v1498 = vmul.u32.u64.compose %v1497, %v1496
        %v1499 = vextract.low.u32 %v1498
        %v1500 = vextract.high.u32 %v1498
        %v1501 = vmul.u32.u64.compose %v1497, %v1492
        %v1502 = vextract.low.u32 %v1501
        %v1503 = vextract.high.u32 %v1501
        %v1504 = vmul.u32 %v1497, %v1488
        %v1505 = vadd.s32 %v1500, %v1502
        %vm1506 = vc.u32 %v1500, %v1502
        %v1507 = vadd.s32 %v1503, 1
        %v1508 = vsel %vm1506, %v1507, %v1503
        %v1509 = vadd.s32 %v1504, %v1508
        %v1510 = vadd.s32 %v1509, 536870912
        %v1511 = vshrl.u32 %v1510, 30
        %v1512 = vshll.u32 %v1511, 30
        %v1513 = vsub.s32 %v1509, %v1512
        %vm1514 = vcmp.lt.s32.totalorder %v1513, 0
        %v1515 = vsub.s32 0, %v1513
        %v1516 = vsel %vm1514, %v1515, %v1513
        %v1517 = vclz %v1516
        %v1518 = vsub.s32 %v1517, 2
        %vm1519 = vcmp.gt.s32.totalorder 0, %v1518
        %v1520 = vsel %vm1519, 0, %v1518
        %v1521 = vsub.s32 32, %v1520
        %v1522 = vshll.u32 %v1513, %v1520
        %v1523 = vshrl.u32 %v1505, %v1521
        %v1524 = vor.u32 %v1522, %v1523
        %v1525 = vsub.s32 4294967266, %v1520
        %v1526 = vadd.s32 %v1525, 127
        %v1527 = vshll.u32 %v1526, 23
        %v1528 = vor.u32 4788187, %v1527
        %v1529 = vand.u32 2147483647, %v1528
        %v1531 = vcvt.s32.f32 %v1524
        %v1532 = vmul.f32 %v1531, %v1529
        %v1533 = vxor.u32 %v1532, 2147483648
        %v1534 = vsel %vm1451, %v1533, %v1532
        %v1535 = vsub.s32 4, %v1511
        %v1536 = vsel %vm1451, %v1535, %v1511
        %v1537 = vsel %vm1450, %v385, %v1534
        %v1538 = vsel %vm1450, 0, %v1536
        %v1539 = vcosq.f32.pop %v1537
        %v1540 = vsinq.f32.pop %v1537
        %vm1541 = vweird.f32 %v385
        %v1542 = vand.u32 %v1538, 3
        %vm1543 = vcmp.lt.s32.totalorder %v1542, 2
        %vm1544 = vcmp.eq.s32.totalorder %v1542, 0
        %v1545 = vxor.u32 %v1540, 2147483648
        %v1546 = vsel %vm1544, %v1539, %v1545
        %vm1547 = vcmp.eq.s32.totalorder %v1542, 2
        %v1548 = vxor.u32 %v1539, 2147483648
        %v1549 = vsel %vm1547, %v1548, %v1540
        %v1550 = vsel %vm1543, %v1546, %v1549
        %v1551 = vsel %vm1541, nan, %v1550
        %v1552 = vand.u32 2147483647, %v387
        %vm1553 = vcmp.le.f32.partialorder %v1552, 0.7853982
        %vm1554 = vcmp.lt.s32.totalorder %v387, 0
        %v1555 = vand.u32 %v387, 2139095040
        %v1556 = vshrl.u32 %v1555, 23
        %v1557 = vsub.s32 %v1556, 127
        %v1558 = vand.u32 2147483647, %v387
        %v1559 = vand.u32 %v1558, 8388607
        %v1560 = vor.u32 %v1559, 8388608
        %v1561 = vsub.s32 0, %v1560
        %v1562 = vadd.s32 %v1557, 1
        %vm1563 = vcmp.gt.s32.totalorder %v1562, 0
        %v1564 = vsel %vm1563, %v1562, 0
        %v1565 = vshrl.u32 %v1564, 5
        %v1566 = vand.u32 %v1564, 31
        %v1567 = vsub.s32 32, %v1566
        %v1568 = vshrl.u32 683565275, %v1567
        %v1569 = vshll.u32 683565275, %v1566
        %v1570 = vshrl.u32 2475754826, %v1567
        %v1571 = vor.u32 %v1569, %v1570
        %v1572 = vshll.u32 2475754826, %v1566
        %v1573 = vshrl.u32 2131351028, %v1567
        %v1574 = vor.u32 %v1572, %v1573
        %v1575 = vshll.u32 2131351028, %v1566
        %v1576 = vshrl.u32 2102212464, %v1567
        %v1577 = vor.u32 %v1575, %v1576
        %v1578 = vshll.u32 2102212464, %v1566
        %v1579 = vshrl.u32 920167782, %v1567
        %v1580 = vor.u32 %v1578, %v1579
        %v1581 = vshll.u32 920167782, %v1566
        %v1582 = vshrl.u32 1326507024, %v1567
        %v1583 = vor.u32 %v1581, %v1582
        %vm1584 = vcmp.lt.s32.totalorder %v1565, 1
        %vm1585 = vcmp.lt.s32.totalorder %v1565, 2
        %vm1586 = vcmp.lt.s32.totalorder %v1565, 3
        %vm1587 = vcmp.lt.s32.totalorder %v1565, 4
        %v1588 = vsel %vm1584, %v1568, %v1571
        %v1589 = vsel %vm1587, %v1577, 2102212464
        %v1590 = vsel %vm1586, %v1574, %v1589
        %v1591 = vsel %vm1585, %v1588, %v1590
        %v1592 = vsel %vm1584, %v1571, %v1574
        %v1593 = vsel %vm1587, %v1580, 920167782
        %v1594 = vsel %vm1586, %v1577, %v1593
        %v1595 = vsel %vm1585, %v1592, %v1594
        %v1596 = vsel %vm1584, %v1574, %v1577
        %v1597 = vsel %vm1587, %v1583, 1326507024
        %v1598 = vsel %vm1586, %v1580, %v1597
        %v1599 = vsel %vm1585, %v1596, %v1598
        %v1600 = vshll.u32 %v1560, 8
        %v1601 = vmul.u32.u64.compose %v1600, %v1599
        %v1602 = vextract.low.u32 %v1601
        %v1603 = vextract.high.u32 %v1601
        %v1604 = vmul.u32.u64.compose %v1600, %v1595
        %v1605 = vextract.low.u32 %v1604
        %v1606 = vextract.high.u32 %v1604
        %v1607 = vmul.u32 %v1600, %v1591
        %v1608 = vadd.s32 %v1603, %v1605
        %vm1609 = vc.u32 %v1603, %v1605
        %v1610 = vadd.s32 %v1606, 1
        %v1611 = vsel %vm1609, %v1610, %v1606
        %v1612 = vadd.s32 %v1607, %v1611
        %v1613 = vadd.s32 %v1612, 536870912
        %v1614 = vshrl.u32 %v1613, 30
        %v1615 = vshll.u32 %v1614, 30
        %v1616 = vsub.s32 %v1612, %v1615
        %vm1617 = vcmp.lt.s32.totalorder %v1616, 0
        %v1618 = vsub.s32 0, %v1616
        %v1619 = vsel %vm1617, %v1618, %v1616
        %v1620 = vclz %v1619
        %v1621 = vsub.s32 %v1620, 2
        %vm1622 = vcmp.gt.s32.totalorder 0, %v1621
        %v1623 = vsel %vm1622, 0, %v1621
        %v1624 = vsub.s32 32, %v1623
        %v1625 = vshll.u32 %v1616, %v1623
        %v1626 = vshrl.u32 %v1608, %v1624
        %v1627 = vor.u32 %v1625, %v1626
        %v1628 = vsub.s32 4294967266, %v1623
        %v1629 = vadd.s32 %v1628, 127
        %v1630 = vshll.u32 %v1629, 23
        %v1631 = vor.u32 4788187, %v1630
        %v1632 = vand.u32 2147483647, %v1631
        %v1634 = vcvt.s32.f32 %v1627
        %v1635 = vmul.f32 %v1634, %v1632
        %v1636 = vxor.u32 %v1635, 2147483648
        %v1637 = vsel %vm1554, %v1636, %v1635
        %v1638 = vsub.s32 4, %v1614
        %v1639 = vsel %vm1554, %v1638, %v1614
        %v1640 = vsel %vm1553, %v387, %v1637
        %v1641 = vsel %vm1553, 0, %v1639
        %v1642 = vcosq.f32.pop %v1640
        %v1643 = vsinq.f32.pop %v1640
        %vm1644 = vweird.f32 %v387
        %v1645 = vand.u32 %v1641, 3
        %vm1646 = vcmp.lt.s32.totalorder %v1645, 2
        %vm1647 = vcmp.eq.s32.totalorder %v1645, 0
        %v1648 = vxor.u32 %v1643, 2147483648
        %v1649 = vsel %vm1647, %v1642, %v1648
        %vm1650 = vcmp.eq.s32.totalorder %v1645, 2
        %v1651 = vxor.u32 %v1642, 2147483648
        %v1652 = vsel %vm1650, %v1651, %v1643
        %v1653 = vsel %vm1646, %v1649, %v1652
        %v1654 = vsel %vm1644, nan, %v1653
        %v1655 = vand.u32 2147483647, %v278
        %vm1656 = vcmp.le.f32.partialorder %v1655, 0.7853982
        %vm1657 = vcmp.lt.s32.totalorder %v278, 0
        %v1658 = vand.u32 %v278, 2139095040
        %v1659 = vshrl.u32 %v1658, 23
        %v1660 = vsub.s32 %v1659, 127
        %v1661 = vand.u32 2147483647, %v278
        %v1662 = vand.u32 %v1661, 8388607
        %v1663 = vor.u32 %v1662, 8388608
        %v1664 = vsub.s32 0, %v1663
        %v1665 = vadd.s32 %v1660, 1
        %vm1666 = vcmp.gt.s32.totalorder %v1665, 0
        %v1667 = vsel %vm1666, %v1665, 0
        %v1668 = vshrl.u32 %v1667, 5
        %v1669 = vand.u32 %v1667, 31
        %v1670 = vsub.s32 32, %v1669
        %v1671 = vshrl.u32 683565275, %v1670
        %v1672 = vshll.u32 683565275, %v1669
        %v1673 = vshrl.u32 2475754826, %v1670
        %v1674 = vor.u32 %v1672, %v1673
        %v1675 = vshll.u32 2475754826, %v1669
        %v1676 = vshrl.u32 2131351028, %v1670
        %v1677 = vor.u32 %v1675, %v1676
        %v1678 = vshll.u32 2131351028, %v1669
        %v1679 = vshrl.u32 2102212464, %v1670
        %v1680 = vor.u32 %v1678, %v1679
        %v1681 = vshll.u32 2102212464, %v1669
        %v1682 = vshrl.u32 920167782, %v1670
        %v1683 = vor.u32 %v1681, %v1682
        %v1684 = vshll.u32 920167782, %v1669
        %v1685 = vshrl.u32 1326507024, %v1670
        %v1686 = vor.u32 %v1684, %v1685
        %vm1687 = vcmp.lt.s32.totalorder %v1668, 1
        %vm1688 = vcmp.lt.s32.totalorder %v1668, 2
        %vm1689 = vcmp.lt.s32.totalorder %v1668, 3
        %vm1690 = vcmp.lt.s32.totalorder %v1668, 4
        %v1691 = vsel %vm1687, %v1671, %v1674
        %v1692 = vsel %vm1690, %v1680, 2102212464
        %v1693 = vsel %vm1689, %v1677, %v1692
        %v1694 = vsel %vm1688, %v1691, %v1693
        %v1695 = vsel %vm1687, %v1674, %v1677
        %v1696 = vsel %vm1690, %v1683, 920167782
        %v1697 = vsel %vm1689, %v1680, %v1696
        %v1698 = vsel %vm1688, %v1695, %v1697
        %v1699 = vsel %vm1687, %v1677, %v1680
        %v1700 = vsel %vm1690, %v1686, 1326507024
        %v1701 = vsel %vm1689, %v1683, %v1700
        %v1702 = vsel %vm1688, %v1699, %v1701
        %v1703 = vshll.u32 %v1663, 8
        %v1704 = vmul.u32.u64.compose %v1703, %v1702
        %v1705 = vextract.low.u32 %v1704
        %v1706 = vextract.high.u32 %v1704
        %v1707 = vmul.u32.u64.compose %v1703, %v1698
        %v1708 = vextract.low.u32 %v1707
        %v1709 = vextract.high.u32 %v1707
        %v1710 = vmul.u32 %v1703, %v1694
        %v1711 = vadd.s32 %v1706, %v1708
        %vm1712 = vc.u32 %v1706, %v1708
        %v1713 = vadd.s32 %v1709, 1
        %v1714 = vsel %vm1712, %v1713, %v1709
        %v1715 = vadd.s32 %v1710, %v1714
        %v1716 = vadd.s32 %v1715, 536870912
        %v1717 = vshrl.u32 %v1716, 30
        %v1718 = vshll.u32 %v1717, 30
        %v1719 = vsub.s32 %v1715, %v1718
        %vm1720 = vcmp.lt.s32.totalorder %v1719, 0
        %v1721 = vsub.s32 0, %v1719
        %v1722 = vsel %vm1720, %v1721, %v1719
        %v1723 = vclz %v1722
        %v1724 = vsub.s32 %v1723, 2
        %vm1725 = vcmp.gt.s32.totalorder 0, %v1724
        %v1726 = vsel %vm1725, 0, %v1724
        %v1727 = vsub.s32 32, %v1726
        %v1728 = vshll.u32 %v1719, %v1726
        %v1729 = vshrl.u32 %v1711, %v1727
        %v1730 = vor.u32 %v1728, %v1729
        %v1731 = vsub.s32 4294967266, %v1726
        %v1732 = vadd.s32 %v1731, 127
        %v1733 = vshll.u32 %v1732, 23
        %v1734 = vor.u32 4788187, %v1733
        %v1735 = vand.u32 2147483647, %v1734
        %v1737 = vcvt.s32.f32 %v1730
        %v1738 = vmul.f32 %v1737, %v1735
        %v1739 = vxor.u32 %v1738, 2147483648
        %v1740 = vsel %vm1657, %v1739, %v1738
        %v1741 = vsub.s32 4, %v1717
        %v1742 = vsel %vm1657, %v1741, %v1717
        %v1743 = vsel %vm1656, %v278, %v1740
        %v1744 = vsel %vm1656, 0, %v1742
        %v1745 = vcosq.f32.pop %v1743
        %v1746 = vsinq.f32.pop %v1743
        %vm1747 = vweird.f32 %v278
        %v1748 = vand.u32 %v1744, 3
        %vm1749 = vcmp.lt.s32.totalorder %v1748, 2
        %vm1750 = vcmp.eq.s32.totalorder %v1748, 0
        %v1751 = vxor.u32 %v1746, 2147483648
        %v1752 = vsel %vm1750, %v1745, %v1751
        %vm1753 = vcmp.eq.s32.totalorder %v1748, 2
        %v1754 = vxor.u32 %v1745, 2147483648
        %v1755 = vsel %vm1753, %v1754, %v1746
        %v1756 = vsel %vm1749, %v1752, %v1755
        %v1757 = vsel %vm1747, nan, %v1756
        %v1758 = vand.u32 2147483647, %v280
        %vm1759 = vcmp.le.f32.partialorder %v1758, 0.7853982
        %vm1760 = vcmp.lt.s32.totalorder %v280, 0
        %v1761 = vand.u32 %v280, 2139095040
        %v1762 = vshrl.u32 %v1761, 23
        %v1763 = vsub.s32 %v1762, 127
        %v1764 = vand.u32 2147483647, %v280
        %v1765 = vand.u32 %v1764, 8388607
        %v1766 = vor.u32 %v1765, 8388608
        %v1767 = vsub.s32 0, %v1766
        %v1768 = vadd.s32 %v1763, 1
        %vm1769 = vcmp.gt.s32.totalorder %v1768, 0
        %v1770 = vsel %vm1769, %v1768, 0
        %v1771 = vshrl.u32 %v1770, 5
        %v1772 = vand.u32 %v1770, 31
        %v1773 = vsub.s32 32, %v1772
        %v1774 = vshrl.u32 683565275, %v1773
        %v1775 = vshll.u32 683565275, %v1772
        %v1776 = vshrl.u32 2475754826, %v1773
        %v1777 = vor.u32 %v1775, %v1776
        %v1778 = vshll.u32 2475754826, %v1772
        %v1779 = vshrl.u32 2131351028, %v1773
        %v1780 = vor.u32 %v1778, %v1779
        %v1781 = vshll.u32 2131351028, %v1772
        %v1782 = vshrl.u32 2102212464, %v1773
        %v1783 = vor.u32 %v1781, %v1782
        %v1784 = vshll.u32 2102212464, %v1772
        %v1785 = vshrl.u32 920167782, %v1773
        %v1786 = vor.u32 %v1784, %v1785
        %v1787 = vshll.u32 920167782, %v1772
        %v1788 = vshrl.u32 1326507024, %v1773
        %v1789 = vor.u32 %v1787, %v1788
        %vm1790 = vcmp.lt.s32.totalorder %v1771, 1
        %vm1791 = vcmp.lt.s32.totalorder %v1771, 2
        %vm1792 = vcmp.lt.s32.totalorder %v1771, 3
        %vm1793 = vcmp.lt.s32.totalorder %v1771, 4
        %v1794 = vsel %vm1790, %v1774, %v1777
        %v1795 = vsel %vm1793, %v1783, 2102212464
        %v1796 = vsel %vm1792, %v1780, %v1795
        %v1797 = vsel %vm1791, %v1794, %v1796
        %v1798 = vsel %vm1790, %v1777, %v1780
        %v1799 = vsel %vm1793, %v1786, 920167782
        %v1800 = vsel %vm1792, %v1783, %v1799
        %v1801 = vsel %vm1791, %v1798, %v1800
        %v1802 = vsel %vm1790, %v1780, %v1783
        %v1803 = vsel %vm1793, %v1789, 1326507024
        %v1804 = vsel %vm1792, %v1786, %v1803
        %v1805 = vsel %vm1791, %v1802, %v1804
        %v1806 = vshll.u32 %v1766, 8
        %v1807 = vmul.u32.u64.compose %v1806, %v1805
        %v1808 = vextract.low.u32 %v1807
        %v1809 = vextract.high.u32 %v1807
        %v1810 = vmul.u32.u64.compose %v1806, %v1801
        %v1811 = vextract.low.u32 %v1810
        %v1812 = vextract.high.u32 %v1810
        %v1813 = vmul.u32 %v1806, %v1797
        %v1814 = vadd.s32 %v1809, %v1811
        %vm1815 = vc.u32 %v1809, %v1811
        %v1816 = vadd.s32 %v1812, 1
        %v1817 = vsel %vm1815, %v1816, %v1812
        %v1818 = vadd.s32 %v1813, %v1817
        %v1819 = vadd.s32 %v1818, 536870912
        %v1820 = vshrl.u32 %v1819, 30
        %v1821 = vshll.u32 %v1820, 30
        %v1822 = vsub.s32 %v1818, %v1821
        %vm1823 = vcmp.lt.s32.totalorder %v1822, 0
        %v1824 = vsub.s32 0, %v1822
        %v1825 = vsel %vm1823, %v1824, %v1822
        %v1826 = vclz %v1825
        %v1827 = vsub.s32 %v1826, 2
        %vm1828 = vcmp.gt.s32.totalorder 0, %v1827
        %v1829 = vsel %vm1828, 0, %v1827
        %v1830 = vsub.s32 32, %v1829
        %v1831 = vshll.u32 %v1822, %v1829
        %v1832 = vshrl.u32 %v1814, %v1830
        %v1833 = vor.u32 %v1831, %v1832
        %v1834 = vsub.s32 4294967266, %v1829
        %v1835 = vadd.s32 %v1834, 127
        %v1836 = vshll.u32 %v1835, 23
        %v1837 = vor.u32 4788187, %v1836
        %v1838 = vand.u32 2147483647, %v1837
        %v1840 = vcvt.s32.f32 %v1833
        %v1841 = vmul.f32 %v1840, %v1838
        %v1842 = vxor.u32 %v1841, 2147483648
        %v1843 = vsel %vm1760, %v1842, %v1841
        %v1844 = vsub.s32 4, %v1820
        %v1845 = vsel %vm1760, %v1844, %v1820
        %v1846 = vsel %vm1759, %v280, %v1843
        %v1847 = vsel %vm1759, 0, %v1845
        %v1848 = vcosq.f32.pop %v1846
        %v1849 = vsinq.f32.pop %v1846
        %vm1850 = vweird.f32 %v280
        %v1851 = vand.u32 %v1847, 3
        %vm1852 = vcmp.lt.s32.totalorder %v1851, 2
        %vm1853 = vcmp.eq.s32.totalorder %v1851, 0
        %v1854 = vxor.u32 %v1849, 2147483648
        %v1855 = vsel %vm1853, %v1848, %v1854
        %vm1856 = vcmp.eq.s32.totalorder %v1851, 2
        %v1857 = vxor.u32 %v1848, 2147483648
        %v1858 = vsel %vm1856, %v1857, %v1849
        %v1859 = vsel %vm1852, %v1855, %v1858
        %v1860 = vsel %vm1850, nan, %v1859
        %v1861 = vand.u32 2147483647, %v391
        %vm1862 = vcmp.le.f32.partialorder %v1861, 0.7853982
        %vm1863 = vcmp.lt.s32.totalorder %v391, 0
        %v1864 = vand.u32 %v391, 2139095040
        %v1865 = vshrl.u32 %v1864, 23
        %v1866 = vsub.s32 %v1865, 127
        %v1867 = vand.u32 2147483647, %v391
        %v1868 = vand.u32 %v1867, 8388607
        %v1869 = vor.u32 %v1868, 8388608
        %v1870 = vsub.s32 0, %v1869
        %v1871 = vadd.s32 %v1866, 1
        %vm1872 = vcmp.gt.s32.totalorder %v1871, 0
        %v1873 = vsel %vm1872, %v1871, 0
        %v1874 = vshrl.u32 %v1873, 5
        %v1875 = vand.u32 %v1873, 31
        %v1876 = vsub.s32 32, %v1875
        %v1877 = vshrl.u32 683565275, %v1876
        %v1878 = vshll.u32 683565275, %v1875
        %v1879 = vshrl.u32 2475754826, %v1876
        %v1880 = vor.u32 %v1878, %v1879
        %v1881 = vshll.u32 2475754826, %v1875
        %v1882 = vshrl.u32 2131351028, %v1876
        %v1883 = vor.u32 %v1881, %v1882
        %v1884 = vshll.u32 2131351028, %v1875
        %v1885 = vshrl.u32 2102212464, %v1876
        %v1886 = vor.u32 %v1884, %v1885
        %v1887 = vshll.u32 2102212464, %v1875
        %v1888 = vshrl.u32 920167782, %v1876
        %v1889 = vor.u32 %v1887, %v1888
        %v1890 = vshll.u32 920167782, %v1875
        %v1891 = vshrl.u32 1326507024, %v1876
        %v1892 = vor.u32 %v1890, %v1891
        %vm1893 = vcmp.lt.s32.totalorder %v1874, 1
        %vm1894 = vcmp.lt.s32.totalorder %v1874, 2
        %vm1895 = vcmp.lt.s32.totalorder %v1874, 3
        %vm1896 = vcmp.lt.s32.totalorder %v1874, 4
        %v1897 = vsel %vm1893, %v1877, %v1880
        %v1898 = vsel %vm1896, %v1886, 2102212464
        %v1899 = vsel %vm1895, %v1883, %v1898
        %v1900 = vsel %vm1894, %v1897, %v1899
        %v1901 = vsel %vm1893, %v1880, %v1883
        %v1902 = vsel %vm1896, %v1889, 920167782
        %v1903 = vsel %vm1895, %v1886, %v1902
        %v1904 = vsel %vm1894, %v1901, %v1903
        %v1905 = vsel %vm1893, %v1883, %v1886
        %v1906 = vsel %vm1896, %v1892, 1326507024
        %v1907 = vsel %vm1895, %v1889, %v1906
        %v1908 = vsel %vm1894, %v1905, %v1907
        %v1909 = vshll.u32 %v1869, 8
        %v1910 = vmul.u32.u64.compose %v1909, %v1908
        %v1911 = vextract.low.u32 %v1910
        %v1912 = vextract.high.u32 %v1910
        %v1913 = vmul.u32.u64.compose %v1909, %v1904
        %v1914 = vextract.low.u32 %v1913
        %v1915 = vextract.high.u32 %v1913
        %v1916 = vmul.u32 %v1909, %v1900
        %v1917 = vadd.s32 %v1912, %v1914
        %vm1918 = vc.u32 %v1912, %v1914
        %v1919 = vadd.s32 %v1915, 1
        %v1920 = vsel %vm1918, %v1919, %v1915
        %v1921 = vadd.s32 %v1916, %v1920
        %v1922 = vadd.s32 %v1921, 536870912
        %v1923 = vshrl.u32 %v1922, 30
        %v1924 = vshll.u32 %v1923, 30
        %v1925 = vsub.s32 %v1921, %v1924
        %vm1926 = vcmp.lt.s32.totalorder %v1925, 0
        %v1927 = vsub.s32 0, %v1925
        %v1928 = vsel %vm1926, %v1927, %v1925
        %v1929 = vclz %v1928
        %v1930 = vsub.s32 %v1929, 2
        %vm1931 = vcmp.gt.s32.totalorder 0, %v1930
        %v1932 = vsel %vm1931, 0, %v1930
        %v1933 = vsub.s32 32, %v1932
        %v1934 = vshll.u32 %v1925, %v1932
        %v1935 = vshrl.u32 %v1917, %v1933
        %v1936 = vor.u32 %v1934, %v1935
        %v1937 = vsub.s32 4294967266, %v1932
        %v1938 = vadd.s32 %v1937, 127
        %v1939 = vshll.u32 %v1938, 23
        %v1940 = vor.u32 4788187, %v1939
        %v1941 = vand.u32 2147483647, %v1940
        %v1943 = vcvt.s32.f32 %v1936
        %v1944 = vmul.f32 %v1943, %v1941
        %v1945 = vxor.u32 %v1944, 2147483648
        %v1946 = vsel %vm1863, %v1945, %v1944
        %v1947 = vsub.s32 4, %v1923
        %v1948 = vsel %vm1863, %v1947, %v1923
        %v1949 = vsel %vm1862, %v391, %v1946
        %v1950 = vsel %vm1862, 0, %v1948
        %v1951 = vcosq.f32.pop %v1949
        %v1952 = vsinq.f32.pop %v1949
        %vm1953 = vweird.f32 %v391
        %v1954 = vand.u32 %v1950, 3
        %vm1955 = vcmp.lt.s32.totalorder %v1954, 2
        %vm1956 = vcmp.eq.s32.totalorder %v1954, 0
        %v1957 = vxor.u32 %v1952, 2147483648
        %v1958 = vsel %vm1956, %v1951, %v1957
        %vm1959 = vcmp.eq.s32.totalorder %v1954, 2
        %v1960 = vxor.u32 %v1951, 2147483648
        %v1961 = vsel %vm1959, %v1960, %v1952
        %v1962 = vsel %vm1955, %v1958, %v1961
        %v1963 = vsel %vm1953, nan, %v1962
        %v1964 = vand.u32 2147483647, %v393
        %vm1965 = vcmp.le.f32.partialorder %v1964, 0.7853982
        %vm1966 = vcmp.lt.s32.totalorder %v393, 0
        %v1967 = vand.u32 %v393, 2139095040
        %v1968 = vshrl.u32 %v1967, 23
        %v1969 = vsub.s32 %v1968, 127
        %v1970 = vand.u32 2147483647, %v393
        %v1971 = vand.u32 %v1970, 8388607
        %v1972 = vor.u32 %v1971, 8388608
        %v1973 = vsub.s32 0, %v1972
        %v1974 = vadd.s32 %v1969, 1
        %vm1975 = vcmp.gt.s32.totalorder %v1974, 0
        %v1976 = vsel %vm1975, %v1974, 0
        %v1977 = vshrl.u32 %v1976, 5
        %v1978 = vand.u32 %v1976, 31
        %v1979 = vsub.s32 32, %v1978
        %v1980 = vshrl.u32 683565275, %v1979
        %v1981 = vshll.u32 683565275, %v1978
        %v1982 = vshrl.u32 2475754826, %v1979
        %v1983 = vor.u32 %v1981, %v1982
        %v1984 = vshll.u32 2475754826, %v1978
        %v1985 = vshrl.u32 2131351028, %v1979
        %v1986 = vor.u32 %v1984, %v1985
        %v1987 = vshll.u32 2131351028, %v1978
        %v1988 = vshrl.u32 2102212464, %v1979
        %v1989 = vor.u32 %v1987, %v1988
        %v1990 = vshll.u32 2102212464, %v1978
        %v1991 = vshrl.u32 920167782, %v1979
        %v1992 = vor.u32 %v1990, %v1991
        %v1993 = vshll.u32 920167782, %v1978
        %v1994 = vshrl.u32 1326507024, %v1979
        %v1995 = vor.u32 %v1993, %v1994
        %vm1996 = vcmp.lt.s32.totalorder %v1977, 1
        %vm1997 = vcmp.lt.s32.totalorder %v1977, 2
        %vm1998 = vcmp.lt.s32.totalorder %v1977, 3
        %vm1999 = vcmp.lt.s32.totalorder %v1977, 4
        %v2000 = vsel %vm1996, %v1980, %v1983
        %v2001 = vsel %vm1999, %v1989, 2102212464
        %v2002 = vsel %vm1998, %v1986, %v2001
        %v2003 = vsel %vm1997, %v2000, %v2002
        %v2004 = vsel %vm1996, %v1983, %v1986
        %v2005 = vsel %vm1999, %v1992, 920167782
        %v2006 = vsel %vm1998, %v1989, %v2005
        %v2007 = vsel %vm1997, %v2004, %v2006
        %v2008 = vsel %vm1996, %v1986, %v1989
        %v2009 = vsel %vm1999, %v1995, 1326507024
        %v2010 = vsel %vm1998, %v1992, %v2009
        %v2011 = vsel %vm1997, %v2008, %v2010
        %v2012 = vshll.u32 %v1972, 8
        %v2013 = vmul.u32.u64.compose %v2012, %v2011
        %v2014 = vextract.low.u32 %v2013
        %v2015 = vextract.high.u32 %v2013
        %v2016 = vmul.u32.u64.compose %v2012, %v2007
        %v2017 = vextract.low.u32 %v2016
        %v2018 = vextract.high.u32 %v2016
        %v2019 = vmul.u32 %v2012, %v2003
        %v2020 = vadd.s32 %v2015, %v2017
        %vm2021 = vc.u32 %v2015, %v2017
        %v2022 = vadd.s32 %v2018, 1
        %v2023 = vsel %vm2021, %v2022, %v2018
        %v2024 = vadd.s32 %v2019, %v2023
        %v2025 = vadd.s32 %v2024, 536870912
        %v2026 = vshrl.u32 %v2025, 30
        %v2027 = vshll.u32 %v2026, 30
        %v2028 = vsub.s32 %v2024, %v2027
        %vm2029 = vcmp.lt.s32.totalorder %v2028, 0
        %v2030 = vsub.s32 0, %v2028
        %v2031 = vsel %vm2029, %v2030, %v2028
        %v2032 = vclz %v2031
        %v2033 = vsub.s32 %v2032, 2
        %vm2034 = vcmp.gt.s32.totalorder 0, %v2033
        %v2035 = vsel %vm2034, 0, %v2033
        %v2036 = vsub.s32 32, %v2035
        %v2037 = vshll.u32 %v2028, %v2035
        %v2038 = vshrl.u32 %v2020, %v2036
        %v2039 = vor.u32 %v2037, %v2038
        %v2040 = vsub.s32 4294967266, %v2035
        %v2041 = vadd.s32 %v2040, 127
        %v2042 = vshll.u32 %v2041, 23
        %v2043 = vor.u32 4788187, %v2042
        %v2044 = vand.u32 2147483647, %v2043
        %v2046 = vcvt.s32.f32 %v2039
        %v2047 = vmul.f32 %v2046, %v2044
        %v2048 = vxor.u32 %v2047, 2147483648
        %v2049 = vsel %vm1966, %v2048, %v2047
        %v2050 = vsub.s32 4, %v2026
        %v2051 = vsel %vm1966, %v2050, %v2026
        %v2052 = vsel %vm1965, %v393, %v2049
        %v2053 = vsel %vm1965, 0, %v2051
        %v2054 = vcosq.f32.pop %v2052
        %v2055 = vsinq.f32.pop %v2052
        %vm2056 = vweird.f32 %v393
        %v2057 = vand.u32 %v2053, 3
        %vm2058 = vcmp.lt.s32.totalorder %v2057, 2
        %vm2059 = vcmp.eq.s32.totalorder %v2057, 0
        %v2060 = vxor.u32 %v2055, 2147483648
        %v2061 = vsel %vm2059, %v2054, %v2060
        %vm2062 = vcmp.eq.s32.totalorder %v2057, 2
        %v2063 = vxor.u32 %v2054, 2147483648
        %v2064 = vsel %vm2062, %v2063, %v2055
        %v2065 = vsel %vm2058, %v2061, %v2064
        %v2066 = vsel %vm2056, nan, %v2065
        %v2067 = vand.u32 2147483647, %v284
        %vm2068 = vcmp.le.f32.partialorder %v2067, 0.7853982
        %vm2069 = vcmp.lt.s32.totalorder %v284, 0
        %v2070 = vand.u32 %v284, 2139095040
        %v2071 = vshrl.u32 %v2070, 23
        %v2072 = vsub.s32 %v2071, 127
        %v2073 = vand.u32 2147483647, %v284
        %v2074 = vand.u32 %v2073, 8388607
        %v2075 = vor.u32 %v2074, 8388608
        %v2076 = vsub.s32 0, %v2075
        %v2077 = vadd.s32 %v2072, 1
        %vm2078 = vcmp.gt.s32.totalorder %v2077, 0
        %v2079 = vsel %vm2078, %v2077, 0
        %v2080 = vshrl.u32 %v2079, 5
        %v2081 = vand.u32 %v2079, 31
        %v2082 = vsub.s32 32, %v2081
        %v2083 = vshrl.u32 683565275, %v2082
        %v2084 = vshll.u32 683565275, %v2081
        %v2085 = vshrl.u32 2475754826, %v2082
        %v2086 = vor.u32 %v2084, %v2085
        %v2087 = vshll.u32 2475754826, %v2081
        %v2088 = vshrl.u32 2131351028, %v2082
        %v2089 = vor.u32 %v2087, %v2088
        %v2090 = vshll.u32 2131351028, %v2081
        %v2091 = vshrl.u32 2102212464, %v2082
        %v2092 = vor.u32 %v2090, %v2091
        %v2093 = vshll.u32 2102212464, %v2081
        %v2094 = vshrl.u32 920167782, %v2082
        %v2095 = vor.u32 %v2093, %v2094
        %v2096 = vshll.u32 920167782, %v2081
        %v2097 = vshrl.u32 1326507024, %v2082
        %v2098 = vor.u32 %v2096, %v2097
        %vm2099 = vcmp.lt.s32.totalorder %v2080, 1
        %vm2100 = vcmp.lt.s32.totalorder %v2080, 2
        %vm2101 = vcmp.lt.s32.totalorder %v2080, 3
        %vm2102 = vcmp.lt.s32.totalorder %v2080, 4
        %v2103 = vsel %vm2099, %v2083, %v2086
        %v2104 = vsel %vm2102, %v2092, 2102212464
        %v2105 = vsel %vm2101, %v2089, %v2104
        %v2106 = vsel %vm2100, %v2103, %v2105
        %v2107 = vsel %vm2099, %v2086, %v2089
        %v2108 = vsel %vm2102, %v2095, 920167782
        %v2109 = vsel %vm2101, %v2092, %v2108
        %v2110 = vsel %vm2100, %v2107, %v2109
        %v2111 = vsel %vm2099, %v2089, %v2092
        %v2112 = vsel %vm2102, %v2098, 1326507024
        %v2113 = vsel %vm2101, %v2095, %v2112
        %v2114 = vsel %vm2100, %v2111, %v2113
        %v2115 = vshll.u32 %v2075, 8
        %v2116 = vmul.u32.u64.compose %v2115, %v2114
        %v2117 = vextract.low.u32 %v2116
        %v2118 = vextract.high.u32 %v2116
        %v2119 = vmul.u32.u64.compose %v2115, %v2110
        %v2120 = vextract.low.u32 %v2119
        %v2121 = vextract.high.u32 %v2119
        %v2122 = vmul.u32 %v2115, %v2106
        %v2123 = vadd.s32 %v2118, %v2120
        %vm2124 = vc.u32 %v2118, %v2120
        %v2125 = vadd.s32 %v2121, 1
        %v2126 = vsel %vm2124, %v2125, %v2121
        %v2127 = vadd.s32 %v2122, %v2126
        %v2128 = vadd.s32 %v2127, 536870912
        %v2129 = vshrl.u32 %v2128, 30
        %v2130 = vshll.u32 %v2129, 30
        %v2131 = vsub.s32 %v2127, %v2130
        %vm2132 = vcmp.lt.s32.totalorder %v2131, 0
        %v2133 = vsub.s32 0, %v2131
        %v2134 = vsel %vm2132, %v2133, %v2131
        %v2135 = vclz %v2134
        %v2136 = vsub.s32 %v2135, 2
        %vm2137 = vcmp.gt.s32.totalorder 0, %v2136
        %v2138 = vsel %vm2137, 0, %v2136
        %v2139 = vsub.s32 32, %v2138
        %v2140 = vshll.u32 %v2131, %v2138
        %v2141 = vshrl.u32 %v2123, %v2139
        %v2142 = vor.u32 %v2140, %v2141
        %v2143 = vsub.s32 4294967266, %v2138
        %v2144 = vadd.s32 %v2143, 127
        %v2145 = vshll.u32 %v2144, 23
        %v2146 = vor.u32 4788187, %v2145
        %v2147 = vand.u32 2147483647, %v2146
        %v2149 = vcvt.s32.f32 %v2142
        %v2150 = vmul.f32 %v2149, %v2147
        %v2151 = vxor.u32 %v2150, 2147483648
        %v2152 = vsel %vm2069, %v2151, %v2150
        %v2153 = vsub.s32 4, %v2129
        %v2154 = vsel %vm2069, %v2153, %v2129
        %v2155 = vsel %vm2068, %v284, %v2152
        %v2156 = vsel %vm2068, 0, %v2154
        %v2157 = vcosq.f32.pop %v2155
        %v2158 = vsinq.f32.pop %v2155
        %vm2159 = vweird.f32 %v284
        %v2160 = vand.u32 %v2156, 3
        %vm2161 = vcmp.lt.s32.totalorder %v2160, 2
        %vm2162 = vcmp.eq.s32.totalorder %v2160, 0
        %v2163 = vxor.u32 %v2158, 2147483648
        %v2164 = vsel %vm2162, %v2157, %v2163
        %vm2165 = vcmp.eq.s32.totalorder %v2160, 2
        %v2166 = vxor.u32 %v2157, 2147483648
        %v2167 = vsel %vm2165, %v2166, %v2158
        %v2168 = vsel %vm2161, %v2164, %v2167
        %v2169 = vsel %vm2159, nan, %v2168
        %v2170 = vand.u32 2147483647, %v286
        %vm2171 = vcmp.le.f32.partialorder %v2170, 0.7853982
        %vm2172 = vcmp.lt.s32.totalorder %v286, 0
        %v2173 = vand.u32 %v286, 2139095040
        %v2174 = vshrl.u32 %v2173, 23
        %v2175 = vsub.s32 %v2174, 127
        %v2176 = vand.u32 2147483647, %v286
        %v2177 = vand.u32 %v2176, 8388607
        %v2178 = vor.u32 %v2177, 8388608
        %v2179 = vsub.s32 0, %v2178
        %v2180 = vadd.s32 %v2175, 1
        %vm2181 = vcmp.gt.s32.totalorder %v2180, 0
        %v2182 = vsel %vm2181, %v2180, 0
        %v2183 = vshrl.u32 %v2182, 5
        %v2184 = vand.u32 %v2182, 31
        %v2185 = vsub.s32 32, %v2184
        %v2186 = vshrl.u32 683565275, %v2185
        %v2187 = vshll.u32 683565275, %v2184
        %v2188 = vshrl.u32 2475754826, %v2185
        %v2189 = vor.u32 %v2187, %v2188
        %v2190 = vshll.u32 2475754826, %v2184
        %v2191 = vshrl.u32 2131351028, %v2185
        %v2192 = vor.u32 %v2190, %v2191
        %v2193 = vshll.u32 2131351028, %v2184
        %v2194 = vshrl.u32 2102212464, %v2185
        %v2195 = vor.u32 %v2193, %v2194
        %v2196 = vshll.u32 2102212464, %v2184
        %v2197 = vshrl.u32 920167782, %v2185
        %v2198 = vor.u32 %v2196, %v2197
        %v2199 = vshll.u32 920167782, %v2184
        %v2200 = vshrl.u32 1326507024, %v2185
        %v2201 = vor.u32 %v2199, %v2200
        %vm2202 = vcmp.lt.s32.totalorder %v2183, 1
        %vm2203 = vcmp.lt.s32.totalorder %v2183, 2
        %vm2204 = vcmp.lt.s32.totalorder %v2183, 3
        %vm2205 = vcmp.lt.s32.totalorder %v2183, 4
        %v2206 = vsel %vm2202, %v2186, %v2189
        %v2207 = vsel %vm2205, %v2195, 2102212464
        %v2208 = vsel %vm2204, %v2192, %v2207
        %v2209 = vsel %vm2203, %v2206, %v2208
        %v2210 = vsel %vm2202, %v2189, %v2192
        %v2211 = vsel %vm2205, %v2198, 920167782
        %v2212 = vsel %vm2204, %v2195, %v2211
        %v2213 = vsel %vm2203, %v2210, %v2212
        %v2214 = vsel %vm2202, %v2192, %v2195
        %v2215 = vsel %vm2205, %v2201, 1326507024
        %v2216 = vsel %vm2204, %v2198, %v2215
        %v2217 = vsel %vm2203, %v2214, %v2216
        %v2218 = vshll.u32 %v2178, 8
        %v2219 = vmul.u32.u64.compose %v2218, %v2217
        %v2220 = vextract.low.u32 %v2219
        %v2221 = vextract.high.u32 %v2219
        %v2222 = vmul.u32.u64.compose %v2218, %v2213
        %v2223 = vextract.low.u32 %v2222
        %v2224 = vextract.high.u32 %v2222
        %v2225 = vmul.u32 %v2218, %v2209
        %v2226 = vadd.s32 %v2221, %v2223
        %vm2227 = vc.u32 %v2221, %v2223
        %v2228 = vadd.s32 %v2224, 1
        %v2229 = vsel %vm2227, %v2228, %v2224
        %v2230 = vadd.s32 %v2225, %v2229
        %v2231 = vadd.s32 %v2230, 536870912
        %v2232 = vshrl.u32 %v2231, 30
        %v2233 = vshll.u32 %v2232, 30
        %v2234 = vsub.s32 %v2230, %v2233
        %vm2235 = vcmp.lt.s32.totalorder %v2234, 0
        %v2236 = vsub.s32 0, %v2234
        %v2237 = vsel %vm2235, %v2236, %v2234
        %v2238 = vclz %v2237
        %v2239 = vsub.s32 %v2238, 2
        %vm2240 = vcmp.gt.s32.totalorder 0, %v2239
        %v2241 = vsel %vm2240, 0, %v2239
        %v2242 = vsub.s32 32, %v2241
        %v2243 = vshll.u32 %v2234, %v2241
        %v2244 = vshrl.u32 %v2226, %v2242
        %v2245 = vor.u32 %v2243, %v2244
        %v2246 = vsub.s32 4294967266, %v2241
        %v2247 = vadd.s32 %v2246, 127
        %v2248 = vshll.u32 %v2247, 23
        %v2249 = vor.u32 4788187, %v2248
        %v2250 = vand.u32 2147483647, %v2249
        %v2252 = vcvt.s32.f32 %v2245
        %v2253 = vmul.f32 %v2252, %v2250
        %v2254 = vxor.u32 %v2253, 2147483648
        %v2255 = vsel %vm2172, %v2254, %v2253
        %v2256 = vsub.s32 4, %v2232
        %v2257 = vsel %vm2172, %v2256, %v2232
        %v2258 = vsel %vm2171, %v286, %v2255
        %v2259 = vsel %vm2171, 0, %v2257
        %v2260 = vcosq.f32.pop %v2258
        %v2261 = vsinq.f32.pop %v2258
        %vm2262 = vweird.f32 %v286
        %v2263 = vand.u32 %v2259, 3
        %vm2264 = vcmp.lt.s32.totalorder %v2263, 2
        %vm2265 = vcmp.eq.s32.totalorder %v2263, 0
        %v2266 = vxor.u32 %v2261, 2147483648
        %v2267 = vsel %vm2265, %v2260, %v2266
        %vm2268 = vcmp.eq.s32.totalorder %v2263, 2
        %v2269 = vxor.u32 %v2260, 2147483648
        %v2270 = vsel %vm2268, %v2269, %v2261
        %v2271 = vsel %vm2264, %v2267, %v2270
        %v2272 = vsel %vm2262, nan, %v2271
        %v2273 = vand.u32 2147483647, %v397
        %vm2274 = vcmp.le.f32.partialorder %v2273, 0.7853982
        %vm2275 = vcmp.lt.s32.totalorder %v397, 0
        %v2276 = vand.u32 %v397, 2139095040
        %v2277 = vshrl.u32 %v2276, 23
        %v2278 = vsub.s32 %v2277, 127
        %v2279 = vand.u32 2147483647, %v397
        %v2280 = vand.u32 %v2279, 8388607
        %v2281 = vor.u32 %v2280, 8388608
        %v2282 = vsub.s32 0, %v2281
        %v2283 = vadd.s32 %v2278, 1
        %vm2284 = vcmp.gt.s32.totalorder %v2283, 0
        %v2285 = vsel %vm2284, %v2283, 0
        %v2286 = vshrl.u32 %v2285, 5
        %v2287 = vand.u32 %v2285, 31
        %v2288 = vsub.s32 32, %v2287
        %v2289 = vshrl.u32 683565275, %v2288
        %v2290 = vshll.u32 683565275, %v2287
        %v2291 = vshrl.u32 2475754826, %v2288
        %v2292 = vor.u32 %v2290, %v2291
        %v2293 = vshll.u32 2475754826, %v2287
        %v2294 = vshrl.u32 2131351028, %v2288
        %v2295 = vor.u32 %v2293, %v2294
        %v2296 = vshll.u32 2131351028, %v2287
        %v2297 = vshrl.u32 2102212464, %v2288
        %v2298 = vor.u32 %v2296, %v2297
        %v2299 = vshll.u32 2102212464, %v2287
        %v2300 = vshrl.u32 920167782, %v2288
        %v2301 = vor.u32 %v2299, %v2300
        %v2302 = vshll.u32 920167782, %v2287
        %v2303 = vshrl.u32 1326507024, %v2288
        %v2304 = vor.u32 %v2302, %v2303
        %vm2305 = vcmp.lt.s32.totalorder %v2286, 1
        %vm2306 = vcmp.lt.s32.totalorder %v2286, 2
        %vm2307 = vcmp.lt.s32.totalorder %v2286, 3
        %vm2308 = vcmp.lt.s32.totalorder %v2286, 4
        %v2309 = vsel %vm2305, %v2289, %v2292
        %v2310 = vsel %vm2308, %v2298, 2102212464
        %v2311 = vsel %vm2307, %v2295, %v2310
        %v2312 = vsel %vm2306, %v2309, %v2311
        %v2313 = vsel %vm2305, %v2292, %v2295
        %v2314 = vsel %vm2308, %v2301, 920167782
        %v2315 = vsel %vm2307, %v2298, %v2314
        %v2316 = vsel %vm2306, %v2313, %v2315
        %v2317 = vsel %vm2305, %v2295, %v2298
        %v2318 = vsel %vm2308, %v2304, 1326507024
        %v2319 = vsel %vm2307, %v2301, %v2318
        %v2320 = vsel %vm2306, %v2317, %v2319
        %v2321 = vshll.u32 %v2281, 8
        %v2322 = vmul.u32.u64.compose %v2321, %v2320
        %v2323 = vextract.low.u32 %v2322
        %v2324 = vextract.high.u32 %v2322
        %v2325 = vmul.u32.u64.compose %v2321, %v2316
        %v2326 = vextract.low.u32 %v2325
        %v2327 = vextract.high.u32 %v2325
        %v2328 = vmul.u32 %v2321, %v2312
        %v2329 = vadd.s32 %v2324, %v2326
        %vm2330 = vc.u32 %v2324, %v2326
        %v2331 = vadd.s32 %v2327, 1
        %v2332 = vsel %vm2330, %v2331, %v2327
        %v2333 = vadd.s32 %v2328, %v2332
        %v2334 = vadd.s32 %v2333, 536870912
        %v2335 = vshrl.u32 %v2334, 30
        %v2336 = vshll.u32 %v2335, 30
        %v2337 = vsub.s32 %v2333, %v2336
        %vm2338 = vcmp.lt.s32.totalorder %v2337, 0
        %v2339 = vsub.s32 0, %v2337
        %v2340 = vsel %vm2338, %v2339, %v2337
        %v2341 = vclz %v2340
        %v2342 = vsub.s32 %v2341, 2
        %vm2343 = vcmp.gt.s32.totalorder 0, %v2342
        %v2344 = vsel %vm2343, 0, %v2342
        %v2345 = vsub.s32 32, %v2344
        %v2346 = vshll.u32 %v2337, %v2344
        %v2347 = vshrl.u32 %v2329, %v2345
        %v2348 = vor.u32 %v2346, %v2347
        %v2349 = vsub.s32 4294967266, %v2344
        %v2350 = vadd.s32 %v2349, 127
        %v2351 = vshll.u32 %v2350, 23
        %v2352 = vor.u32 4788187, %v2351
        %v2353 = vand.u32 2147483647, %v2352
        %v2355 = vcvt.s32.f32 %v2348
        %v2356 = vmul.f32 %v2355, %v2353
        %v2357 = vxor.u32 %v2356, 2147483648
        %v2358 = vsel %vm2275, %v2357, %v2356
        %v2359 = vsub.s32 4, %v2335
        %v2360 = vsel %vm2275, %v2359, %v2335
        %v2361 = vsel %vm2274, %v397, %v2358
        %v2362 = vsel %vm2274, 0, %v2360
        %v2363 = vcosq.f32.pop %v2361
        %v2364 = vsinq.f32.pop %v2361
        %vm2365 = vweird.f32 %v397
        %v2366 = vand.u32 %v2362, 3
        %vm2367 = vcmp.lt.s32.totalorder %v2366, 2
        %vm2368 = vcmp.eq.s32.totalorder %v2366, 0
        %v2369 = vxor.u32 %v2364, 2147483648
        %v2370 = vsel %vm2368, %v2363, %v2369
        %vm2371 = vcmp.eq.s32.totalorder %v2366, 2
        %v2372 = vxor.u32 %v2363, 2147483648
        %v2373 = vsel %vm2371, %v2372, %v2364
        %v2374 = vsel %vm2367, %v2370, %v2373
        %v2375 = vsel %vm2365, nan, %v2374
        %v2376 = vand.u32 2147483647, %v399
        %vm2377 = vcmp.le.f32.partialorder %v2376, 0.7853982
        %vm2378 = vcmp.lt.s32.totalorder %v399, 0
        %v2379 = vand.u32 %v399, 2139095040
        %v2380 = vshrl.u32 %v2379, 23
        %v2381 = vsub.s32 %v2380, 127
        %v2382 = vand.u32 2147483647, %v399
        %v2383 = vand.u32 %v2382, 8388607
        %v2384 = vor.u32 %v2383, 8388608
        %v2385 = vsub.s32 0, %v2384
        %v2386 = vadd.s32 %v2381, 1
        %vm2387 = vcmp.gt.s32.totalorder %v2386, 0
        %v2388 = vsel %vm2387, %v2386, 0
        %v2389 = vshrl.u32 %v2388, 5
        %v2390 = vand.u32 %v2388, 31
        %v2391 = vsub.s32 32, %v2390
        %v2392 = vshrl.u32 683565275, %v2391
        %v2393 = vshll.u32 683565275, %v2390
        %v2394 = vshrl.u32 2475754826, %v2391
        %v2395 = vor.u32 %v2393, %v2394
        %v2396 = vshll.u32 2475754826, %v2390
        %v2397 = vshrl.u32 2131351028, %v2391
        %v2398 = vor.u32 %v2396, %v2397
        %v2399 = vshll.u32 2131351028, %v2390
        %v2400 = vshrl.u32 2102212464, %v2391
        %v2401 = vor.u32 %v2399, %v2400
        %v2402 = vshll.u32 2102212464, %v2390
        %v2403 = vshrl.u32 920167782, %v2391
        %v2404 = vor.u32 %v2402, %v2403
        %v2405 = vshll.u32 920167782, %v2390
        %v2406 = vshrl.u32 1326507024, %v2391
        %v2407 = vor.u32 %v2405, %v2406
        %vm2408 = vcmp.lt.s32.totalorder %v2389, 1
        %vm2409 = vcmp.lt.s32.totalorder %v2389, 2
        %vm2410 = vcmp.lt.s32.totalorder %v2389, 3
        %vm2411 = vcmp.lt.s32.totalorder %v2389, 4
        %v2412 = vsel %vm2408, %v2392, %v2395
        %v2413 = vsel %vm2411, %v2401, 2102212464
        %v2414 = vsel %vm2410, %v2398, %v2413
        %v2415 = vsel %vm2409, %v2412, %v2414
        %v2416 = vsel %vm2408, %v2395, %v2398
        %v2417 = vsel %vm2411, %v2404, 920167782
        %v2418 = vsel %vm2410, %v2401, %v2417
        %v2419 = vsel %vm2409, %v2416, %v2418
        %v2420 = vsel %vm2408, %v2398, %v2401
        %v2421 = vsel %vm2411, %v2407, 1326507024
        %v2422 = vsel %vm2410, %v2404, %v2421
        %v2423 = vsel %vm2409, %v2420, %v2422
        %v2424 = vshll.u32 %v2384, 8
        %v2425 = vmul.u32.u64.compose %v2424, %v2423
        %v2426 = vextract.low.u32 %v2425
        %v2427 = vextract.high.u32 %v2425
        %v2428 = vmul.u32.u64.compose %v2424, %v2419
        %v2429 = vextract.low.u32 %v2428
        %v2430 = vextract.high.u32 %v2428
        %v2431 = vmul.u32 %v2424, %v2415
        %v2432 = vadd.s32 %v2427, %v2429
        %vm2433 = vc.u32 %v2427, %v2429
        %v2434 = vadd.s32 %v2430, 1
        %v2435 = vsel %vm2433, %v2434, %v2430
        %v2436 = vadd.s32 %v2431, %v2435
        %v2437 = vadd.s32 %v2436, 536870912
        %v2438 = vshrl.u32 %v2437, 30
        %v2439 = vshll.u32 %v2438, 30
        %v2440 = vsub.s32 %v2436, %v2439
        %vm2441 = vcmp.lt.s32.totalorder %v2440, 0
        %v2442 = vsub.s32 0, %v2440
        %v2443 = vsel %vm2441, %v2442, %v2440
        %v2444 = vclz %v2443
        %v2445 = vsub.s32 %v2444, 2
        %vm2446 = vcmp.gt.s32.totalorder 0, %v2445
        %v2447 = vsel %vm2446, 0, %v2445
        %v2448 = vsub.s32 32, %v2447
        %v2449 = vshll.u32 %v2440, %v2447
        %v2450 = vshrl.u32 %v2432, %v2448
        %v2451 = vor.u32 %v2449, %v2450
        %v2452 = vsub.s32 4294967266, %v2447
        %v2453 = vadd.s32 %v2452, 127
        %v2454 = vshll.u32 %v2453, 23
        %v2455 = vor.u32 4788187, %v2454
        %v2456 = vand.u32 2147483647, %v2455
        %v2458 = vcvt.s32.f32 %v2451
        %v2459 = vmul.f32 %v2458, %v2456
        %v2460 = vxor.u32 %v2459, 2147483648
        %v2461 = vsel %vm2378, %v2460, %v2459
        %v2462 = vsub.s32 4, %v2438
        %v2463 = vsel %vm2378, %v2462, %v2438
        %v2464 = vsel %vm2377, %v399, %v2461
        %v2465 = vsel %vm2377, 0, %v2463
        %v2466 = vcosq.f32.pop %v2464
        %v2467 = vsinq.f32.pop %v2464
        %vm2468 = vweird.f32 %v399
        %v2469 = vand.u32 %v2465, 3
        %vm2470 = vcmp.lt.s32.totalorder %v2469, 2
        %vm2471 = vcmp.eq.s32.totalorder %v2469, 0
        %v2472 = vxor.u32 %v2467, 2147483648
        %v2473 = vsel %vm2471, %v2466, %v2472
        %vm2474 = vcmp.eq.s32.totalorder %v2469, 2
        %v2475 = vxor.u32 %v2466, 2147483648
        %v2476 = vsel %vm2474, %v2475, %v2467
        %v2477 = vsel %vm2470, %v2473, %v2476
        %v2478 = vsel %vm2468, nan, %v2477
        %v2479 = vand.u32 2147483647, %v290
        %vm2480 = vcmp.le.f32.partialorder %v2479, 0.7853982
        %vm2481 = vcmp.lt.s32.totalorder %v290, 0
        %v2482 = vand.u32 %v290, 2139095040
        %v2483 = vshrl.u32 %v2482, 23
        %v2484 = vsub.s32 %v2483, 127
        %v2485 = vand.u32 2147483647, %v290
        %v2486 = vand.u32 %v2485, 8388607
        %v2487 = vor.u32 %v2486, 8388608
        %v2488 = vsub.s32 0, %v2487
        %v2489 = vadd.s32 %v2484, 1
        %vm2490 = vcmp.gt.s32.totalorder %v2489, 0
        %v2491 = vsel %vm2490, %v2489, 0
        %v2492 = vshrl.u32 %v2491, 5
        %v2493 = vand.u32 %v2491, 31
        %v2494 = vsub.s32 32, %v2493
        %v2495 = vshrl.u32 683565275, %v2494
        %v2496 = vshll.u32 683565275, %v2493
        %v2497 = vshrl.u32 2475754826, %v2494
        %v2498 = vor.u32 %v2496, %v2497
        %v2499 = vshll.u32 2475754826, %v2493
        %v2500 = vshrl.u32 2131351028, %v2494
        %v2501 = vor.u32 %v2499, %v2500
        %v2502 = vshll.u32 2131351028, %v2493
        %v2503 = vshrl.u32 2102212464, %v2494
        %v2504 = vor.u32 %v2502, %v2503
        %v2505 = vshll.u32 2102212464, %v2493
        %v2506 = vshrl.u32 920167782, %v2494
        %v2507 = vor.u32 %v2505, %v2506
        %v2508 = vshll.u32 920167782, %v2493
        %v2509 = vshrl.u32 1326507024, %v2494
        %v2510 = vor.u32 %v2508, %v2509
        %vm2511 = vcmp.lt.s32.totalorder %v2492, 1
        %vm2512 = vcmp.lt.s32.totalorder %v2492, 2
        %vm2513 = vcmp.lt.s32.totalorder %v2492, 3
        %vm2514 = vcmp.lt.s32.totalorder %v2492, 4
        %v2515 = vsel %vm2511, %v2495, %v2498
        %v2516 = vsel %vm2514, %v2504, 2102212464
        %v2517 = vsel %vm2513, %v2501, %v2516
        %v2518 = vsel %vm2512, %v2515, %v2517
        %v2519 = vsel %vm2511, %v2498, %v2501
        %v2520 = vsel %vm2514, %v2507, 920167782
        %v2521 = vsel %vm2513, %v2504, %v2520
        %v2522 = vsel %vm2512, %v2519, %v2521
        %v2523 = vsel %vm2511, %v2501, %v2504
        %v2524 = vsel %vm2514, %v2510, 1326507024
        %v2525 = vsel %vm2513, %v2507, %v2524
        %v2526 = vsel %vm2512, %v2523, %v2525
        %v2527 = vshll.u32 %v2487, 8
        %v2528 = vmul.u32.u64.compose %v2527, %v2526
        %v2529 = vextract.low.u32 %v2528
        %v2530 = vextract.high.u32 %v2528
        %v2531 = vmul.u32.u64.compose %v2527, %v2522
        %v2532 = vextract.low.u32 %v2531
        %v2533 = vextract.high.u32 %v2531
        %v2534 = vmul.u32 %v2527, %v2518
        %v2535 = vadd.s32 %v2530, %v2532
        %vm2536 = vc.u32 %v2530, %v2532
        %v2537 = vadd.s32 %v2533, 1
        %v2538 = vsel %vm2536, %v2537, %v2533
        %v2539 = vadd.s32 %v2534, %v2538
        %v2540 = vadd.s32 %v2539, 536870912
        %v2541 = vshrl.u32 %v2540, 30
        %v2542 = vshll.u32 %v2541, 30
        %v2543 = vsub.s32 %v2539, %v2542
        %vm2544 = vcmp.lt.s32.totalorder %v2543, 0
        %v2545 = vsub.s32 0, %v2543
        %v2546 = vsel %vm2544, %v2545, %v2543
        %v2547 = vclz %v2546
        %v2548 = vsub.s32 %v2547, 2
        %vm2549 = vcmp.gt.s32.totalorder 0, %v2548
        %v2550 = vsel %vm2549, 0, %v2548
        %v2551 = vsub.s32 32, %v2550
        %v2552 = vshll.u32 %v2543, %v2550
        %v2553 = vshrl.u32 %v2535, %v2551
        %v2554 = vor.u32 %v2552, %v2553
        %v2555 = vsub.s32 4294967266, %v2550
        %v2556 = vadd.s32 %v2555, 127
        %v2557 = vshll.u32 %v2556, 23
        %v2558 = vor.u32 4788187, %v2557
        %v2559 = vand.u32 2147483647, %v2558
        %v2561 = vcvt.s32.f32 %v2554
        %v2562 = vmul.f32 %v2561, %v2559
        %v2563 = vxor.u32 %v2562, 2147483648
        %v2564 = vsel %vm2481, %v2563, %v2562
        %v2565 = vsub.s32 4, %v2541
        %v2566 = vsel %vm2481, %v2565, %v2541
        %v2567 = vsel %vm2480, %v290, %v2564
        %v2568 = vsel %vm2480, 0, %v2566
        %v2569 = vcosq.f32.pop %v2567
        %v2570 = vsinq.f32.pop %v2567
        %vm2571 = vweird.f32 %v290
        %v2572 = vand.u32 %v2568, 3
        %vm2573 = vcmp.lt.s32.totalorder %v2572, 2
        %vm2574 = vcmp.eq.s32.totalorder %v2572, 0
        %v2575 = vxor.u32 %v2570, 2147483648
        %v2576 = vsel %vm2574, %v2569, %v2575
        %vm2577 = vcmp.eq.s32.totalorder %v2572, 2
        %v2578 = vxor.u32 %v2569, 2147483648
        %v2579 = vsel %vm2577, %v2578, %v2570
        %v2580 = vsel %vm2573, %v2576, %v2579
        %v2581 = vsel %vm2571, nan, %v2580
        %v2582 = vand.u32 2147483647, %v292
        %vm2583 = vcmp.le.f32.partialorder %v2582, 0.7853982
        %vm2584 = vcmp.lt.s32.totalorder %v292, 0
        %v2585 = vand.u32 %v292, 2139095040
        %v2586 = vshrl.u32 %v2585, 23
        %v2587 = vsub.s32 %v2586, 127
        %v2588 = vand.u32 2147483647, %v292
        %v2589 = vand.u32 %v2588, 8388607
        %v2590 = vor.u32 %v2589, 8388608
        %v2591 = vsub.s32 0, %v2590
        %v2592 = vadd.s32 %v2587, 1
        %vm2593 = vcmp.gt.s32.totalorder %v2592, 0
        %v2594 = vsel %vm2593, %v2592, 0
        %v2595 = vshrl.u32 %v2594, 5
        %v2596 = vand.u32 %v2594, 31
        %v2597 = vsub.s32 32, %v2596
        %v2598 = vshrl.u32 683565275, %v2597
        %v2599 = vshll.u32 683565275, %v2596
        %v2600 = vshrl.u32 2475754826, %v2597
        %v2601 = vor.u32 %v2599, %v2600
        %v2602 = vshll.u32 2475754826, %v2596
        %v2603 = vshrl.u32 2131351028, %v2597
        %v2604 = vor.u32 %v2602, %v2603
        %v2605 = vshll.u32 2131351028, %v2596
        %v2606 = vshrl.u32 2102212464, %v2597
        %v2607 = vor.u32 %v2605, %v2606
        %v2608 = vshll.u32 2102212464, %v2596
        %v2609 = vshrl.u32 920167782, %v2597
        %v2610 = vor.u32 %v2608, %v2609
        %v2611 = vshll.u32 920167782, %v2596
        %v2612 = vshrl.u32 1326507024, %v2597
        %v2613 = vor.u32 %v2611, %v2612
        %vm2614 = vcmp.lt.s32.totalorder %v2595, 1
        %vm2615 = vcmp.lt.s32.totalorder %v2595, 2
        %vm2616 = vcmp.lt.s32.totalorder %v2595, 3
        %vm2617 = vcmp.lt.s32.totalorder %v2595, 4
        %v2618 = vsel %vm2614, %v2598, %v2601
        %v2619 = vsel %vm2617, %v2607, 2102212464
        %v2620 = vsel %vm2616, %v2604, %v2619
        %v2621 = vsel %vm2615, %v2618, %v2620
        %v2622 = vsel %vm2614, %v2601, %v2604
        %v2623 = vsel %vm2617, %v2610, 920167782
        %v2624 = vsel %vm2616, %v2607, %v2623
        %v2625 = vsel %vm2615, %v2622, %v2624
        %v2626 = vsel %vm2614, %v2604, %v2607
        %v2627 = vsel %vm2617, %v2613, 1326507024
        %v2628 = vsel %vm2616, %v2610, %v2627
        %v2629 = vsel %vm2615, %v2626, %v2628
        %v2630 = vshll.u32 %v2590, 8
        %v2631 = vmul.u32.u64.compose %v2630, %v2629
        %v2632 = vextract.low.u32 %v2631
        %v2633 = vextract.high.u32 %v2631
        %v2634 = vmul.u32.u64.compose %v2630, %v2625
        %v2635 = vextract.low.u32 %v2634
        %v2636 = vextract.high.u32 %v2634
        %v2637 = vmul.u32 %v2630, %v2621
        %v2638 = vadd.s32 %v2633, %v2635
        %vm2639 = vc.u32 %v2633, %v2635
        %v2640 = vadd.s32 %v2636, 1
        %v2641 = vsel %vm2639, %v2640, %v2636
        %v2642 = vadd.s32 %v2637, %v2641
        %v2643 = vadd.s32 %v2642, 536870912
        %v2644 = vshrl.u32 %v2643, 30
        %v2645 = vshll.u32 %v2644, 30
        %v2646 = vsub.s32 %v2642, %v2645
        %vm2647 = vcmp.lt.s32.totalorder %v2646, 0
        %v2648 = vsub.s32 0, %v2646
        %v2649 = vsel %vm2647, %v2648, %v2646
        %v2650 = vclz %v2649
        %v2651 = vsub.s32 %v2650, 2
        %vm2652 = vcmp.gt.s32.totalorder 0, %v2651
        %v2653 = vsel %vm2652, 0, %v2651
        %v2654 = vsub.s32 32, %v2653
        %v2655 = vshll.u32 %v2646, %v2653
        %v2656 = vshrl.u32 %v2638, %v2654
        %v2657 = vor.u32 %v2655, %v2656
        %v2658 = vsub.s32 4294967266, %v2653
        %v2659 = vadd.s32 %v2658, 127
        %v2660 = vshll.u32 %v2659, 23
        %v2661 = vor.u32 4788187, %v2660
        %v2662 = vand.u32 2147483647, %v2661
        %v2664 = vcvt.s32.f32 %v2657
        %v2665 = vmul.f32 %v2664, %v2662
        %v2666 = vxor.u32 %v2665, 2147483648
        %v2667 = vsel %vm2584, %v2666, %v2665
        %v2668 = vsub.s32 4, %v2644
        %v2669 = vsel %vm2584, %v2668, %v2644
        %v2670 = vsel %vm2583, %v292, %v2667
        %v2671 = vsel %vm2583, 0, %v2669
        %v2672 = vcosq.f32.pop %v2670
        %v2673 = vsinq.f32.pop %v2670
        %vm2674 = vweird.f32 %v292
        %v2675 = vand.u32 %v2671, 3
        %vm2676 = vcmp.lt.s32.totalorder %v2675, 2
        %vm2677 = vcmp.eq.s32.totalorder %v2675, 0
        %v2678 = vxor.u32 %v2673, 2147483648
        %v2679 = vsel %vm2677, %v2672, %v2678
        %vm2680 = vcmp.eq.s32.totalorder %v2675, 2
        %v2681 = vxor.u32 %v2672, 2147483648
        %v2682 = vsel %vm2680, %v2681, %v2673
        %v2683 = vsel %vm2676, %v2679, %v2682
        %v2684 = vsel %vm2674, nan, %v2683
        %v2685 = vand.u32 2147483647, %v403
        %vm2686 = vcmp.le.f32.partialorder %v2685, 0.7853982
        %vm2687 = vcmp.lt.s32.totalorder %v403, 0
        %v2688 = vand.u32 %v403, 2139095040
        %v2689 = vshrl.u32 %v2688, 23
        %v2690 = vsub.s32 %v2689, 127
        %v2691 = vand.u32 2147483647, %v403
        %v2692 = vand.u32 %v2691, 8388607
        %v2693 = vor.u32 %v2692, 8388608
        %v2694 = vsub.s32 0, %v2693
        %v2695 = vadd.s32 %v2690, 1
        %vm2696 = vcmp.gt.s32.totalorder %v2695, 0
        %v2697 = vsel %vm2696, %v2695, 0
        %v2698 = vshrl.u32 %v2697, 5
        %v2699 = vand.u32 %v2697, 31
        %v2700 = vsub.s32 32, %v2699
        %v2701 = vshrl.u32 683565275, %v2700
        %v2702 = vshll.u32 683565275, %v2699
        %v2703 = vshrl.u32 2475754826, %v2700
        %v2704 = vor.u32 %v2702, %v2703
        %v2705 = vshll.u32 2475754826, %v2699
        %v2706 = vshrl.u32 2131351028, %v2700
        %v2707 = vor.u32 %v2705, %v2706
        %v2708 = vshll.u32 2131351028, %v2699
        %v2709 = vshrl.u32 2102212464, %v2700
        %v2710 = vor.u32 %v2708, %v2709
        %v2711 = vshll.u32 2102212464, %v2699
        %v2712 = vshrl.u32 920167782, %v2700
        %v2713 = vor.u32 %v2711, %v2712
        %v2714 = vshll.u32 920167782, %v2699
        %v2715 = vshrl.u32 1326507024, %v2700
        %v2716 = vor.u32 %v2714, %v2715
        %vm2717 = vcmp.lt.s32.totalorder %v2698, 1
        %vm2718 = vcmp.lt.s32.totalorder %v2698, 2
        %vm2719 = vcmp.lt.s32.totalorder %v2698, 3
        %vm2720 = vcmp.lt.s32.totalorder %v2698, 4
        %v2721 = vsel %vm2717, %v2701, %v2704
        %v2722 = vsel %vm2720, %v2710, 2102212464
        %v2723 = vsel %vm2719, %v2707, %v2722
        %v2724 = vsel %vm2718, %v2721, %v2723
        %v2725 = vsel %vm2717, %v2704, %v2707
        %v2726 = vsel %vm2720, %v2713, 920167782
        %v2727 = vsel %vm2719, %v2710, %v2726
        %v2728 = vsel %vm2718, %v2725, %v2727
        %v2729 = vsel %vm2717, %v2707, %v2710
        %v2730 = vsel %vm2720, %v2716, 1326507024
        %v2731 = vsel %vm2719, %v2713, %v2730
        %v2732 = vsel %vm2718, %v2729, %v2731
        %v2733 = vshll.u32 %v2693, 8
        %v2734 = vmul.u32.u64.compose %v2733, %v2732
        %v2735 = vextract.low.u32 %v2734
        %v2736 = vextract.high.u32 %v2734
        %v2737 = vmul.u32.u64.compose %v2733, %v2728
        %v2738 = vextract.low.u32 %v2737
        %v2739 = vextract.high.u32 %v2737
        %v2740 = vmul.u32 %v2733, %v2724
        %v2741 = vadd.s32 %v2736, %v2738
        %vm2742 = vc.u32 %v2736, %v2738
        %v2743 = vadd.s32 %v2739, 1
        %v2744 = vsel %vm2742, %v2743, %v2739
        %v2745 = vadd.s32 %v2740, %v2744
        %v2746 = vadd.s32 %v2745, 536870912
        %v2747 = vshrl.u32 %v2746, 30
        %v2748 = vshll.u32 %v2747, 30
        %v2749 = vsub.s32 %v2745, %v2748
        %vm2750 = vcmp.lt.s32.totalorder %v2749, 0
        %v2751 = vsub.s32 0, %v2749
        %v2752 = vsel %vm2750, %v2751, %v2749
        %v2753 = vclz %v2752
        %v2754 = vsub.s32 %v2753, 2
        %vm2755 = vcmp.gt.s32.totalorder 0, %v2754
        %v2756 = vsel %vm2755, 0, %v2754
        %v2757 = vsub.s32 32, %v2756
        %v2758 = vshll.u32 %v2749, %v2756
        %v2759 = vshrl.u32 %v2741, %v2757
        %v2760 = vor.u32 %v2758, %v2759
        %v2761 = vsub.s32 4294967266, %v2756
        %v2762 = vadd.s32 %v2761, 127
        %v2763 = vshll.u32 %v2762, 23
        %v2764 = vor.u32 4788187, %v2763
        %v2765 = vand.u32 2147483647, %v2764
        %v2767 = vcvt.s32.f32 %v2760
        %v2768 = vmul.f32 %v2767, %v2765
        %v2769 = vxor.u32 %v2768, 2147483648
        %v2770 = vsel %vm2687, %v2769, %v2768
        %v2771 = vsub.s32 4, %v2747
        %v2772 = vsel %vm2687, %v2771, %v2747
        %v2773 = vsel %vm2686, %v403, %v2770
        %v2774 = vsel %vm2686, 0, %v2772
        %v2775 = vcosq.f32.pop %v2773
        %v2776 = vsinq.f32.pop %v2773
        %vm2777 = vweird.f32 %v403
        %v2778 = vand.u32 %v2774, 3
        %vm2779 = vcmp.lt.s32.totalorder %v2778, 2
        %vm2780 = vcmp.eq.s32.totalorder %v2778, 0
        %v2781 = vxor.u32 %v2776, 2147483648
        %v2782 = vsel %vm2780, %v2775, %v2781
        %vm2783 = vcmp.eq.s32.totalorder %v2778, 2
        %v2784 = vxor.u32 %v2775, 2147483648
        %v2785 = vsel %vm2783, %v2784, %v2776
        %v2786 = vsel %vm2779, %v2782, %v2785
        %v2787 = vsel %vm2777, nan, %v2786
        %v2788 = vand.u32 2147483647, %v405
        %vm2789 = vcmp.le.f32.partialorder %v2788, 0.7853982
        %vm2790 = vcmp.lt.s32.totalorder %v405, 0
        %v2791 = vand.u32 %v405, 2139095040
        %v2792 = vshrl.u32 %v2791, 23
        %v2793 = vsub.s32 %v2792, 127
        %v2794 = vand.u32 2147483647, %v405
        %v2795 = vand.u32 %v2794, 8388607
        %v2796 = vor.u32 %v2795, 8388608
        %v2797 = vsub.s32 0, %v2796
        %v2798 = vadd.s32 %v2793, 1
        %vm2799 = vcmp.gt.s32.totalorder %v2798, 0
        %v2800 = vsel %vm2799, %v2798, 0
        %v2801 = vshrl.u32 %v2800, 5
        %v2802 = vand.u32 %v2800, 31
        %v2803 = vsub.s32 32, %v2802
        %v2804 = vshrl.u32 683565275, %v2803
        %v2805 = vshll.u32 683565275, %v2802
        %v2806 = vshrl.u32 2475754826, %v2803
        %v2807 = vor.u32 %v2805, %v2806
        %v2808 = vshll.u32 2475754826, %v2802
        %v2809 = vshrl.u32 2131351028, %v2803
        %v2810 = vor.u32 %v2808, %v2809
        %v2811 = vshll.u32 2131351028, %v2802
        %v2812 = vshrl.u32 2102212464, %v2803
        %v2813 = vor.u32 %v2811, %v2812
        %v2814 = vshll.u32 2102212464, %v2802
        %v2815 = vshrl.u32 920167782, %v2803
        %v2816 = vor.u32 %v2814, %v2815
        %v2817 = vshll.u32 920167782, %v2802
        %v2818 = vshrl.u32 1326507024, %v2803
        %v2819 = vor.u32 %v2817, %v2818
        %vm2820 = vcmp.lt.s32.totalorder %v2801, 1
        %vm2821 = vcmp.lt.s32.totalorder %v2801, 2
        %vm2822 = vcmp.lt.s32.totalorder %v2801, 3
        %vm2823 = vcmp.lt.s32.totalorder %v2801, 4
        %v2824 = vsel %vm2820, %v2804, %v2807
        %v2825 = vsel %vm2823, %v2813, 2102212464
        %v2826 = vsel %vm2822, %v2810, %v2825
        %v2827 = vsel %vm2821, %v2824, %v2826
        %v2828 = vsel %vm2820, %v2807, %v2810
        %v2829 = vsel %vm2823, %v2816, 920167782
        %v2830 = vsel %vm2822, %v2813, %v2829
        %v2831 = vsel %vm2821, %v2828, %v2830
        %v2832 = vsel %vm2820, %v2810, %v2813
        %v2833 = vsel %vm2823, %v2819, 1326507024
        %v2834 = vsel %vm2822, %v2816, %v2833
        %v2835 = vsel %vm2821, %v2832, %v2834
        %v2836 = vshll.u32 %v2796, 8
        %v2837 = vmul.u32.u64.compose %v2836, %v2835
        %v2838 = vextract.low.u32 %v2837
        %v2839 = vextract.high.u32 %v2837
        %v2840 = vmul.u32.u64.compose %v2836, %v2831
        %v2841 = vextract.low.u32 %v2840
        %v2842 = vextract.high.u32 %v2840
        %v2843 = vmul.u32 %v2836, %v2827
        %v2844 = vadd.s32 %v2839, %v2841
        %vm2845 = vc.u32 %v2839, %v2841
        %v2846 = vadd.s32 %v2842, 1
        %v2847 = vsel %vm2845, %v2846, %v2842
        %v2848 = vadd.s32 %v2843, %v2847
        %v2849 = vadd.s32 %v2848, 536870912
        %v2850 = vshrl.u32 %v2849, 30
        %v2851 = vshll.u32 %v2850, 30
        %v2852 = vsub.s32 %v2848, %v2851
        %vm2853 = vcmp.lt.s32.totalorder %v2852, 0
        %v2854 = vsub.s32 0, %v2852
        %v2855 = vsel %vm2853, %v2854, %v2852
        %v2856 = vclz %v2855
        %v2857 = vsub.s32 %v2856, 2
        %vm2858 = vcmp.gt.s32.totalorder 0, %v2857
        %v2859 = vsel %vm2858, 0, %v2857
        %v2860 = vsub.s32 32, %v2859
        %v2861 = vshll.u32 %v2852, %v2859
        %v2862 = vshrl.u32 %v2844, %v2860
        %v2863 = vor.u32 %v2861, %v2862
        %v2864 = vsub.s32 4294967266, %v2859
        %v2865 = vadd.s32 %v2864, 127
        %v2866 = vshll.u32 %v2865, 23
        %v2867 = vor.u32 4788187, %v2866
        %v2868 = vand.u32 2147483647, %v2867
        %v2870 = vcvt.s32.f32 %v2863
        %v2871 = vmul.f32 %v2870, %v2868
        %v2872 = vxor.u32 %v2871, 2147483648
        %v2873 = vsel %vm2790, %v2872, %v2871
        %v2874 = vsub.s32 4, %v2850
        %v2875 = vsel %vm2790, %v2874, %v2850
        %v2876 = vsel %vm2789, %v405, %v2873
        %v2877 = vsel %vm2789, 0, %v2875
        %v2878 = vcosq.f32.pop %v2876
        %v2879 = vsinq.f32.pop %v2876
        %vm2880 = vweird.f32 %v405
        %v2881 = vand.u32 %v2877, 3
        %vm2882 = vcmp.lt.s32.totalorder %v2881, 2
        %vm2883 = vcmp.eq.s32.totalorder %v2881, 0
        %v2884 = vxor.u32 %v2879, 2147483648
        %v2885 = vsel %vm2883, %v2878, %v2884
        %vm2886 = vcmp.eq.s32.totalorder %v2881, 2
        %v2887 = vxor.u32 %v2878, 2147483648
        %v2888 = vsel %vm2886, %v2887, %v2879
        %v2889 = vsel %vm2882, %v2885, %v2888
        %v2890 = vsel %vm2880, nan, %v2889
        %v2891 = vand.u32 2147483647, %v296
        %vm2892 = vcmp.le.f32.partialorder %v2891, 0.7853982
        %vm2893 = vcmp.lt.s32.totalorder %v296, 0
        %v2894 = vand.u32 %v296, 2139095040
        %v2895 = vshrl.u32 %v2894, 23
        %v2896 = vsub.s32 %v2895, 127
        %v2897 = vand.u32 2147483647, %v296
        %v2898 = vand.u32 %v2897, 8388607
        %v2899 = vor.u32 %v2898, 8388608
        %v2900 = vsub.s32 0, %v2899
        %v2901 = vadd.s32 %v2896, 1
        %vm2902 = vcmp.gt.s32.totalorder %v2901, 0
        %v2903 = vsel %vm2902, %v2901, 0
        %v2904 = vshrl.u32 %v2903, 5
        %v2905 = vand.u32 %v2903, 31
        %v2906 = vsub.s32 32, %v2905
        %v2907 = vshrl.u32 683565275, %v2906
        %v2908 = vshll.u32 683565275, %v2905
        %v2909 = vshrl.u32 2475754826, %v2906
        %v2910 = vor.u32 %v2908, %v2909
        %v2911 = vshll.u32 2475754826, %v2905
        %v2912 = vshrl.u32 2131351028, %v2906
        %v2913 = vor.u32 %v2911, %v2912
        %v2914 = vshll.u32 2131351028, %v2905
        %v2915 = vshrl.u32 2102212464, %v2906
        %v2916 = vor.u32 %v2914, %v2915
        %v2917 = vshll.u32 2102212464, %v2905
        %v2918 = vshrl.u32 920167782, %v2906
        %v2919 = vor.u32 %v2917, %v2918
        %v2920 = vshll.u32 920167782, %v2905
        %v2921 = vshrl.u32 1326507024, %v2906
        %v2922 = vor.u32 %v2920, %v2921
        %vm2923 = vcmp.lt.s32.totalorder %v2904, 1
        %vm2924 = vcmp.lt.s32.totalorder %v2904, 2
        %vm2925 = vcmp.lt.s32.totalorder %v2904, 3
        %vm2926 = vcmp.lt.s32.totalorder %v2904, 4
        %v2927 = vsel %vm2923, %v2907, %v2910
        %v2928 = vsel %vm2926, %v2916, 2102212464
        %v2929 = vsel %vm2925, %v2913, %v2928
        %v2930 = vsel %vm2924, %v2927, %v2929
        %v2931 = vsel %vm2923, %v2910, %v2913
        %v2932 = vsel %vm2926, %v2919, 920167782
        %v2933 = vsel %vm2925, %v2916, %v2932
        %v2934 = vsel %vm2924, %v2931, %v2933
        %v2935 = vsel %vm2923, %v2913, %v2916
        %v2936 = vsel %vm2926, %v2922, 1326507024
        %v2937 = vsel %vm2925, %v2919, %v2936
        %v2938 = vsel %vm2924, %v2935, %v2937
        %v2939 = vshll.u32 %v2899, 8
        %v2940 = vmul.u32.u64.compose %v2939, %v2938
        %v2941 = vextract.low.u32 %v2940
        %v2942 = vextract.high.u32 %v2940
        %v2943 = vmul.u32.u64.compose %v2939, %v2934
        %v2944 = vextract.low.u32 %v2943
        %v2945 = vextract.high.u32 %v2943
        %v2946 = vmul.u32 %v2939, %v2930
        %v2947 = vadd.s32 %v2942, %v2944
        %vm2948 = vc.u32 %v2942, %v2944
        %v2949 = vadd.s32 %v2945, 1
        %v2950 = vsel %vm2948, %v2949, %v2945
        %v2951 = vadd.s32 %v2946, %v2950
        %v2952 = vadd.s32 %v2951, 536870912
        %v2953 = vshrl.u32 %v2952, 30
        %v2954 = vshll.u32 %v2953, 30
        %v2955 = vsub.s32 %v2951, %v2954
        %vm2956 = vcmp.lt.s32.totalorder %v2955, 0
        %v2957 = vsub.s32 0, %v2955
        %v2958 = vsel %vm2956, %v2957, %v2955
        %v2959 = vclz %v2958
        %v2960 = vsub.s32 %v2959, 2
        %vm2961 = vcmp.gt.s32.totalorder 0, %v2960
        %v2962 = vsel %vm2961, 0, %v2960
        %v2963 = vsub.s32 32, %v2962
        %v2964 = vshll.u32 %v2955, %v2962
        %v2965 = vshrl.u32 %v2947, %v2963
        %v2966 = vor.u32 %v2964, %v2965
        %v2967 = vsub.s32 4294967266, %v2962
        %v2968 = vadd.s32 %v2967, 127
        %v2969 = vshll.u32 %v2968, 23
        %v2970 = vor.u32 4788187, %v2969
        %v2971 = vand.u32 2147483647, %v2970
        %v2973 = vcvt.s32.f32 %v2966
        %v2974 = vmul.f32 %v2973, %v2971
        %v2975 = vxor.u32 %v2974, 2147483648
        %v2976 = vsel %vm2893, %v2975, %v2974
        %v2977 = vsub.s32 4, %v2953
        %v2978 = vsel %vm2893, %v2977, %v2953
        %v2979 = vsel %vm2892, %v296, %v2976
        %v2980 = vsel %vm2892, 0, %v2978
        %v2981 = vcosq.f32.pop %v2979
        %v2982 = vsinq.f32.pop %v2979
        %vm2983 = vweird.f32 %v296
        %v2984 = vand.u32 %v2980, 3
        %vm2985 = vcmp.lt.s32.totalorder %v2984, 2
        %vm2986 = vcmp.eq.s32.totalorder %v2984, 0
        %v2987 = vxor.u32 %v2982, 2147483648
        %v2988 = vsel %vm2986, %v2981, %v2987
        %vm2989 = vcmp.eq.s32.totalorder %v2984, 2
        %v2990 = vxor.u32 %v2981, 2147483648
        %v2991 = vsel %vm2989, %v2990, %v2982
        %v2992 = vsel %vm2985, %v2988, %v2991
        %v2993 = vsel %vm2983, nan, %v2992
        %v2994 = vand.u32 2147483647, %v298
        %vm2995 = vcmp.le.f32.partialorder %v2994, 0.7853982
        %vm2996 = vcmp.lt.s32.totalorder %v298, 0
        %v2997 = vand.u32 %v298, 2139095040
        %v2998 = vshrl.u32 %v2997, 23
        %v2999 = vsub.s32 %v2998, 127
        %v3000 = vand.u32 2147483647, %v298
        %v3001 = vand.u32 %v3000, 8388607
        %v3002 = vor.u32 %v3001, 8388608
        %v3003 = vsub.s32 0, %v3002
        %v3004 = vadd.s32 %v2999, 1
        %vm3005 = vcmp.gt.s32.totalorder %v3004, 0
        %v3006 = vsel %vm3005, %v3004, 0
        %v3007 = vshrl.u32 %v3006, 5
        %v3008 = vand.u32 %v3006, 31
        %v3009 = vsub.s32 32, %v3008
        %v3010 = vshrl.u32 683565275, %v3009
        %v3011 = vshll.u32 683565275, %v3008
        %v3012 = vshrl.u32 2475754826, %v3009
        %v3013 = vor.u32 %v3011, %v3012
        %v3014 = vshll.u32 2475754826, %v3008
        %v3015 = vshrl.u32 2131351028, %v3009
        %v3016 = vor.u32 %v3014, %v3015
        %v3017 = vshll.u32 2131351028, %v3008
        %v3018 = vshrl.u32 2102212464, %v3009
        %v3019 = vor.u32 %v3017, %v3018
        %v3020 = vshll.u32 2102212464, %v3008
        %v3021 = vshrl.u32 920167782, %v3009
        %v3022 = vor.u32 %v3020, %v3021
        %v3023 = vshll.u32 920167782, %v3008
        %v3024 = vshrl.u32 1326507024, %v3009
        %v3025 = vor.u32 %v3023, %v3024
        %vm3026 = vcmp.lt.s32.totalorder %v3007, 1
        %vm3027 = vcmp.lt.s32.totalorder %v3007, 2
        %vm3028 = vcmp.lt.s32.totalorder %v3007, 3
        %vm3029 = vcmp.lt.s32.totalorder %v3007, 4
        %v3030 = vsel %vm3026, %v3010, %v3013
        %v3031 = vsel %vm3029, %v3019, 2102212464
        %v3032 = vsel %vm3028, %v3016, %v3031
        %v3033 = vsel %vm3027, %v3030, %v3032
        %v3034 = vsel %vm3026, %v3013, %v3016
        %v3035 = vsel %vm3029, %v3022, 920167782
        %v3036 = vsel %vm3028, %v3019, %v3035
        %v3037 = vsel %vm3027, %v3034, %v3036
        %v3038 = vsel %vm3026, %v3016, %v3019
        %v3039 = vsel %vm3029, %v3025, 1326507024
        %v3040 = vsel %vm3028, %v3022, %v3039
        %v3041 = vsel %vm3027, %v3038, %v3040
        %v3042 = vshll.u32 %v3002, 8
        %v3043 = vmul.u32.u64.compose %v3042, %v3041
        %v3044 = vextract.low.u32 %v3043
        %v3045 = vextract.high.u32 %v3043
        %v3046 = vmul.u32.u64.compose %v3042, %v3037
        %v3047 = vextract.low.u32 %v3046
        %v3048 = vextract.high.u32 %v3046
        %v3049 = vmul.u32 %v3042, %v3033
        %v3050 = vadd.s32 %v3045, %v3047
        %vm3051 = vc.u32 %v3045, %v3047
        %v3052 = vadd.s32 %v3048, 1
        %v3053 = vsel %vm3051, %v3052, %v3048
        %v3054 = vadd.s32 %v3049, %v3053
        %v3055 = vadd.s32 %v3054, 536870912
        %v3056 = vshrl.u32 %v3055, 30
        %v3057 = vshll.u32 %v3056, 30
        %v3058 = vsub.s32 %v3054, %v3057
        %vm3059 = vcmp.lt.s32.totalorder %v3058, 0
        %v3060 = vsub.s32 0, %v3058
        %v3061 = vsel %vm3059, %v3060, %v3058
        %v3062 = vclz %v3061
        %v3063 = vsub.s32 %v3062, 2
        %vm3064 = vcmp.gt.s32.totalorder 0, %v3063
        %v3065 = vsel %vm3064, 0, %v3063
        %v3066 = vsub.s32 32, %v3065
        %v3067 = vshll.u32 %v3058, %v3065
        %v3068 = vshrl.u32 %v3050, %v3066
        %v3069 = vor.u32 %v3067, %v3068
        %v3070 = vsub.s32 4294967266, %v3065
        %v3071 = vadd.s32 %v3070, 127
        %v3072 = vshll.u32 %v3071, 23
        %v3073 = vor.u32 4788187, %v3072
        %v3074 = vand.u32 2147483647, %v3073
        %v3076 = vcvt.s32.f32 %v3069
        %v3077 = vmul.f32 %v3076, %v3074
        %v3078 = vxor.u32 %v3077, 2147483648
        %v3079 = vsel %vm2996, %v3078, %v3077
        %v3080 = vsub.s32 4, %v3056
        %v3081 = vsel %vm2996, %v3080, %v3056
        %v3082 = vsel %vm2995, %v298, %v3079
        %v3083 = vsel %vm2995, 0, %v3081
        %v3084 = vcosq.f32.pop %v3082
        %v3085 = vsinq.f32.pop %v3082
        %vm3086 = vweird.f32 %v298
        %v3087 = vand.u32 %v3083, 3
        %vm3088 = vcmp.lt.s32.totalorder %v3087, 2
        %vm3089 = vcmp.eq.s32.totalorder %v3087, 0
        %v3090 = vxor.u32 %v3085, 2147483648
        %v3091 = vsel %vm3089, %v3084, %v3090
        %vm3092 = vcmp.eq.s32.totalorder %v3087, 2
        %v3093 = vxor.u32 %v3084, 2147483648
        %v3094 = vsel %vm3092, %v3093, %v3085
        %v3095 = vsel %vm3088, %v3091, %v3094
        %v3096 = vsel %vm3086, nan, %v3095
        %v3097 = vand.u32 2147483647, %v409
        %vm3098 = vcmp.le.f32.partialorder %v3097, 0.7853982
        %vm3099 = vcmp.lt.s32.totalorder %v409, 0
        %v3100 = vand.u32 %v409, 2139095040
        %v3101 = vshrl.u32 %v3100, 23
        %v3102 = vsub.s32 %v3101, 127
        %v3103 = vand.u32 2147483647, %v409
        %v3104 = vand.u32 %v3103, 8388607
        %v3105 = vor.u32 %v3104, 8388608
        %v3106 = vsub.s32 0, %v3105
        %v3107 = vadd.s32 %v3102, 1
        %vm3108 = vcmp.gt.s32.totalorder %v3107, 0
        %v3109 = vsel %vm3108, %v3107, 0
        %v3110 = vshrl.u32 %v3109, 5
        %v3111 = vand.u32 %v3109, 31
        %v3112 = vsub.s32 32, %v3111
        %v3113 = vshrl.u32 683565275, %v3112
        %v3114 = vshll.u32 683565275, %v3111
        %v3115 = vshrl.u32 2475754826, %v3112
        %v3116 = vor.u32 %v3114, %v3115
        %v3117 = vshll.u32 2475754826, %v3111
        %v3118 = vshrl.u32 2131351028, %v3112
        %v3119 = vor.u32 %v3117, %v3118
        %v3120 = vshll.u32 2131351028, %v3111
        %v3121 = vshrl.u32 2102212464, %v3112
        %v3122 = vor.u32 %v3120, %v3121
        %v3123 = vshll.u32 2102212464, %v3111
        %v3124 = vshrl.u32 920167782, %v3112
        %v3125 = vor.u32 %v3123, %v3124
        %v3126 = vshll.u32 920167782, %v3111
        %v3127 = vshrl.u32 1326507024, %v3112
        %v3128 = vor.u32 %v3126, %v3127
        %vm3129 = vcmp.lt.s32.totalorder %v3110, 1
        %vm3130 = vcmp.lt.s32.totalorder %v3110, 2
        %vm3131 = vcmp.lt.s32.totalorder %v3110, 3
        %vm3132 = vcmp.lt.s32.totalorder %v3110, 4
        %v3133 = vsel %vm3129, %v3113, %v3116
        %v3134 = vsel %vm3132, %v3122, 2102212464
        %v3135 = vsel %vm3131, %v3119, %v3134
        %v3136 = vsel %vm3130, %v3133, %v3135
        %v3137 = vsel %vm3129, %v3116, %v3119
        %v3138 = vsel %vm3132, %v3125, 920167782
        %v3139 = vsel %vm3131, %v3122, %v3138
        %v3140 = vsel %vm3130, %v3137, %v3139
        %v3141 = vsel %vm3129, %v3119, %v3122
        %v3142 = vsel %vm3132, %v3128, 1326507024
        %v3143 = vsel %vm3131, %v3125, %v3142
        %v3144 = vsel %vm3130, %v3141, %v3143
        %v3145 = vshll.u32 %v3105, 8
        %v3146 = vmul.u32.u64.compose %v3145, %v3144
        %v3147 = vextract.low.u32 %v3146
        %v3148 = vextract.high.u32 %v3146
        %v3149 = vmul.u32.u64.compose %v3145, %v3140
        %v3150 = vextract.low.u32 %v3149
        %v3151 = vextract.high.u32 %v3149
        %v3152 = vmul.u32 %v3145, %v3136
        %v3153 = vadd.s32 %v3148, %v3150
        %vm3154 = vc.u32 %v3148, %v3150
        %v3155 = vadd.s32 %v3151, 1
        %v3156 = vsel %vm3154, %v3155, %v3151
        %v3157 = vadd.s32 %v3152, %v3156
        %v3158 = vadd.s32 %v3157, 536870912
        %v3159 = vshrl.u32 %v3158, 30
        %v3160 = vshll.u32 %v3159, 30
        %v3161 = vsub.s32 %v3157, %v3160
        %vm3162 = vcmp.lt.s32.totalorder %v3161, 0
        %v3163 = vsub.s32 0, %v3161
        %v3164 = vsel %vm3162, %v3163, %v3161
        %v3165 = vclz %v3164
        %v3166 = vsub.s32 %v3165, 2
        %vm3167 = vcmp.gt.s32.totalorder 0, %v3166
        %v3168 = vsel %vm3167, 0, %v3166
        %v3169 = vsub.s32 32, %v3168
        %v3170 = vshll.u32 %v3161, %v3168
        %v3171 = vshrl.u32 %v3153, %v3169
        %v3172 = vor.u32 %v3170, %v3171
        %v3173 = vsub.s32 4294967266, %v3168
        %v3174 = vadd.s32 %v3173, 127
        %v3175 = vshll.u32 %v3174, 23
        %v3176 = vor.u32 4788187, %v3175
        %v3177 = vand.u32 2147483647, %v3176
        %v3179 = vcvt.s32.f32 %v3172
        %v3180 = vmul.f32 %v3179, %v3177
        %v3181 = vxor.u32 %v3180, 2147483648
        %v3182 = vsel %vm3099, %v3181, %v3180
        %v3183 = vsub.s32 4, %v3159
        %v3184 = vsel %vm3099, %v3183, %v3159
        %v3185 = vsel %vm3098, %v409, %v3182
        %v3186 = vsel %vm3098, 0, %v3184
        %v3187 = vcosq.f32.pop %v3185
        %v3188 = vsinq.f32.pop %v3185
        %vm3189 = vweird.f32 %v409
        %v3190 = vand.u32 %v3186, 3
        %vm3191 = vcmp.lt.s32.totalorder %v3190, 2
        %vm3192 = vcmp.eq.s32.totalorder %v3190, 0
        %v3193 = vxor.u32 %v3188, 2147483648
        %v3194 = vsel %vm3192, %v3187, %v3193
        %vm3195 = vcmp.eq.s32.totalorder %v3190, 2
        %v3196 = vxor.u32 %v3187, 2147483648
        %v3197 = vsel %vm3195, %v3196, %v3188
        %v3198 = vsel %vm3191, %v3194, %v3197
        %v3199 = vsel %vm3189, nan, %v3198
        %v3200 = vand.u32 2147483647, %v411
        %vm3201 = vcmp.le.f32.partialorder %v3200, 0.7853982
        %vm3202 = vcmp.lt.s32.totalorder %v411, 0
        %v3203 = vand.u32 %v411, 2139095040
        %v3204 = vshrl.u32 %v3203, 23
        %v3205 = vsub.s32 %v3204, 127
        %v3206 = vand.u32 2147483647, %v411
        %v3207 = vand.u32 %v3206, 8388607
        %v3208 = vor.u32 %v3207, 8388608
        %v3209 = vsub.s32 0, %v3208
        %v3210 = vadd.s32 %v3205, 1
        %vm3211 = vcmp.gt.s32.totalorder %v3210, 0
        %v3212 = vsel %vm3211, %v3210, 0
        %v3213 = vshrl.u32 %v3212, 5
        %v3214 = vand.u32 %v3212, 31
        %v3215 = vsub.s32 32, %v3214
        %v3216 = vshrl.u32 683565275, %v3215
        %v3217 = vshll.u32 683565275, %v3214
        %v3218 = vshrl.u32 2475754826, %v3215
        %v3219 = vor.u32 %v3217, %v3218
        %v3220 = vshll.u32 2475754826, %v3214
        %v3221 = vshrl.u32 2131351028, %v3215
        %v3222 = vor.u32 %v3220, %v3221
        %v3223 = vshll.u32 2131351028, %v3214
        %v3224 = vshrl.u32 2102212464, %v3215
        %v3225 = vor.u32 %v3223, %v3224
        %v3226 = vshll.u32 2102212464, %v3214
        %v3227 = vshrl.u32 920167782, %v3215
        %v3228 = vor.u32 %v3226, %v3227
        %v3229 = vshll.u32 920167782, %v3214
        %v3230 = vshrl.u32 1326507024, %v3215
        %v3231 = vor.u32 %v3229, %v3230
        %vm3232 = vcmp.lt.s32.totalorder %v3213, 1
        %vm3233 = vcmp.lt.s32.totalorder %v3213, 2
        %vm3234 = vcmp.lt.s32.totalorder %v3213, 3
        %vm3235 = vcmp.lt.s32.totalorder %v3213, 4
        %v3236 = vsel %vm3232, %v3216, %v3219
        %v3237 = vsel %vm3235, %v3225, 2102212464
        %v3238 = vsel %vm3234, %v3222, %v3237
        %v3239 = vsel %vm3233, %v3236, %v3238
        %v3240 = vsel %vm3232, %v3219, %v3222
        %v3241 = vsel %vm3235, %v3228, 920167782
        %v3242 = vsel %vm3234, %v3225, %v3241
        %v3243 = vsel %vm3233, %v3240, %v3242
        %v3244 = vsel %vm3232, %v3222, %v3225
        %v3245 = vsel %vm3235, %v3231, 1326507024
        %v3246 = vsel %vm3234, %v3228, %v3245
        %v3247 = vsel %vm3233, %v3244, %v3246
        %v3248 = vshll.u32 %v3208, 8
        %v3249 = vmul.u32.u64.compose %v3248, %v3247
        %v3250 = vextract.low.u32 %v3249
        %v3251 = vextract.high.u32 %v3249
        %v3252 = vmul.u32.u64.compose %v3248, %v3243
        %v3253 = vextract.low.u32 %v3252
        %v3254 = vextract.high.u32 %v3252
        %v3255 = vmul.u32 %v3248, %v3239
        %v3256 = vadd.s32 %v3251, %v3253
        %vm3257 = vc.u32 %v3251, %v3253
        %v3258 = vadd.s32 %v3254, 1
        %v3259 = vsel %vm3257, %v3258, %v3254
        %v3260 = vadd.s32 %v3255, %v3259
        %v3261 = vadd.s32 %v3260, 536870912
        %v3262 = vshrl.u32 %v3261, 30
        %v3263 = vshll.u32 %v3262, 30
        %v3264 = vsub.s32 %v3260, %v3263
        %vm3265 = vcmp.lt.s32.totalorder %v3264, 0
        %v3266 = vsub.s32 0, %v3264
        %v3267 = vsel %vm3265, %v3266, %v3264
        %v3268 = vclz %v3267
        %v3269 = vsub.s32 %v3268, 2
        %vm3270 = vcmp.gt.s32.totalorder 0, %v3269
        %v3271 = vsel %vm3270, 0, %v3269
        %v3272 = vsub.s32 32, %v3271
        %v3273 = vshll.u32 %v3264, %v3271
        %v3274 = vshrl.u32 %v3256, %v3272
        %v3275 = vor.u32 %v3273, %v3274
        %v3276 = vsub.s32 4294967266, %v3271
        %v3277 = vadd.s32 %v3276, 127
        %v3278 = vshll.u32 %v3277, 23
        %v3279 = vor.u32 4788187, %v3278
        %v3280 = vand.u32 2147483647, %v3279
        %v3282 = vcvt.s32.f32 %v3275
        %v3283 = vmul.f32 %v3282, %v3280
        %v3284 = vxor.u32 %v3283, 2147483648
        %v3285 = vsel %vm3202, %v3284, %v3283
        %v3286 = vsub.s32 4, %v3262
        %v3287 = vsel %vm3202, %v3286, %v3262
        %v3288 = vsel %vm3201, %v411, %v3285
        %v3289 = vsel %vm3201, 0, %v3287
        %v3290 = vcosq.f32.pop %v3288
        %v3291 = vsinq.f32.pop %v3288
        %vm3292 = vweird.f32 %v411
        %v3293 = vand.u32 %v3289, 3
        %vm3294 = vcmp.lt.s32.totalorder %v3293, 2
        %vm3295 = vcmp.eq.s32.totalorder %v3293, 0
        %v3296 = vxor.u32 %v3291, 2147483648
        %v3297 = vsel %vm3295, %v3290, %v3296
        %vm3298 = vcmp.eq.s32.totalorder %v3293, 2
        %v3299 = vxor.u32 %v3290, 2147483648
        %v3300 = vsel %vm3298, %v3299, %v3291
        %v3301 = vsel %vm3294, %v3297, %v3300
        %v3302 = vsel %vm3292, nan, %v3301
        %v3303 = vand.u32 2147483647, %v302
        %vm3304 = vcmp.le.f32.partialorder %v3303, 0.7853982
        %vm3305 = vcmp.lt.s32.totalorder %v302, 0
        %v3306 = vand.u32 %v302, 2139095040
        %v3307 = vshrl.u32 %v3306, 23
        %v3308 = vsub.s32 %v3307, 127
        %v3309 = vand.u32 2147483647, %v302
        %v3310 = vand.u32 %v3309, 8388607
        %v3311 = vor.u32 %v3310, 8388608
        %v3312 = vsub.s32 0, %v3311
        %v3313 = vadd.s32 %v3308, 1
        %vm3314 = vcmp.gt.s32.totalorder %v3313, 0
        %v3315 = vsel %vm3314, %v3313, 0
        %v3316 = vshrl.u32 %v3315, 5
        %v3317 = vand.u32 %v3315, 31
        %v3318 = vsub.s32 32, %v3317
        %v3319 = vshrl.u32 683565275, %v3318
        %v3320 = vshll.u32 683565275, %v3317
        %v3321 = vshrl.u32 2475754826, %v3318
        %v3322 = vor.u32 %v3320, %v3321
        %v3323 = vshll.u32 2475754826, %v3317
        %v3324 = vshrl.u32 2131351028, %v3318
        %v3325 = vor.u32 %v3323, %v3324
        %v3326 = vshll.u32 2131351028, %v3317
        %v3327 = vshrl.u32 2102212464, %v3318
        %v3328 = vor.u32 %v3326, %v3327
        %v3329 = vshll.u32 2102212464, %v3317
        %v3330 = vshrl.u32 920167782, %v3318
        %v3331 = vor.u32 %v3329, %v3330
        %v3332 = vshll.u32 920167782, %v3317
        %v3333 = vshrl.u32 1326507024, %v3318
        %v3334 = vor.u32 %v3332, %v3333
        %vm3335 = vcmp.lt.s32.totalorder %v3316, 1
        %vm3336 = vcmp.lt.s32.totalorder %v3316, 2
        %vm3337 = vcmp.lt.s32.totalorder %v3316, 3
        %vm3338 = vcmp.lt.s32.totalorder %v3316, 4
        %v3339 = vsel %vm3335, %v3319, %v3322
        %v3340 = vsel %vm3338, %v3328, 2102212464
        %v3341 = vsel %vm3337, %v3325, %v3340
        %v3342 = vsel %vm3336, %v3339, %v3341
        %v3343 = vsel %vm3335, %v3322, %v3325
        %v3344 = vsel %vm3338, %v3331, 920167782
        %v3345 = vsel %vm3337, %v3328, %v3344
        %v3346 = vsel %vm3336, %v3343, %v3345
        %v3347 = vsel %vm3335, %v3325, %v3328
        %v3348 = vsel %vm3338, %v3334, 1326507024
        %v3349 = vsel %vm3337, %v3331, %v3348
        %v3350 = vsel %vm3336, %v3347, %v3349
        %v3351 = vshll.u32 %v3311, 8
        %v3352 = vmul.u32.u64.compose %v3351, %v3350
        %v3353 = vextract.low.u32 %v3352
        %v3354 = vextract.high.u32 %v3352
        %v3355 = vmul.u32.u64.compose %v3351, %v3346
        %v3356 = vextract.low.u32 %v3355
        %v3357 = vextract.high.u32 %v3355
        %v3358 = vmul.u32 %v3351, %v3342
        %v3359 = vadd.s32 %v3354, %v3356
        %vm3360 = vc.u32 %v3354, %v3356
        %v3361 = vadd.s32 %v3357, 1
        %v3362 = vsel %vm3360, %v3361, %v3357
        %v3363 = vadd.s32 %v3358, %v3362
        %v3364 = vadd.s32 %v3363, 536870912
        %v3365 = vshrl.u32 %v3364, 30
        %v3366 = vshll.u32 %v3365, 30
        %v3367 = vsub.s32 %v3363, %v3366
        %vm3368 = vcmp.lt.s32.totalorder %v3367, 0
        %v3369 = vsub.s32 0, %v3367
        %v3370 = vsel %vm3368, %v3369, %v3367
        %v3371 = vclz %v3370
        %v3372 = vsub.s32 %v3371, 2
        %vm3373 = vcmp.gt.s32.totalorder 0, %v3372
        %v3374 = vsel %vm3373, 0, %v3372
        %v3375 = vsub.s32 32, %v3374
        %v3376 = vshll.u32 %v3367, %v3374
        %v3377 = vshrl.u32 %v3359, %v3375
        %v3378 = vor.u32 %v3376, %v3377
        %v3379 = vsub.s32 4294967266, %v3374
        %v3380 = vadd.s32 %v3379, 127
        %v3381 = vshll.u32 %v3380, 23
        %v3382 = vor.u32 4788187, %v3381
        %v3383 = vand.u32 2147483647, %v3382
        %v3385 = vcvt.s32.f32 %v3378
        %v3386 = vmul.f32 %v3385, %v3383
        %v3387 = vxor.u32 %v3386, 2147483648
        %v3388 = vsel %vm3305, %v3387, %v3386
        %v3389 = vsub.s32 4, %v3365
        %v3390 = vsel %vm3305, %v3389, %v3365
        %v3391 = vsel %vm3304, %v302, %v3388
        %v3392 = vsel %vm3304, 0, %v3390
        %v3393 = vcosq.f32.pop %v3391
        %v3394 = vsinq.f32.pop %v3391
        %vm3395 = vweird.f32 %v302
        %v3396 = vand.u32 %v3392, 3
        %vm3397 = vcmp.lt.s32.totalorder %v3396, 2
        %vm3398 = vcmp.eq.s32.totalorder %v3396, 0
        %v3399 = vxor.u32 %v3394, 2147483648
        %v3400 = vsel %vm3398, %v3393, %v3399
        %vm3401 = vcmp.eq.s32.totalorder %v3396, 2
        %v3402 = vxor.u32 %v3393, 2147483648
        %v3403 = vsel %vm3401, %v3402, %v3394
        %v3404 = vsel %vm3397, %v3400, %v3403
        %v3405 = vsel %vm3395, nan, %v3404
        %v3406 = vand.u32 2147483647, %v304
        %vm3407 = vcmp.le.f32.partialorder %v3406, 0.7853982
        %vm3408 = vcmp.lt.s32.totalorder %v304, 0
        %v3409 = vand.u32 %v304, 2139095040
        %v3410 = vshrl.u32 %v3409, 23
        %v3411 = vsub.s32 %v3410, 127
        %v3412 = vand.u32 2147483647, %v304
        %v3413 = vand.u32 %v3412, 8388607
        %v3414 = vor.u32 %v3413, 8388608
        %v3415 = vsub.s32 0, %v3414
        %v3416 = vadd.s32 %v3411, 1
        %vm3417 = vcmp.gt.s32.totalorder %v3416, 0
        %v3418 = vsel %vm3417, %v3416, 0
        %v3419 = vshrl.u32 %v3418, 5
        %v3420 = vand.u32 %v3418, 31
        %v3421 = vsub.s32 32, %v3420
        %v3422 = vshrl.u32 683565275, %v3421
        %v3423 = vshll.u32 683565275, %v3420
        %v3424 = vshrl.u32 2475754826, %v3421
        %v3425 = vor.u32 %v3423, %v3424
        %v3426 = vshll.u32 2475754826, %v3420
        %v3427 = vshrl.u32 2131351028, %v3421
        %v3428 = vor.u32 %v3426, %v3427
        %v3429 = vshll.u32 2131351028, %v3420
        %v3430 = vshrl.u32 2102212464, %v3421
        %v3431 = vor.u32 %v3429, %v3430
        %v3432 = vshll.u32 2102212464, %v3420
        %v3433 = vshrl.u32 920167782, %v3421
        %v3434 = vor.u32 %v3432, %v3433
        %v3435 = vshll.u32 920167782, %v3420
        %v3436 = vshrl.u32 1326507024, %v3421
        %v3437 = vor.u32 %v3435, %v3436
        %vm3438 = vcmp.lt.s32.totalorder %v3419, 1
        %vm3439 = vcmp.lt.s32.totalorder %v3419, 2
        %vm3440 = vcmp.lt.s32.totalorder %v3419, 3
        %vm3441 = vcmp.lt.s32.totalorder %v3419, 4
        %v3442 = vsel %vm3438, %v3422, %v3425
        %v3443 = vsel %vm3441, %v3431, 2102212464
        %v3444 = vsel %vm3440, %v3428, %v3443
        %v3445 = vsel %vm3439, %v3442, %v3444
        %v3446 = vsel %vm3438, %v3425, %v3428
        %v3447 = vsel %vm3441, %v3434, 920167782
        %v3448 = vsel %vm3440, %v3431, %v3447
        %v3449 = vsel %vm3439, %v3446, %v3448
        %v3450 = vsel %vm3438, %v3428, %v3431
        %v3451 = vsel %vm3441, %v3437, 1326507024
        %v3452 = vsel %vm3440, %v3434, %v3451
        %v3453 = vsel %vm3439, %v3450, %v3452
        %v3454 = vshll.u32 %v3414, 8
        %v3455 = vmul.u32.u64.compose %v3454, %v3453
        %v3456 = vextract.low.u32 %v3455
        %v3457 = vextract.high.u32 %v3455
        %v3458 = vmul.u32.u64.compose %v3454, %v3449
        %v3459 = vextract.low.u32 %v3458
        %v3460 = vextract.high.u32 %v3458
        %v3461 = vmul.u32 %v3454, %v3445
        %v3462 = vadd.s32 %v3457, %v3459
        %vm3463 = vc.u32 %v3457, %v3459
        %v3464 = vadd.s32 %v3460, 1
        %v3465 = vsel %vm3463, %v3464, %v3460
        %v3466 = vadd.s32 %v3461, %v3465
        %v3467 = vadd.s32 %v3466, 536870912
        %v3468 = vshrl.u32 %v3467, 30
        %v3469 = vshll.u32 %v3468, 30
        %v3470 = vsub.s32 %v3466, %v3469
        %vm3471 = vcmp.lt.s32.totalorder %v3470, 0
        %v3472 = vsub.s32 0, %v3470
        %v3473 = vsel %vm3471, %v3472, %v3470
        %v3474 = vclz %v3473
        %v3475 = vsub.s32 %v3474, 2
        %vm3476 = vcmp.gt.s32.totalorder 0, %v3475
        %v3477 = vsel %vm3476, 0, %v3475
        %v3478 = vsub.s32 32, %v3477
        %v3479 = vshll.u32 %v3470, %v3477
        %v3480 = vshrl.u32 %v3462, %v3478
        %v3481 = vor.u32 %v3479, %v3480
        %v3482 = vsub.s32 4294967266, %v3477
        %v3483 = vadd.s32 %v3482, 127
        %v3484 = vshll.u32 %v3483, 23
        %v3485 = vor.u32 4788187, %v3484
        %v3486 = vand.u32 2147483647, %v3485
        %v3488 = vcvt.s32.f32 %v3481
        %v3489 = vmul.f32 %v3488, %v3486
        %v3490 = vxor.u32 %v3489, 2147483648
        %v3491 = vsel %vm3408, %v3490, %v3489
        %v3492 = vsub.s32 4, %v3468
        %v3493 = vsel %vm3408, %v3492, %v3468
        %v3494 = vsel %vm3407, %v304, %v3491
        %v3495 = vsel %vm3407, 0, %v3493
        %v3496 = vcosq.f32.pop %v3494
        %v3497 = vsinq.f32.pop %v3494
        %vm3498 = vweird.f32 %v304
        %v3499 = vand.u32 %v3495, 3
        %vm3500 = vcmp.lt.s32.totalorder %v3499, 2
        %vm3501 = vcmp.eq.s32.totalorder %v3499, 0
        %v3502 = vxor.u32 %v3497, 2147483648
        %v3503 = vsel %vm3501, %v3496, %v3502
        %vm3504 = vcmp.eq.s32.totalorder %v3499, 2
        %v3505 = vxor.u32 %v3496, 2147483648
        %v3506 = vsel %vm3504, %v3505, %v3497
        %v3507 = vsel %vm3500, %v3503, %v3506
        %v3508 = vsel %vm3498, nan, %v3507
        %v3509 = vand.u32 2147483647, %v415
        %vm3510 = vcmp.le.f32.partialorder %v3509, 0.7853982
        %vm3511 = vcmp.lt.s32.totalorder %v415, 0
        %v3512 = vand.u32 %v415, 2139095040
        %v3513 = vshrl.u32 %v3512, 23
        %v3514 = vsub.s32 %v3513, 127
        %v3515 = vand.u32 2147483647, %v415
        %v3516 = vand.u32 %v3515, 8388607
        %v3517 = vor.u32 %v3516, 8388608
        %v3518 = vsub.s32 0, %v3517
        %v3519 = vadd.s32 %v3514, 1
        %vm3520 = vcmp.gt.s32.totalorder %v3519, 0
        %v3521 = vsel %vm3520, %v3519, 0
        %v3522 = vshrl.u32 %v3521, 5
        %v3523 = vand.u32 %v3521, 31
        %v3524 = vsub.s32 32, %v3523
        %v3525 = vshrl.u32 683565275, %v3524
        %v3526 = vshll.u32 683565275, %v3523
        %v3527 = vshrl.u32 2475754826, %v3524
        %v3528 = vor.u32 %v3526, %v3527
        %v3529 = vshll.u32 2475754826, %v3523
        %v3530 = vshrl.u32 2131351028, %v3524
        %v3531 = vor.u32 %v3529, %v3530
        %v3532 = vshll.u32 2131351028, %v3523
        %v3533 = vshrl.u32 2102212464, %v3524
        %v3534 = vor.u32 %v3532, %v3533
        %v3535 = vshll.u32 2102212464, %v3523
        %v3536 = vshrl.u32 920167782, %v3524
        %v3537 = vor.u32 %v3535, %v3536
        %v3538 = vshll.u32 920167782, %v3523
        %v3539 = vshrl.u32 1326507024, %v3524
        %v3540 = vor.u32 %v3538, %v3539
        %vm3541 = vcmp.lt.s32.totalorder %v3522, 1
        %vm3542 = vcmp.lt.s32.totalorder %v3522, 2
        %vm3543 = vcmp.lt.s32.totalorder %v3522, 3
        %vm3544 = vcmp.lt.s32.totalorder %v3522, 4
        %v3545 = vsel %vm3541, %v3525, %v3528
        %v3546 = vsel %vm3544, %v3534, 2102212464
        %v3547 = vsel %vm3543, %v3531, %v3546
        %v3548 = vsel %vm3542, %v3545, %v3547
        %v3549 = vsel %vm3541, %v3528, %v3531
        %v3550 = vsel %vm3544, %v3537, 920167782
        %v3551 = vsel %vm3543, %v3534, %v3550
        %v3552 = vsel %vm3542, %v3549, %v3551
        %v3553 = vsel %vm3541, %v3531, %v3534
        %v3554 = vsel %vm3544, %v3540, 1326507024
        %v3555 = vsel %vm3543, %v3537, %v3554
        %v3556 = vsel %vm3542, %v3553, %v3555
        %v3557 = vshll.u32 %v3517, 8
        %v3558 = vmul.u32.u64.compose %v3557, %v3556
        %v3559 = vextract.low.u32 %v3558
        %v3560 = vextract.high.u32 %v3558
        %v3561 = vmul.u32.u64.compose %v3557, %v3552
        %v3562 = vextract.low.u32 %v3561
        %v3563 = vextract.high.u32 %v3561
        %v3564 = vmul.u32 %v3557, %v3548
        %v3565 = vadd.s32 %v3560, %v3562
        %vm3566 = vc.u32 %v3560, %v3562
        %v3567 = vadd.s32 %v3563, 1
        %v3568 = vsel %vm3566, %v3567, %v3563
        %v3569 = vadd.s32 %v3564, %v3568
        %v3570 = vadd.s32 %v3569, 536870912
        %v3571 = vshrl.u32 %v3570, 30
        %v3572 = vshll.u32 %v3571, 30
        %v3573 = vsub.s32 %v3569, %v3572
        %vm3574 = vcmp.lt.s32.totalorder %v3573, 0
        %v3575 = vsub.s32 0, %v3573
        %v3576 = vsel %vm3574, %v3575, %v3573
        %v3577 = vclz %v3576
        %v3578 = vsub.s32 %v3577, 2
        %vm3579 = vcmp.gt.s32.totalorder 0, %v3578
        %v3580 = vsel %vm3579, 0, %v3578
        %v3581 = vsub.s32 32, %v3580
        %v3582 = vshll.u32 %v3573, %v3580
        %v3583 = vshrl.u32 %v3565, %v3581
        %v3584 = vor.u32 %v3582, %v3583
        %v3585 = vsub.s32 4294967266, %v3580
        %v3586 = vadd.s32 %v3585, 127
        %v3587 = vshll.u32 %v3586, 23
        %v3588 = vor.u32 4788187, %v3587
        %v3589 = vand.u32 2147483647, %v3588
        %v3591 = vcvt.s32.f32 %v3584
        %v3592 = vmul.f32 %v3591, %v3589
        %v3593 = vxor.u32 %v3592, 2147483648
        %v3594 = vsel %vm3511, %v3593, %v3592
        %v3595 = vsub.s32 4, %v3571
        %v3596 = vsel %vm3511, %v3595, %v3571
        %v3597 = vsel %vm3510, %v415, %v3594
        %v3598 = vsel %vm3510, 0, %v3596
        %v3599 = vcosq.f32.pop %v3597
        %v3600 = vsinq.f32.pop %v3597
        %vm3601 = vweird.f32 %v415
        %v3602 = vand.u32 %v3598, 3
        %vm3603 = vcmp.lt.s32.totalorder %v3602, 2
        %vm3604 = vcmp.eq.s32.totalorder %v3602, 0
        %v3605 = vxor.u32 %v3600, 2147483648
        %v3606 = vsel %vm3604, %v3599, %v3605
        %vm3607 = vcmp.eq.s32.totalorder %v3602, 2
        %v3608 = vxor.u32 %v3599, 2147483648
        %v3609 = vsel %vm3607, %v3608, %v3600
        %v3610 = vsel %vm3603, %v3606, %v3609
        %v3611 = vsel %vm3601, nan, %v3610
        %v3612 = vand.u32 2147483647, %v417
        %vm3613 = vcmp.le.f32.partialorder %v3612, 0.7853982
        %vm3614 = vcmp.lt.s32.totalorder %v417, 0
        %v3615 = vand.u32 %v417, 2139095040
        %v3616 = vshrl.u32 %v3615, 23
        %v3617 = vsub.s32 %v3616, 127
        %v3618 = vand.u32 2147483647, %v417
        %v3619 = vand.u32 %v3618, 8388607
        %v3620 = vor.u32 %v3619, 8388608
        %v3621 = vsub.s32 0, %v3620
        %v3622 = vadd.s32 %v3617, 1
        %vm3623 = vcmp.gt.s32.totalorder %v3622, 0
        %v3624 = vsel %vm3623, %v3622, 0
        %v3625 = vshrl.u32 %v3624, 5
        %v3626 = vand.u32 %v3624, 31
        %v3627 = vsub.s32 32, %v3626
        %v3628 = vshrl.u32 683565275, %v3627
        %v3629 = vshll.u32 683565275, %v3626
        %v3630 = vshrl.u32 2475754826, %v3627
        %v3631 = vor.u32 %v3629, %v3630
        %v3632 = vshll.u32 2475754826, %v3626
        %v3633 = vshrl.u32 2131351028, %v3627
        %v3634 = vor.u32 %v3632, %v3633
        %v3635 = vshll.u32 2131351028, %v3626
        %v3636 = vshrl.u32 2102212464, %v3627
        %v3637 = vor.u32 %v3635, %v3636
        %v3638 = vshll.u32 2102212464, %v3626
        %v3639 = vshrl.u32 920167782, %v3627
        %v3640 = vor.u32 %v3638, %v3639
        %v3641 = vshll.u32 920167782, %v3626
        %v3642 = vshrl.u32 1326507024, %v3627
        %v3643 = vor.u32 %v3641, %v3642
        %vm3644 = vcmp.lt.s32.totalorder %v3625, 1
        %vm3645 = vcmp.lt.s32.totalorder %v3625, 2
        %vm3646 = vcmp.lt.s32.totalorder %v3625, 3
        %vm3647 = vcmp.lt.s32.totalorder %v3625, 4
        %v3648 = vsel %vm3644, %v3628, %v3631
        %v3649 = vsel %vm3647, %v3637, 2102212464
        %v3650 = vsel %vm3646, %v3634, %v3649
        %v3651 = vsel %vm3645, %v3648, %v3650
        %v3652 = vsel %vm3644, %v3631, %v3634
        %v3653 = vsel %vm3647, %v3640, 920167782
        %v3654 = vsel %vm3646, %v3637, %v3653
        %v3655 = vsel %vm3645, %v3652, %v3654
        %v3656 = vsel %vm3644, %v3634, %v3637
        %v3657 = vsel %vm3647, %v3643, 1326507024
        %v3658 = vsel %vm3646, %v3640, %v3657
        %v3659 = vsel %vm3645, %v3656, %v3658
        %v3660 = vshll.u32 %v3620, 8
        %v3661 = vmul.u32.u64.compose %v3660, %v3659
        %v3662 = vextract.low.u32 %v3661
        %v3663 = vextract.high.u32 %v3661
        %v3664 = vmul.u32.u64.compose %v3660, %v3655
        %v3665 = vextract.low.u32 %v3664
        %v3666 = vextract.high.u32 %v3664
        %v3667 = vmul.u32 %v3660, %v3651
        %v3668 = vadd.s32 %v3663, %v3665
        %vm3669 = vc.u32 %v3663, %v3665
        %v3670 = vadd.s32 %v3666, 1
        %v3671 = vsel %vm3669, %v3670, %v3666
        %v3672 = vadd.s32 %v3667, %v3671
        %v3673 = vadd.s32 %v3672, 536870912
        %v3674 = vshrl.u32 %v3673, 30
        %v3675 = vshll.u32 %v3674, 30
        %v3676 = vsub.s32 %v3672, %v3675
        %vm3677 = vcmp.lt.s32.totalorder %v3676, 0
        %v3678 = vsub.s32 0, %v3676
        %v3679 = vsel %vm3677, %v3678, %v3676
        %v3680 = vclz %v3679
        %v3681 = vsub.s32 %v3680, 2
        %vm3682 = vcmp.gt.s32.totalorder 0, %v3681
        %v3683 = vsel %vm3682, 0, %v3681
        %v3684 = vsub.s32 32, %v3683
        %v3685 = vshll.u32 %v3676, %v3683
        %v3686 = vshrl.u32 %v3668, %v3684
        %v3687 = vor.u32 %v3685, %v3686
        %v3688 = vsub.s32 4294967266, %v3683
        %v3689 = vadd.s32 %v3688, 127
        %v3690 = vshll.u32 %v3689, 23
        %v3691 = vor.u32 4788187, %v3690
        %v3692 = vand.u32 2147483647, %v3691
        %v3694 = vcvt.s32.f32 %v3687
        %v3695 = vmul.f32 %v3694, %v3692
        %v3696 = vxor.u32 %v3695, 2147483648
        %v3697 = vsel %vm3614, %v3696, %v3695
        %v3698 = vsub.s32 4, %v3674
        %v3699 = vsel %vm3614, %v3698, %v3674
        %v3700 = vsel %vm3613, %v417, %v3697
        %v3701 = vsel %vm3613, 0, %v3699
        %v3702 = vcosq.f32.pop %v3700
        %v3703 = vsinq.f32.pop %v3700
        %vm3704 = vweird.f32 %v417
        %v3705 = vand.u32 %v3701, 3
        %vm3706 = vcmp.lt.s32.totalorder %v3705, 2
        %vm3707 = vcmp.eq.s32.totalorder %v3705, 0
        %v3708 = vxor.u32 %v3703, 2147483648
        %v3709 = vsel %vm3707, %v3702, %v3708
        %vm3710 = vcmp.eq.s32.totalorder %v3705, 2
        %v3711 = vxor.u32 %v3702, 2147483648
        %v3712 = vsel %vm3710, %v3711, %v3703
        %v3713 = vsel %vm3706, %v3709, %v3712
        %v3714 = vsel %vm3704, nan, %v3713
        %3715 = vst [vmem:[%s137] sm:$0xff] %v521
        %3716 = vst [vmem:[%s137 + $0x8] sm:$0xff] %v624
        %3717 = vst [vmem:[%s137 + $0x10] sm:$0xff] %v727
        %3718 = vst [vmem:[%s137 + $0x18] sm:$0xff] %v830
        %3719 = vst [vmem:[%s137 + $0x20] sm:$0xff] %v933
        %3720 = vst [vmem:[%s137 + $0x28] sm:$0xff] %v1036
        %3721 = vst [vmem:[%s137 + $0x30] sm:$0xff] %v1139
        %3722 = vst [vmem:[%s137 + $0x38] sm:$0xff] %v1242
        %3723 = vst [vmem:[%s137 + $0x40] sm:$0xff] %v1345
        %3724 = vst [vmem:[%s137 + $0x48] sm:$0xff] %v1448
        %3725 = vst [vmem:[%s137 + $0x50] sm:$0xff] %v1551
        %3726 = vst [vmem:[%s137 + $0x58] sm:$0xff] %v1654
        %3727 = vst [vmem:[%s137 + $0x60] sm:$0xff] %v1757
        %3728 = vst [vmem:[%s137 + $0x68] sm:$0xff] %v1860
        %3729 = vst [vmem:[%s137 + $0x70] sm:$0xff] %v1963
        %3730 = vst [vmem:[%s137 + $0x78] sm:$0xff] %v2066
        %3731 = vst [vmem:[%s137 + $0x80] sm:$0xff] %v2169
        %3732 = vst [vmem:[%s137 + $0x88] sm:$0xff] %v2272
        %3733 = vst [vmem:[%s137 + $0x90] sm:$0xff] %v2375
        %3734 = vst [vmem:[%s137 + $0x98] sm:$0xff] %v2478
        %3735 = vst [vmem:[%s137 + $0xa0] sm:$0xff] %v2581
        %3736 = vst [vmem:[%s137 + $0xa8] sm:$0xff] %v2684
        %3737 = vst [vmem:[%s137 + $0xb0] sm:$0xff] %v2787
        %3738 = vst [vmem:[%s137 + $0xb8] sm:$0xff] %v2890
        %3739 = vst [vmem:[%s137 + $0xc0] sm:$0xff] %v2993
        %3740 = vst [vmem:[%s137 + $0xc8] sm:$0xff] %v3096
        %3741 = vst [vmem:[%s137 + $0xd0] sm:$0xff] %v3199
        %3742 = vst [vmem:[%s137 + $0xd8] sm:$0xff] %v3302
        %3743 = vst [vmem:[%s137 + $0xe0] sm:$0xff] %v3405
        %3744 = vst [vmem:[%s137 + $0xe8] sm:$0xff] %v3508
        %3745 = vst [vmem:[%s137 + $0xf0] sm:$0xff] %v3611
        %3746 = vst [vmem:[%s137 + $0xf8] sm:$0xff] %v3714
        %s3747 = sand.u32 %s71, 1
        %s3748 = scalar_lea.sflag [#allocation3], %s3747
        %s3749 = sand.u32 %s71, 1
        %s3750 = smul.addr %s3749, 256
        %s3751 = scalar_lea.vmem [#allocation2], %s3750
        // Predicated region
        $region29: #{tpu_custom_call.1} parent=27 // pred_check
          %p3752 = pneg %p81
        $region30: #{tpu_custom_call.1} parent=27 // pred_check_branch
          %3754 = sbr.rel (%p3752) target = $region32
        $region31: #{tpu_custom_call.1} parent=27 // pred_region
          %s3755 = smul.u32 8, %s16
          %s3757 = ssub.s32 4096, 4096
          %3758 = vsyncadd %s3748, %s3757
          %s3759 = smul.addr %s3755, 4
          %s3760 = smul.addr %s3759, 128
          %s3761 = scalar_lea.hbm %s2, %s3760
          %s3762 = sshll.u32 %s3751, 4
          %s3763 = int_to_ptr.vmem [resolvable:$true] %s3762
          %3768 = dma.vmem_to_hbm [thread:$0]  %s3763, 4096, %s3761, %s3748, 512, 512, 32
        $region32: #{tpu_custom_call.1} parent=27 // pred_fallthru
          _
      $region28: #{tpu_custom_call.1} parent=5 // pred_fallthru
        _
      %p3769 = scmp.le.s32.totalorder 2, %s11
      // Predicated region
      $region33: #{tpu_custom_call.1} parent=5 // pred_check
        %p3770 = pneg %p3769
      $region34: #{tpu_custom_call.1} parent=5 // pred_check_branch
        %3772 = sbr.rel (%p3770) target = $region36
      $region35: #{tpu_custom_call.1} parent=5 // pred_region
        %s3773 = ssub.s32 %s11, 2
        // Predicated region
        $region37: #{tpu_custom_call.1} parent=35 // pred_check
          %p3774 = pneg %p87
        $region38: #{tpu_custom_call.1} parent=35 // pred_check_branch
          %3776 = sbr.rel (%p3774) target = $region40
        $region39: #{tpu_custom_call.1} parent=35 // pred_region
          %s3777 = sand.u32 %s72, 1
          %s3778 = scalar_lea.sflag [#allocation3], %s3777
          %s3779 = sand.u32 %s72, 1
          %s3780 = smul.addr %s3779, 256
          %s3781 = scalar_lea.vmem [#allocation2], %s3780
          %3782 = dma.done %s3778, 4096
        $region40: #{tpu_custom_call.1} parent=35 // pred_fallthru
          _
      $region36: #{tpu_custom_call.1} parent=5 // pred_fallthru
        _
    $region6: #{tpu_custom_call.1} parent=1 // loop_footer
      %s15 = sadd.s32 1, %s11
    $region7: #{tpu_custom_call.1} parent=1 // loop_footer_branch
      %10 = sbr.rel target = $region3
    $region8: #{tpu_custom_call.1} parent=1 // loop_exit
      _
    %3783 = vsyncpa [#allocation3], 1
    %s3784 = scalar_lea.sflag [#allocation3], 1
    %3785 = vsyncpa %s3784, 1

</llo_original>
